<compile_context>
chip_gen: v6e
topology: v6e:2x2x1
jax: 0.10.0
libtpu: 0.0.40
codegen_flags: <defaults>
</compile_context>

<pallas_src>
import numpy as np
import jax
import jax.numpy as jnp
from jax.experimental import pallas as pl
from jax.experimental.pallas import tpu as pltpu

D_MODEL = 128                    # in_features / d_model
N_HEADS = 4
D_K = 80
D_HPAD = 128                     # head width padded 80 -> 128 (lane/MXU aligned)
D_INNER = N_HEADS * D_K          # 320
D_INNER_PAD = N_HEADS * D_HPAD   # 512
MAX_REL_DIST = 11
SUPPORT = (-0.1, 1.1)
MAX_CLAMP = 100.0
MIN_CLAMP = 0.001
NEG_INF = -1e9
LN_EPS = 1e-5

# ---------------------------------------------------------------------------
# Lanczos (g=7, n=9) lgamma as a rational P(x)/Q(x); evaluated with a single
# division and a single log (plus log(t)) per lgamma.
# ---------------------------------------------------------------------------
_LANCZOS_C = [0.99999999999980993, 676.5203681218851, -1259.1392167224028,
              771.32342877765313, -176.61502916214059, 12.507343278686905,
              -0.13857109526572012, 9.9843695780195716e-6, 1.5056327351493116e-7]
_HALF_LOG_2PI = float(0.5 * np.log(2.0 * np.pi))


def _lanczos_rational():
    q = np.poly1d([1.0])
    for j in range(1, 9):
        q = q * np.poly1d([1.0, float(j)])          # (x+1)...(x+8)
    p = _LANCZOS_C[0] * q
    for i in range(1, 9):
        qi = np.poly1d([1.0])
        for j in range(1, 9):
            if j != i:
                qi = qi * np.poly1d([1.0, float(j)])
        p = p + _LANCZOS_C[i] * qi
    return ([float(v) for v in p.coeffs], [float(v) for v in q.coeffs])


_LANCZOS_P, _LANCZOS_Q = _lanczos_rational()


def _poly(x, coeffs):
    acc = x * float(coeffs[0]) + float(coeffs[1])
    for c in coeffs[2:]:
        acc = acc * x + float(c)
    return acc


def _lgamma_ge1(w):
    """lgamma(w) for w >= 1 (direct Lanczos; 2 logs + 1 div per eval)."""
    x = w - 1.0
    t = x + 7.5
    ratio = _poly(x, _LANCZOS_P) / _poly(x, _LANCZOS_Q)
    return _HALF_LOG_2PI + (x + 0.5) * jnp.log(t) - t + jnp.log(ratio)


def _softplus(x):
    # torch.nn.functional.softplus (beta=1, threshold=20)
    safe = jnp.minimum(x, 20.0)
    return jnp.where(x > 20.0, x, jnp.log(1.0 + jnp.exp(safe)))


def _expm1_neg(x):
    """Accurate expm1 for x <= 0 (series for small |x|, avoids 1-exp cancel)."""
    ser = x * (1.0 + x * (0.5 + x * (1.0 / 6.0 + x * (1.0 / 24.0))))
    return jnp.where(x > -0.05, ser, jnp.exp(x) - 1.0)


# ---------------------------------------------------------------------------
# Kernel 1: fused bf16 QKV projection (both branches) + masked multi-head
# attention (128-padded heads) + folded score-linear/residual + LayerNorm +
# gram matrices + per-batch standardization partial sums.
# ---------------------------------------------------------------------------
def gram_kernel(q_ref, k_ref, v_ref, mq_ref, mk_ref,
                wqkv_ref, bqkv_ref,
                a_wsI_ref, a_bs_ref, a_g_ref, a_beta_ref,
                b_wsI_ref, b_bs_ref, b_g_ref, b_beta_ref,
                a_out_ref, b_out_ref, stats_ref,
                proj_ref, ctx_ref):
    s = q_ref.shape[1]
    scale = 1.0 / float(np.sqrt(N_HEADS))   # ScaledDotProductAttention(d_k=n_heads)

    # One wide projection for stacked [Q; K; V] x {a-branch | b-branch}:
    # (3S,128)bf16 @ (128,1024)bf16 -> f32.  x_all is built in VMEM only.
    x_all = jnp.concatenate([q_ref[0], k_ref[0], v_ref[0]],
                            axis=0).astype(jnp.bfloat16)
    proj_ref[...] = (jnp.dot(x_all, wqkv_ref[...],
                             preferred_element_type=jnp.float32) + bqkv_ref[...])

    # Pairwise padding mask, hoisted out of the head loop (one select per head).
    valid = (mq_ref[0] > 0.0) & (mk_ref[0] > 0.0)           # (S, S)

    def head_body(h, carry):
        off = pl.multiple_of(h * D_HPAD, D_HPAD)            # 128-aligned lane slab
        qh = proj_ref[0:s,         pl.ds(off, D_HPAD)].astype(jnp.bfloat16)
        kh = proj_ref[s:2 * s,     pl.ds(off, D_HPAD)].astype(jnp.bfloat16)
        vh = proj_ref[2 * s:3 * s, pl.ds(off, D_HPAD)].astype(jnp.bfloat16)
        sc = jax.lax.dot_general(qh, kh, (((1,), (1,)), ((), ())),
                                 preferred_element_type=jnp.float32)
        sc = jnp.where(valid, sc * scale, jnp.float32(NEG_INF))
        sc = sc - jnp.max(sc, axis=-1, keepdims=True)
        e = jnp.exp(sc)
        attn = e * pl.reciprocal(jnp.sum(e, axis=-1, keepdims=True), approx=True)
        ctx = jnp.dot(attn.astype(jnp.bfloat16), vh,
                      preferred_element_type=jnp.float32)    # (S, 128)
        ctx_ref[:, pl.ds(off, D_HPAD)] = ctx.astype(jnp.bfloat16)
        return carry

    # 8 = N_HEADS x 2 branches; heads of both branches are adjacent 128-lane
    # slabs of the fused projection / ctx buffers.
    jax.lax.fori_loop(0, 2 * N_HEADS, head_body, 0, unroll=True)

    def finish(ctx_h, wsI_ref, bs_ref, g_ref, beta_ref, out_ref):
        # score-linear + residual folded into (Ws^T + I): one K=512 matmul.
        c = (jnp.dot(ctx_h, wsI_ref[...], preferred_element_type=jnp.float32)
             + bs_ref[...])
        # LayerNorm (biased variance, eps=1e-5)
        mu = jnp.mean(c, axis=-1, keepdims=True)
        var = jnp.mean((c - mu) ** 2, axis=-1, keepdims=True)
        c = (c - mu) * jax.lax.rsqrt(var + LN_EPS) * g_ref[...] + beta_ref[...]
        cb = c.astype(jnp.bfloat16)
        g = jax.lax.dot_general(cb, cb, (((1,), (1,)), ((), ())),
                                preferred_element_type=jnp.float32)   # c @ c^T
        out_ref[0] = g
        return g

    ga = finish(ctx_ref[:, 0:D_INNER_PAD],
                a_wsI_ref, a_bs_ref, a_g_ref, a_beta_ref, a_out_ref)
    gb = finish(ctx_ref[:, D_INNER_PAD:2 * D_INNER_PAD],
                b_wsI_ref, b_bs_ref, b_g_ref, b_beta_ref, b_out_ref)

    # Per-batch partial sums for the global standardization stats (avoids a
    # second full HBM read of the (B,S,S) gram tensors).  Lane-dense (8,128)
    # slab: row0=sum(a), row1=sum(a^2), row2=sum(b), row3=sum(b^2).
    row = jax.lax.broadcasted_iota(jnp.int32, (8, 128), 0)
    stats_ref[0] = (jnp.where(row == 0, jnp.sum(ga), 0.0)
                    + jnp.where(row == 1, jnp.sum(ga * ga), 0.0)
                    + jnp.where(row == 2, jnp.sum(gb), 0.0)
                    + jnp.where(row == 3, jnp.sum(gb * gb), 0.0))


# ---------------------------------------------------------------------------
# Kernel 2 (tiled over batch x query rows): standardize (global stats via SMEM
# scalars) + rel-dist add + softplus/clamp + HardKuma deterministic decision.
# All elementwise math stays in f32.
# ---------------------------------------------------------------------------
def hardkuma_kernel(stats_ref, a_ref, b_ref, rel_ref, mq_ref, att_ref):
    l, r = SUPPORT
    log_t0 = float(np.log((0.0 - l) / (r - l)))   # unstretched coord of z = 0
    log_t1 = float(np.log((1.0 - l) / (r - l)))   # unstretched coord of z = 1

    rel = rel_ref[...]
    a = (a_ref[0] - stats_ref[0]) * stats_ref[1] + rel
    b = (b_ref[0] - stats_ref[2]) * stats_ref[3] + rel
    a = jnp.clip(_softplus(a), MIN_CLAMP, MAX_CLAMP)
    b = jnp.clip(_softplus(b), MIN_CLAMP, MAX_CLAMP)

    # Kuma CDF: F(x) = 1 - (1 - x^a)^b ; point masses of HardKuma at 0 / 1.
    log_u0 = jnp.log(-_expm1_neg(a * log_t0))     # log(1 - t0^a), safe near a~MIN
    log_u1 = jnp.log(-_expm1_neg(a * log_t1))
    p0 = 1.0 - jnp.exp(b * log_u0)                # P(z = 0) = F(t0)
    p1 = jnp.exp(b * log_u1)                      # P(z = 1) = 1 - F(t1)
    pc = 1.0 - p0 - p1
    zero_one = jnp.where(p0 > p1, jnp.float32(0.0), jnp.float32(1.0))

    # Kuma mean = b * Beta(1 + 1/a, b) = G(1+1/a) G(1+b) / G(1+1/a+b)
    inv_a = 1.0 / a                               # exact: feeds 3 lgamma evals
    pa = 1.0 + inv_a
    lbeta = _lgamma_ge1(pa) + _lgamma_ge1(1.0 + b) - _lgamma_ge1(pa + b)
    hk_mean = jnp.clip(l + (r - l) * jnp.exp(lbeta), 0.0, 1.0)

    att = jnp.where(pc < 0.5, zero_one, hk_mean)
    att_ref[0] = att * mq_ref[0]                  # query-side mask (matches ref)


# ---------------------------------------------------------------------------
# Parameters + wrapper
# ---------------------------------------------------------------------------
def init_params(key):
    ks = jax.random.split(key, 5)

    def linear(kk, fin, fout):
        k1, k2 = jax.random.split(kk)
        bound = 1.0 / float(np.sqrt(fin))
        w = jax.random.uniform(k1, (fout, fin), jnp.float32, -bound, bound)
        bvec = jax.random.uniform(k2, (fout,), jnp.float32, -bound, bound)
        return w, bvec

    a_wq, a_bq = linear(ks[0], D_MODEL, D_INNER)
    b_wq, b_bq = linear(ks[1], D_MODEL, D_INNER)
    a_ws, a_bs = linear(ks[2], D_INNER, D_INNER)
    b_ws, b_bs = linear(ks[3], D_INNER, D_INNER)
    dist_embed = jax.random.normal(ks[4], (2 * MAX_REL_DIST + 1, 1), jnp.float32)
    eye = jnp.eye(D_INNER, dtype=jnp.float32)

    def pad_lanes(wt):                       # (D,320) -> (D,512): 80->128 per head
        w4 = wt.reshape(D_MODEL, N_HEADS, D_K)
        w4 = jnp.pad(w4, ((0, 0), (0, 0), (0, D_HPAD - D_K)))
        return w4.reshape(D_MODEL, D_INNER_PAD)

    def pad_bias(bvec):                      # (320,) -> (1,512)
        b4 = bvec.reshape(N_HEADS, D_K)
        b4 = jnp.pad(b4, ((0, 0), (0, D_HPAD - D_K)))
        return b4.reshape(1, D_INNER_PAD)

    def pad_rows(w):                         # (320,320) -> (512,320): zero rows
        w4 = w.reshape(N_HEADS, D_K, D_INNER)
        w4 = jnp.pad(w4, ((0, 0), (0, D_HPAD - D_K), (0, 0)))
        return w4.reshape(D_INNER_PAD, D_INNER)

    # Original module reuses a_W_Q for Q, K AND V (and b_W_Q likewise); both
    # branch projections are fused along N (1024 lanes, 128-padded per head).
    w_qkv = jnp.concatenate([pad_lanes(a_wq.T), pad_lanes(b_wq.T)], axis=1)
    b_qkv = jnp.concatenate([pad_bias(a_bq), pad_bias(b_bq)], axis=1)

    return dict(
        w_qkv=w_qkv.astype(jnp.bfloat16),                       # (128, 1024)
        b_qkv=b_qkv,                                            # (1, 1024) f32
        a_wsI=pad_rows(a_ws.T + eye).astype(jnp.bfloat16),      # (512, 320)
        a_bs=a_bs.reshape(1, D_INNER),
        ln_a_g=jnp.ones((1, D_INNER), jnp.float32),
        ln_a_b=jnp.zeros((1, D_INNER), jnp.float32),
        b_wsI=pad_rows(b_ws.T + eye).astype(jnp.bfloat16),
        b_bs=b_bs.reshape(1, D_INNER),
        ln_b_g=jnp.ones((1, D_INNER), jnp.float32),
        ln_b_b=jnp.zeros((1, D_INNER), jnp.float32),
        dist_embed=dist_embed,
    )


def kuma_self_attention(Q, K, V, mask, p):
    B, S, D = Q.shape
    assert D == D_MODEL and S % 8 == 0
    maskf = mask.astype(jnp.float32)
    mask_q = maskf[:, :, None]        # (B, S, 1)
    mask_k = maskf[:, None, :]        # (B, 1, S)

    def per_batch(shape):
        z = (0,) * len(shape)
        return pl.BlockSpec((1,) + tuple(shape), lambda b, _z=z: (b,) + _z)

    def bcast(shape):
        z = (0,) * len(shape)
        return pl.BlockSpec(tuple(shape), lambda b, _z=z: _z)

    in_specs = [
        per_batch((S, D)), per_batch((S, D)), per_batch((S, D)),
        per_batch((S, 1)), per_batch((1, S)),
        bcast((D, 2 * D_INNER_PAD)), bcast((1, 2 * D_INNER_PAD)),
        bcast((D_INNER_PAD, D_INNER)), bcast((1, D_INNER)),
        bcast((1, D_INNER)), bcast((1, D_INNER)),
        bcast((D_INNER_PAD, D_INNER)), bcast((1, D_INNER)),
        bcast((1, D_INNER)), bcast((1, D_INNER)),
    ]
    out_specs = (per_batch((S, S)), per_batch((S, S)), per_batch((8, 128)))
    out_shape = (jax.ShapeDtypeStruct((B, S, S), jnp.float32),
                 jax.ShapeDtypeStruct((B, S, S), jnp.float32),
                 jax.ShapeDtypeStruct((B, 8, 128), jnp.float32))

    a_raw, b_raw, part = pl.pallas_call(
        gram_kernel,
        grid=(B,),
        in_specs=in_specs,
        out_specs=out_specs,
        out_shape=out_shape,
        scratch_shapes=[pltpu.VMEM((3 * S, 2 * D_INNER_PAD), jnp.float32),
                        pltpu.VMEM((S, 2 * D_INNER_PAD), jnp.bfloat16)],
        compiler_params=pltpu.CompilerParams(dimension_semantics=("parallel",)),
    )(Q, K, V, mask_q, mask_k,
      p["w_qkv"], p["b_qkv"],
      p["a_wsI"], p["a_bs"], p["ln_a_g"], p["ln_a_b"],
      p["b_wsI"], p["b_bs"], p["ln_b_g"], p["ln_b_b"])

    # Global mean / unbiased std (over all B*S*S elements, matching torch
    # .mean()/.std()) from the in-kernel per-batch partial sums — no second
    # full read of the (B,S,S) grams.
    tot = jnp.sum(part[:, 0:4, 0], axis=0)            # [sum_a, ssq_a, sum_b, ssq_b]
    n = float(B * S * S)
    mu_a = tot[0] / n
    mu_b = tot[2] / n
    var_a = jnp.maximum(tot[1] - n * mu_a * mu_a, 0.0) / (n - 1.0)
    var_b = jnp.maximum(tot[3] - n * mu_b * mu_b, 0.0) / (n - 1.0)
    stats = jnp.stack([mu_a, jax.lax.rsqrt(var_a),
                       mu_b, jax.lax.rsqrt(var_b)]).astype(jnp.float32)   # (4,)

    # relative distance embedding table lookup (tiny glue)
    pos = jnp.arange(S)
    rel_idx = jnp.clip(pos[None, :] - pos[:, None],
                       -MAX_REL_DIST, MAX_REL_DIST) + MAX_REL_DIST
    rel = p["dist_embed"][rel_idx, 0]                                     # (S, S)

    # Row tiling for kernel 2 (keeps VMEM small, gives v7x's 2 TCs grid points).
    tq = S
    for cand in (256, 128):
        if S > cand and S % cand == 0:
            tq = cand
            break

    att = pl.pallas_call(
        hardkuma_kernel,
        grid=(B, S // tq),
        in_specs=[
            pl.BlockSpec(memory_space=pltpu.MemorySpace.SMEM),            # stats
            pl.BlockSpec((1, tq, S), lambda b, i: (b, i, 0)),             # a
            pl.BlockSpec((1, tq, S), lambda b, i: (b, i, 0)),             # b
            pl.BlockSpec((tq, S), lambda b, i: (i, 0)),                   # rel
            pl.BlockSpec((1, tq, 1), lambda b, i: (b, i, 0)),             # mask_q
        ],
        out_specs=pl.BlockSpec((1, tq, S), lambda b, i: (b, i, 0)),
        out_shape=jax.ShapeDtypeStruct((B, S, S), jnp.float32),
        compiler_params=pltpu.CompilerParams(
            dimension_semantics=("parallel", "parallel")),
    )(stats, a_raw, b_raw, rel, mask_q)
    return att


if __name__ == "__main__":
    key = jax.random.PRNGKey(0)
    kp, kq, kk, kv = jax.random.split(key, 4)
    B, S = 2, 8
    params = init_params(kp)
    Q = jax.random.normal(kq, (B, S, D_MODEL), jnp.float32)
    K = jax.random.normal(kk, (B, S, D_MODEL), jnp.float32)
    V = jax.random.normal(kv, (B, S, D_MODEL), jnp.float32)
    mask = jnp.array([[1.0] * S, [1.0] * 6 + [0.0] * (S - 6)], jnp.float32)

    fn = jax.jit(lambda q, k, v, m: kuma_self_attention(q, k, v, m, params))
    att = jax.block_until_ready(fn(Q, K, V, mask))

    assert att.shape == (B, S, S)
    assert bool(jnp.all(jnp.isfinite(att)))
    assert bool(jnp.all((att >= 0.0) & (att <= 1.0)))
    print("KERNEL_OK")
</pallas_src>

<mosaic_0001>
module attributes {stable_mosaic.version = 11 : i64} {
  func.func @gram_kernel(%arg0: i32, %arg1: memref<1x8x128xf32, #tpu.memory_space<vmem>>, %arg2: memref<1x8x128xf32, #tpu.memory_space<vmem>>, %arg3: memref<1x8x128xf32, #tpu.memory_space<vmem>>, %arg4: memref<1x8x1xf32, #tpu.memory_space<vmem>>, %arg5: memref<1x1x8xf32, #tpu.memory_space<vmem>>, %arg6: memref<128x1024xbf16, #tpu.memory_space<vmem>>, %arg7: memref<1x1024xf32, #tpu.memory_space<vmem>>, %arg8: memref<512x320xbf16, #tpu.memory_space<vmem>>, %arg9: memref<1x320xf32, #tpu.memory_space<vmem>>, %arg10: memref<1x320xf32, #tpu.memory_space<vmem>>, %arg11: memref<1x320xf32, #tpu.memory_space<vmem>>, %arg12: memref<512x320xbf16, #tpu.memory_space<vmem>>, %arg13: memref<1x320xf32, #tpu.memory_space<vmem>>, %arg14: memref<1x320xf32, #tpu.memory_space<vmem>>, %arg15: memref<1x320xf32, #tpu.memory_space<vmem>>, %arg16: memref<1x8x8xf32, #tpu.memory_space<vmem>>, %arg17: memref<1x8x8xf32, #tpu.memory_space<vmem>>, %arg18: memref<1x8x128xf32, #tpu.memory_space<vmem>>, %arg19: memref<24x1024xf32, #tpu.memory_space<vmem>>, %arg20: memref<8x1024xbf16, #tpu.memory_space<vmem>>) attributes {dimension_semantics = [#tpu.dimension_semantics<parallel>], iteration_bounds = array<i64: 2>, scalar_prefetch = 0 : i64, scratch_operands = 2 : i64, tpu.core_type = #tpu.core_type<tc>, window_params = [{transform_indices = @transform_0, window_bounds = array<i64: 1, 8, 128>}, {transform_indices = @transform_1, window_bounds = array<i64: 1, 8, 128>}, {transform_indices = @transform_2, window_bounds = array<i64: 1, 8, 128>}, {transform_indices = @transform_3, window_bounds = array<i64: 1, 8, 1>}, {transform_indices = @transform_4, window_bounds = array<i64: 1, 1, 8>}, {pipeline_mode = #tpu.pipeline_mode<synchronous>, transform_indices = @transform_5, window_bounds = array<i64: 128, 1024>}, {pipeline_mode = #tpu.pipeline_mode<synchronous>, transform_indices = @transform_6, window_bounds = array<i64: 1, 1024>}, {pipeline_mode = #tpu.pipeline_mode<synchronous>, transform_indices = @transform_7, window_bounds = array<i64: 512, 320>}, {pipeline_mode = #tpu.pipeline_mode<synchronous>, transform_indices = @transform_8, window_bounds = array<i64: 1, 320>}, {pipeline_mode = #tpu.pipeline_mode<synchronous>, transform_indices = @transform_9, window_bounds = array<i64: 1, 320>}, {pipeline_mode = #tpu.pipeline_mode<synchronous>, transform_indices = @transform_10, window_bounds = array<i64: 1, 320>}, {pipeline_mode = #tpu.pipeline_mode<synchronous>, transform_indices = @transform_11, window_bounds = array<i64: 512, 320>}, {pipeline_mode = #tpu.pipeline_mode<synchronous>, transform_indices = @transform_12, window_bounds = array<i64: 1, 320>}, {pipeline_mode = #tpu.pipeline_mode<synchronous>, transform_indices = @transform_13, window_bounds = array<i64: 1, 320>}, {pipeline_mode = #tpu.pipeline_mode<synchronous>, transform_indices = @transform_14, window_bounds = array<i64: 1, 320>}, {transform_indices = @transform_15, window_bounds = array<i64: 1, 8, 8>}, {transform_indices = @transform_16, window_bounds = array<i64: 1, 8, 8>}, {transform_indices = @transform_17, window_bounds = array<i64: 1, 8, 128>}]} {
    %c0 = arith.constant 0 : index
    %c0_0 = arith.constant 0 : index
    %c0_1 = arith.constant 0 : index
    %0 = vector.load %arg1[%c0, %c0_0, %c0_1] : memref<1x8x128xf32, #tpu.memory_space<vmem>>, vector<1x8x128xf32>
    %1 = vector.shape_cast %0 : vector<1x8x128xf32> to vector<8x128xf32>
    %c0_2 = arith.constant 0 : index
    %c0_3 = arith.constant 0 : index
    %c0_4 = arith.constant 0 : index
    %2 = vector.load %arg2[%c0_2, %c0_3, %c0_4] : memref<1x8x128xf32, #tpu.memory_space<vmem>>, vector<1x8x128xf32>
    %3 = vector.shape_cast %2 : vector<1x8x128xf32> to vector<8x128xf32>
    %c0_5 = arith.constant 0 : index
    %c0_6 = arith.constant 0 : index
    %c0_7 = arith.constant 0 : index
    %4 = vector.load %arg3[%c0_5, %c0_6, %c0_7] : memref<1x8x128xf32, #tpu.memory_space<vmem>>, vector<1x8x128xf32>
    %5 = vector.shape_cast %4 : vector<1x8x128xf32> to vector<8x128xf32>
    %6 = tpu.concatenate %1, %3, %5 in 0 : vector<8x128xf32>, vector<8x128xf32>, vector<8x128xf32> -> vector<24x128xf32>
    %7 = arith.truncf %6 : vector<24x128xf32> to vector<24x128xbf16>
    %c0_8 = arith.constant 0 : index
    %c0_9 = arith.constant 0 : index
    %8 = vector.load %arg6[%c0_8, %c0_9] : memref<128x1024xbf16, #tpu.memory_space<vmem>>, vector<128x1024xbf16>
    %cst = arith.constant dense<0.000000e+00> : vector<24x1024xf32>
    %9 = tpu.matmul %7, %8, %cst {dimension_numbers = #tpu.dot_dimension_numbers<[1], [0], [0], [1], [0, 0, 1, 1], [], []>} : vector<24x128xbf16>, vector<128x1024xbf16>, vector<24x1024xf32> -> vector<24x1024xf32>
    %c0_10 = arith.constant 0 : index
    %c0_11 = arith.constant 0 : index
    %10 = vector.load %arg7[%c0_10, %c0_11] : memref<1x1024xf32, #tpu.memory_space<vmem>>, vector<1x1024xf32>
    %11 = vector.broadcast %10 : vector<1x1024xf32> to vector<24x1024xf32>
    %12 = arith.addf %9, %11 : vector<24x1024xf32>
    %c0_12 = arith.constant 0 : index
    %c0_13 = arith.constant 0 : index
    %13 = vector.load %arg19[%c0_12, %c0_13] : memref<24x1024xf32, #tpu.memory_space<vmem>>, vector<24x1024xf32>
    tpu.vector_store %arg19[%c0_12, %c0_13], %12 {strides = array<i32>} : memref<24x1024xf32, #tpu.memory_space<vmem>>, vector<24x1024xf32>,
    %c0_14 = arith.constant 0 : index
    %c0_15 = arith.constant 0 : index
    %c0_16 = arith.constant 0 : index
    %14 = vector.load %arg4[%c0_14, %c0_15, %c0_16] : memref<1x8x1xf32, #tpu.memory_space<vmem>>, vector<1x8x1xf32>
    %15 = vector.shape_cast %14 : vector<1x8x1xf32> to vector<8x1xf32>
    %cst_17 = arith.constant 0.000000e+00 : f32
    %16 = vector.broadcast %cst_17 : f32 to vector<8x1xf32>
    %17 = arith.cmpf ogt, %15, %16 : vector<8x1xf32>
    %c0_18 = arith.constant 0 : index
    %c0_19 = arith.constant 0 : index
    %c0_20 = arith.constant 0 : index
    %18 = vector.load %arg5[%c0_18, %c0_19, %c0_20] : memref<1x1x8xf32, #tpu.memory_space<vmem>>, vector<1x1x8xf32>
    %19 = vector.shape_cast %18 : vector<1x1x8xf32> to vector<1x8xf32>
    %cst_21 = arith.constant 0.000000e+00 : f32
    %20 = vector.broadcast %cst_21 : f32 to vector<1x8xf32>
    %21 = arith.cmpf ogt, %19, %20 : vector<1x8xf32>
    %22 = vector.broadcast %17 : vector<8x1xi1> to vector<8x8xi1>
    %23 = vector.broadcast %21 : vector<1x8xi1> to vector<8x8xi1>
    %24 = arith.andi %22, %23 : vector<8x8xi1>
    %c0_i32 = arith.constant 0 : i32
    %c128_i32 = arith.constant 128 : i32
    %25 = arith.muli %c0_i32, %c128_i32 : i32
    %26 = tpu.assume_multiple %25, 128 : i32
    %c0_22 = arith.constant 0 : index
    %27 = arith.index_cast %26 : i32 to index
    %28 = vector.load %arg19[%c0_22, %27] : memref<24x1024xf32, #tpu.memory_space<vmem>>, vector<8x128xf32>
    %29 = arith.truncf %28 : vector<8x128xf32> to vector<8x128xbf16>
    %c8 = arith.constant 8 : index
    %30 = arith.index_cast %26 : i32 to index
    %31 = vector.load %arg19[%c8, %30] : memref<24x1024xf32, #tpu.memory_space<vmem>>, vector<8x128xf32>
    %32 = arith.truncf %31 : vector<8x128xf32> to vector<8x128xbf16>
    %c16 = arith.constant 16 : index
    %33 = arith.index_cast %26 : i32 to index
    %34 = vector.load %arg19[%c16, %33] : memref<24x1024xf32, #tpu.memory_space<vmem>>, vector<8x128xf32>
    %35 = arith.truncf %34 : vector<8x128xf32> to vector<8x128xbf16>
    %cst_23 = arith.constant dense<0.000000e+00> : vector<8x8xf32>
    %36 = tpu.matmul %29, %32, %cst_23 {dimension_numbers = #tpu.dot_dimension_numbers<[1], [1], [0], [0], [0, 0, 1, 0], [], []>} : vector<8x128xbf16>, vector<8x128xbf16>, vector<8x8xf32> -> vector<8x8xf32>
    %cst_24 = arith.constant 5.000000e-01 : f32
    %37 = vector.broadcast %cst_24 : f32 to vector<8x8xf32>
    %38 = arith.mulf %36, %37 : vector<8x8xf32>
    %cst_25 = arith.constant -1.000000e+09 : f32
    %39 = vector.broadcast %cst_25 : f32 to vector<8x8xf32>
    %40 = arith.select %24, %38, %39 : vector<8x8xi1>, vector<8x8xf32>
    %cst_26 = arith.constant dense<0xFF800000> : vector<8xf32>
    %41 = vector.multi_reduction <maximumf>, %40, %cst_26 [1] : vector<8x8xf32> to vector<8xf32>
    %42 = vector.shape_cast %41 : vector<8xf32> to vector<8x1xf32>
    %43 = vector.broadcast %42 : vector<8x1xf32> to vector<8x8xf32>
    %44 = arith.subf %40, %43 : vector<8x8xf32>
    %45 = math.exp %44 : vector<8x8xf32>
    %cst_27 = arith.constant dense<0.000000e+00> : vector<8xf32>
    %46 = vector.multi_reduction <add>, %45, %cst_27 [1] : vector<8x8xf32> to vector<8xf32>
    %47 = vector.shape_cast %46 : vector<8xf32> to vector<8x1xf32>
    %48 = tpu.reciprocal %47 {approx = true} : vector<8x1xf32> -> vector<8x1xf32>
    %49 = vector.broadcast %48 : vector<8x1xf32> to vector<8x8xf32>
    %50 = arith.mulf %45, %49 : vector<8x8xf32>
    %51 = arith.truncf %50 : vector<8x8xf32> to vector<8x8xbf16>
    %cst_28 = arith.constant dense<0.000000e+00> : vector<8x128xf32>
    %52 = tpu.matmul %51, %35, %cst_28 {dimension_numbers = #tpu.dot_dimension_numbers<[1], [0], [0], [1], [0, 0, 1, 1], [], []>} : vector<8x8xbf16>, vector<8x128xbf16>, vector<8x128xf32> -> vector<8x128xf32>
    %53 = arith.truncf %52 : vector<8x128xf32> to vector<8x128xbf16>
    %c0_29 = arith.constant 0 : index
    %54 = arith.index_cast %26 : i32 to index
    %55 = vector.load %arg20[%c0_29, %54] : memref<8x1024xbf16, #tpu.memory_space<vmem>>, vector<8x128xbf16>
    tpu.vector_store %arg20[%c0_29, %54], %53 {strides = array<i32>} : memref<8x1024xbf16, #tpu.memory_space<vmem>>, vector<8x128xbf16>,
    %c1_i32 = arith.constant 1 : i32
    %c128_i32_30 = arith.constant 128 : i32
    %56 = arith.muli %c1_i32, %c128_i32_30 : i32
    %57 = tpu.assume_multiple %56, 128 : i32
    %c0_31 = arith.constant 0 : index
    %58 = arith.index_cast %57 : i32 to index
    %59 = vector.load %arg19[%c0_31, %58] : memref<24x1024xf32, #tpu.memory_space<vmem>>, vector<8x128xf32>
    %60 = arith.truncf %59 : vector<8x128xf32> to vector<8x128xbf16>
    %c8_32 = arith.constant 8 : index
    %61 = arith.index_cast %57 : i32 to index
    %62 = vector.load %arg19[%c8_32, %61] : memref<24x1024xf32, #tpu.memory_space<vmem>>, vector<8x128xf32>
    %63 = arith.truncf %62 : vector<8x128xf32> to vector<8x128xbf16>
    %c16_33 = arith.constant 16 : index
    %64 = arith.index_cast %57 : i32 to index
    %65 = vector.load %arg19[%c16_33, %64] : memref<24x1024xf32, #tpu.memory_space<vmem>>, vector<8x128xf32>
    %66 = arith.truncf %65 : vector<8x128xf32> to vector<8x128xbf16>
    %cst_34 = arith.constant dense<0.000000e+00> : vector<8x8xf32>
    %67 = tpu.matmul %60, %63, %cst_34 {dimension_numbers = #tpu.dot_dimension_numbers<[1], [1], [0], [0], [0, 0, 1, 0], [], []>} : vector<8x128xbf16>, vector<8x128xbf16>, vector<8x8xf32> -> vector<8x8xf32>
    %cst_35 = arith.constant 5.000000e-01 : f32
    %68 = vector.broadcast %cst_35 : f32 to vector<8x8xf32>
    %69 = arith.mulf %67, %68 : vector<8x8xf32>
    %cst_36 = arith.constant -1.000000e+09 : f32
    %70 = vector.broadcast %cst_36 : f32 to vector<8x8xf32>
    %71 = arith.select %24, %69, %70 : vector<8x8xi1>, vector<8x8xf32>
    %cst_37 = arith.constant dense<0xFF800000> : vector<8xf32>
    %72 = vector.multi_reduction <maximumf>, %71, %cst_37 [1] : vector<8x8xf32> to vector<8xf32>
    %73 = vector.shape_cast %72 : vector<8xf32> to vector<8x1xf32>
    %74 = vector.broadcast %73 : vector<8x1xf32> to vector<8x8xf32>
    %75 = arith.subf %71, %74 : vector<8x8xf32>
    %76 = math.exp %75 : vector<8x8xf32>
    %cst_38 = arith.constant dense<0.000000e+00> : vector<8xf32>
    %77 = vector.multi_reduction <add>, %76, %cst_38 [1] : vector<8x8xf32> to vector<8xf32>
    %78 = vector.shape_cast %77 : vector<8xf32> to vector<8x1xf32>
    %79 = tpu.reciprocal %78 {approx = true} : vector<8x1xf32> -> vector<8x1xf32>
    %80 = vector.broadcast %79 : vector<8x1xf32> to vector<8x8xf32>
    %81 = arith.mulf %76, %80 : vector<8x8xf32>
    %82 = arith.truncf %81 : vector<8x8xf32> to vector<8x8xbf16>
    %cst_39 = arith.constant dense<0.000000e+00> : vector<8x128xf32>
    %83 = tpu.matmul %82, %66, %cst_39 {dimension_numbers = #tpu.dot_dimension_numbers<[1], [0], [0], [1], [0, 0, 1, 1], [], []>} : vector<8x8xbf16>, vector<8x128xbf16>, vector<8x128xf32> -> vector<8x128xf32>
    %84 = arith.truncf %83 : vector<8x128xf32> to vector<8x128xbf16>
    %c0_40 = arith.constant 0 : index
    %85 = arith.index_cast %57 : i32 to index
    %86 = vector.load %arg20[%c0_40, %85] : memref<8x1024xbf16, #tpu.memory_space<vmem>>, vector<8x128xbf16>
    tpu.vector_store %arg20[%c0_40, %85], %84 {strides = array<i32>} : memref<8x1024xbf16, #tpu.memory_space<vmem>>, vector<8x128xbf16>,
    %c2_i32 = arith.constant 2 : i32
    %c128_i32_41 = arith.constant 128 : i32
    %87 = arith.muli %c2_i32, %c128_i32_41 : i32
    %88 = tpu.assume_multiple %87, 128 : i32
    %c0_42 = arith.constant 0 : index
    %89 = arith.index_cast %88 : i32 to index
    %90 = vector.load %arg19[%c0_42, %89] : memref<24x1024xf32, #tpu.memory_space<vmem>>, vector<8x128xf32>
    %91 = arith.truncf %90 : vector<8x128xf32> to vector<8x128xbf16>
    %c8_43 = arith.constant 8 : index
    %92 = arith.index_cast %88 : i32 to index
    %93 = vector.load %arg19[%c8_43, %92] : memref<24x1024xf32, #tpu.memory_space<vmem>>, vector<8x128xf32>
    %94 = arith.truncf %93 : vector<8x128xf32> to vector<8x128xbf16>
    %c16_44 = arith.constant 16 : index
    %95 = arith.index_cast %88 : i32 to index
    %96 = vector.load %arg19[%c16_44, %95] : memref<24x1024xf32, #tpu.memory_space<vmem>>, vector<8x128xf32>
    %97 = arith.truncf %96 : vector<8x128xf32> to vector<8x128xbf16>
    %cst_45 = arith.constant dense<0.000000e+00> : vector<8x8xf32>
    %98 = tpu.matmul %91, %94, %cst_45 {dimension_numbers = #tpu.dot_dimension_numbers<[1], [1], [0], [0], [0, 0, 1, 0], [], []>} : vector<8x128xbf16>, vector<8x128xbf16>, vector<8x8xf32> -> vector<8x8xf32>
    %cst_46 = arith.constant 5.000000e-01 : f32
    %99 = vector.broadcast %cst_46 : f32 to vector<8x8xf32>
    %100 = arith.mulf %98, %99 : vector<8x8xf32>
    %cst_47 = arith.constant -1.000000e+09 : f32
    %101 = vector.broadcast %cst_47 : f32 to vector<8x8xf32>
    %102 = arith.select %24, %100, %101 : vector<8x8xi1>, vector<8x8xf32>
    %cst_48 = arith.constant dense<0xFF800000> : vector<8xf32>
    %103 = vector.multi_reduction <maximumf>, %102, %cst_48 [1] : vector<8x8xf32> to vector<8xf32>
    %104 = vector.shape_cast %103 : vector<8xf32> to vector<8x1xf32>
    %105 = vector.broadcast %104 : vector<8x1xf32> to vector<8x8xf32>
    %106 = arith.subf %102, %105 : vector<8x8xf32>
    %107 = math.exp %106 : vector<8x8xf32>
    %cst_49 = arith.constant dense<0.000000e+00> : vector<8xf32>
    %108 = vector.multi_reduction <add>, %107, %cst_49 [1] : vector<8x8xf32> to vector<8xf32>
    %109 = vector.shape_cast %108 : vector<8xf32> to vector<8x1xf32>
    %110 = tpu.reciprocal %109 {approx = true} : vector<8x1xf32> -> vector<8x1xf32>
    %111 = vector.broadcast %110 : vector<8x1xf32> to vector<8x8xf32>
    %112 = arith.mulf %107, %111 : vector<8x8xf32>
    %113 = arith.truncf %112 : vector<8x8xf32> to vector<8x8xbf16>
    %cst_50 = arith.constant dense<0.000000e+00> : vector<8x128xf32>
    %114 = tpu.matmul %113, %97, %cst_50 {dimension_numbers = #tpu.dot_dimension_numbers<[1], [0], [0], [1], [0, 0, 1, 1], [], []>} : vector<8x8xbf16>, vector<8x128xbf16>, vector<8x128xf32> -> vector<8x128xf32>
    %115 = arith.truncf %114 : vector<8x128xf32> to vector<8x128xbf16>
    %c0_51 = arith.constant 0 : index
    %116 = arith.index_cast %88 : i32 to index
    %117 = vector.load %arg20[%c0_51, %116] : memref<8x1024xbf16, #tpu.memory_space<vmem>>, vector<8x128xbf16>
    tpu.vector_store %arg20[%c0_51, %116], %115 {strides = array<i32>} : memref<8x1024xbf16, #tpu.memory_space<vmem>>, vector<8x128xbf16>,
    %c3_i32 = arith.constant 3 : i32
    %c128_i32_52 = arith.constant 128 : i32
    %118 = arith.muli %c3_i32, %c128_i32_52 : i32
    %119 = tpu.assume_multiple %118, 128 : i32
    %c0_53 = arith.constant 0 : index
    %120 = arith.index_cast %119 : i32 to index
    %121 = vector.load %arg19[%c0_53, %120] : memref<24x1024xf32, #tpu.memory_space<vmem>>, vector<8x128xf32>
    %122 = arith.truncf %121 : vector<8x128xf32> to vector<8x128xbf16>
    %c8_54 = arith.constant 8 : index
    %123 = arith.index_cast %119 : i32 to index
    %124 = vector.load %arg19[%c8_54, %123] : memref<24x1024xf32, #tpu.memory_space<vmem>>, vector<8x128xf32>
    %125 = arith.truncf %124 : vector<8x128xf32> to vector<8x128xbf16>
    %c16_55 = arith.constant 16 : index
    %126 = arith.index_cast %119 : i32 to index
    %127 = vector.load %arg19[%c16_55, %126] : memref<24x1024xf32, #tpu.memory_space<vmem>>, vector<8x128xf32>
    %128 = arith.truncf %127 : vector<8x128xf32> to vector<8x128xbf16>
    %cst_56 = arith.constant dense<0.000000e+00> : vector<8x8xf32>
    %129 = tpu.matmul %122, %125, %cst_56 {dimension_numbers = #tpu.dot_dimension_numbers<[1], [1], [0], [0], [0, 0, 1, 0], [], []>} : vector<8x128xbf16>, vector<8x128xbf16>, vector<8x8xf32> -> vector<8x8xf32>
    %cst_57 = arith.constant 5.000000e-01 : f32
    %130 = vector.broadcast %cst_57 : f32 to vector<8x8xf32>
    %131 = arith.mulf %129, %130 : vector<8x8xf32>
    %cst_58 = arith.constant -1.000000e+09 : f32
    %132 = vector.broadcast %cst_58 : f32 to vector<8x8xf32>
    %133 = arith.select %24, %131, %132 : vector<8x8xi1>, vector<8x8xf32>
    %cst_59 = arith.constant dense<0xFF800000> : vector<8xf32>
    %134 = vector.multi_reduction <maximumf>, %133, %cst_59 [1] : vector<8x8xf32> to vector<8xf32>
    %135 = vector.shape_cast %134 : vector<8xf32> to vector<8x1xf32>
    %136 = vector.broadcast %135 : vector<8x1xf32> to vector<8x8xf32>
    %137 = arith.subf %133, %136 : vector<8x8xf32>
    %138 = math.exp %137 : vector<8x8xf32>
    %cst_60 = arith.constant dense<0.000000e+00> : vector<8xf32>
    %139 = vector.multi_reduction <add>, %138, %cst_60 [1] : vector<8x8xf32> to vector<8xf32>
    %140 = vector.shape_cast %139 : vector<8xf32> to vector<8x1xf32>
    %141 = tpu.reciprocal %140 {approx = true} : vector<8x1xf32> -> vector<8x1xf32>
    %142 = vector.broadcast %141 : vector<8x1xf32> to vector<8x8xf32>
    %143 = arith.mulf %138, %142 : vector<8x8xf32>
    %144 = arith.truncf %143 : vector<8x8xf32> to vector<8x8xbf16>
    %cst_61 = arith.constant dense<0.000000e+00> : vector<8x128xf32>
    %145 = tpu.matmul %144, %128, %cst_61 {dimension_numbers = #tpu.dot_dimension_numbers<[1], [0], [0], [1], [0, 0, 1, 1], [], []>} : vector<8x8xbf16>, vector<8x128xbf16>, vector<8x128xf32> -> vector<8x128xf32>
    %146 = arith.truncf %145 : vector<8x128xf32> to vector<8x128xbf16>
    %c0_62 = arith.constant 0 : index
    %147 = arith.index_cast %119 : i32 to index
    %148 = vector.load %arg20[%c0_62, %147] : memref<8x1024xbf16, #tpu.memory_space<vmem>>, vector<8x128xbf16>
    tpu.vector_store %arg20[%c0_62, %147], %146 {strides = array<i32>} : memref<8x1024xbf16, #tpu.memory_space<vmem>>, vector<8x128xbf16>,
    %c4_i32 = arith.constant 4 : i32
    %c128_i32_63 = arith.constant 128 : i32
    %149 = arith.muli %c4_i32, %c128_i32_63 : i32
    %150 = tpu.assume_multiple %149, 128 : i32
    %c0_64 = arith.constant 0 : index
    %151 = arith.index_cast %150 : i32 to index
    %152 = vector.load %arg19[%c0_64, %151] : memref<24x1024xf32, #tpu.memory_space<vmem>>, vector<8x128xf32>
    %153 = arith.truncf %152 : vector<8x128xf32> to vector<8x128xbf16>
    %c8_65 = arith.constant 8 : index
    %154 = arith.index_cast %150 : i32 to index
    %155 = vector.load %arg19[%c8_65, %154] : memref<24x1024xf32, #tpu.memory_space<vmem>>, vector<8x128xf32>
    %156 = arith.truncf %155 : vector<8x128xf32> to vector<8x128xbf16>
    %c16_66 = arith.constant 16 : index
    %157 = arith.index_cast %150 : i32 to index
    %158 = vector.load %arg19[%c16_66, %157] : memref<24x1024xf32, #tpu.memory_space<vmem>>, vector<8x128xf32>
    %159 = arith.truncf %158 : vector<8x128xf32> to vector<8x128xbf16>
    %cst_67 = arith.constant dense<0.000000e+00> : vector<8x8xf32>
    %160 = tpu.matmul %153, %156, %cst_67 {dimension_numbers = #tpu.dot_dimension_numbers<[1], [1], [0], [0], [0, 0, 1, 0], [], []>} : vector<8x128xbf16>, vector<8x128xbf16>, vector<8x8xf32> -> vector<8x8xf32>
    %cst_68 = arith.constant 5.000000e-01 : f32
    %161 = vector.broadcast %cst_68 : f32 to vector<8x8xf32>
    %162 = arith.mulf %160, %161 : vector<8x8xf32>
    %cst_69 = arith.constant -1.000000e+09 : f32
    %163 = vector.broadcast %cst_69 : f32 to vector<8x8xf32>
    %164 = arith.select %24, %162, %163 : vector<8x8xi1>, vector<8x8xf32>
    %cst_70 = arith.constant dense<0xFF800000> : vector<8xf32>
    %165 = vector.multi_reduction <maximumf>, %164, %cst_70 [1] : vector<8x8xf32> to vector<8xf32>
    %166 = vector.shape_cast %165 : vector<8xf32> to vector<8x1xf32>
    %167 = vector.broadcast %166 : vector<8x1xf32> to vector<8x8xf32>
    %168 = arith.subf %164, %167 : vector<8x8xf32>
    %169 = math.exp %168 : vector<8x8xf32>
    %cst_71 = arith.constant dense<0.000000e+00> : vector<8xf32>
    %170 = vector.multi_reduction <add>, %169, %cst_71 [1] : vector<8x8xf32> to vector<8xf32>
    %171 = vector.shape_cast %170 : vector<8xf32> to vector<8x1xf32>
    %172 = tpu.reciprocal %171 {approx = true} : vector<8x1xf32> -> vector<8x1xf32>
    %173 = vector.broadcast %172 : vector<8x1xf32> to vector<8x8xf32>
    %174 = arith.mulf %169, %173 : vector<8x8xf32>
    %175 = arith.truncf %174 : vector<8x8xf32> to vector<8x8xbf16>
    %cst_72 = arith.constant dense<0.000000e+00> : vector<8x128xf32>
    %176 = tpu.matmul %175, %159, %cst_72 {dimension_numbers = #tpu.dot_dimension_numbers<[1], [0], [0], [1], [0, 0, 1, 1], [], []>} : vector<8x8xbf16>, vector<8x128xbf16>, vector<8x128xf32> -> vector<8x128xf32>
    %177 = arith.truncf %176 : vector<8x128xf32> to vector<8x128xbf16>
    %c0_73 = arith.constant 0 : index
    %178 = arith.index_cast %150 : i32 to index
    %179 = vector.load %arg20[%c0_73, %178] : memref<8x1024xbf16, #tpu.memory_space<vmem>>, vector<8x128xbf16>
    tpu.vector_store %arg20[%c0_73, %178], %177 {strides = array<i32>} : memref<8x1024xbf16, #tpu.memory_space<vmem>>, vector<8x128xbf16>,
    %c5_i32 = arith.constant 5 : i32
    %c128_i32_74 = arith.constant 128 : i32
    %180 = arith.muli %c5_i32, %c128_i32_74 : i32
    %181 = tpu.assume_multiple %180, 128 : i32
    %c0_75 = arith.constant 0 : index
    %182 = arith.index_cast %181 : i32 to index
    %183 = vector.load %arg19[%c0_75, %182] : memref<24x1024xf32, #tpu.memory_space<vmem>>, vector<8x128xf32>
    %184 = arith.truncf %183 : vector<8x128xf32> to vector<8x128xbf16>
    %c8_76 = arith.constant 8 : index
    %185 = arith.index_cast %181 : i32 to index
    %186 = vector.load %arg19[%c8_76, %185] : memref<24x1024xf32, #tpu.memory_space<vmem>>, vector<8x128xf32>
    %187 = arith.truncf %186 : vector<8x128xf32> to vector<8x128xbf16>
    %c16_77 = arith.constant 16 : index
    %188 = arith.index_cast %181 : i32 to index
    %189 = vector.load %arg19[%c16_77, %188] : memref<24x1024xf32, #tpu.memory_space<vmem>>, vector<8x128xf32>
    %190 = arith.truncf %189 : vector<8x128xf32> to vector<8x128xbf16>
    %cst_78 = arith.constant dense<0.000000e+00> : vector<8x8xf32>
    %191 = tpu.matmul %184, %187, %cst_78 {dimension_numbers = #tpu.dot_dimension_numbers<[1], [1], [0], [0], [0, 0, 1, 0], [], []>} : vector<8x128xbf16>, vector<8x128xbf16>, vector<8x8xf32> -> vector<8x8xf32>
    %cst_79 = arith.constant 5.000000e-01 : f32
    %192 = vector.broadcast %cst_79 : f32 to vector<8x8xf32>
    %193 = arith.mulf %191, %192 : vector<8x8xf32>
    %cst_80 = arith.constant -1.000000e+09 : f32
    %194 = vector.broadcast %cst_80 : f32 to vector<8x8xf32>
    %195 = arith.select %24, %193, %194 : vector<8x8xi1>, vector<8x8xf32>
    %cst_81 = arith.constant dense<0xFF800000> : vector<8xf32>
    %196 = vector.multi_reduction <maximumf>, %195, %cst_81 [1] : vector<8x8xf32> to vector<8xf32>
    %197 = vector.shape_cast %196 : vector<8xf32> to vector<8x1xf32>
    %198 = vector.broadcast %197 : vector<8x1xf32> to vector<8x8xf32>
    %199 = arith.subf %195, %198 : vector<8x8xf32>
    %200 = math.exp %199 : vector<8x8xf32>
    %cst_82 = arith.constant dense<0.000000e+00> : vector<8xf32>
    %201 = vector.multi_reduction <add>, %200, %cst_82 [1] : vector<8x8xf32> to vector<8xf32>
    %202 = vector.shape_cast %201 : vector<8xf32> to vector<8x1xf32>
    %203 = tpu.reciprocal %202 {approx = true} : vector<8x1xf32> -> vector<8x1xf32>
    %204 = vector.broadcast %203 : vector<8x1xf32> to vector<8x8xf32>
    %205 = arith.mulf %200, %204 : vector<8x8xf32>
    %206 = arith.truncf %205 : vector<8x8xf32> to vector<8x8xbf16>
    %cst_83 = arith.constant dense<0.000000e+00> : vector<8x128xf32>
    %207 = tpu.matmul %206, %190, %cst_83 {dimension_numbers = #tpu.dot_dimension_numbers<[1], [0], [0], [1], [0, 0, 1, 1], [], []>} : vector<8x8xbf16>, vector<8x128xbf16>, vector<8x128xf32> -> vector<8x128xf32>
    %208 = arith.truncf %207 : vector<8x128xf32> to vector<8x128xbf16>
    %c0_84 = arith.constant 0 : index
    %209 = arith.index_cast %181 : i32 to index
    %210 = vector.load %arg20[%c0_84, %209] : memref<8x1024xbf16, #tpu.memory_space<vmem>>, vector<8x128xbf16>
    tpu.vector_store %arg20[%c0_84, %209], %208 {strides = array<i32>} : memref<8x1024xbf16, #tpu.memory_space<vmem>>, vector<8x128xbf16>,
    %c6_i32 = arith.constant 6 : i32
    %c128_i32_85 = arith.constant 128 : i32
    %211 = arith.muli %c6_i32, %c128_i32_85 : i32
    %212 = tpu.assume_multiple %211, 128 : i32
    %c0_86 = arith.constant 0 : index
    %213 = arith.index_cast %212 : i32 to index
    %214 = vector.load %arg19[%c0_86, %213] : memref<24x1024xf32, #tpu.memory_space<vmem>>, vector<8x128xf32>
    %215 = arith.truncf %214 : vector<8x128xf32> to vector<8x128xbf16>
    %c8_87 = arith.constant 8 : index
    %216 = arith.index_cast %212 : i32 to index
    %217 = vector.load %arg19[%c8_87, %216] : memref<24x1024xf32, #tpu.memory_space<vmem>>, vector<8x128xf32>
    %218 = arith.truncf %217 : vector<8x128xf32> to vector<8x128xbf16>
    %c16_88 = arith.constant 16 : index
    %219 = arith.index_cast %212 : i32 to index
    %220 = vector.load %arg19[%c16_88, %219] : memref<24x1024xf32, #tpu.memory_space<vmem>>, vector<8x128xf32>
    %221 = arith.truncf %220 : vector<8x128xf32> to vector<8x128xbf16>
    %cst_89 = arith.constant dense<0.000000e+00> : vector<8x8xf32>
    %222 = tpu.matmul %215, %218, %cst_89 {dimension_numbers = #tpu.dot_dimension_numbers<[1], [1], [0], [0], [0, 0, 1, 0], [], []>} : vector<8x128xbf16>, vector<8x128xbf16>, vector<8x8xf32> -> vector<8x8xf32>
    %cst_90 = arith.constant 5.000000e-01 : f32
    %223 = vector.broadcast %cst_90 : f32 to vector<8x8xf32>
    %224 = arith.mulf %222, %223 : vector<8x8xf32>
    %cst_91 = arith.constant -1.000000e+09 : f32
    %225 = vector.broadcast %cst_91 : f32 to vector<8x8xf32>
    %226 = arith.select %24, %224, %225 : vector<8x8xi1>, vector<8x8xf32>
    %cst_92 = arith.constant dense<0xFF800000> : vector<8xf32>
    %227 = vector.multi_reduction <maximumf>, %226, %cst_92 [1] : vector<8x8xf32> to vector<8xf32>
    %228 = vector.shape_cast %227 : vector<8xf32> to vector<8x1xf32>
    %229 = vector.broadcast %228 : vector<8x1xf32> to vector<8x8xf32>
    %230 = arith.subf %226, %229 : vector<8x8xf32>
    %231 = math.exp %230 : vector<8x8xf32>
    %cst_93 = arith.constant dense<0.000000e+00> : vector<8xf32>
    %232 = vector.multi_reduction <add>, %231, %cst_93 [1] : vector<8x8xf32> to vector<8xf32>
    %233 = vector.shape_cast %232 : vector<8xf32> to vector<8x1xf32>
    %234 = tpu.reciprocal %233 {approx = true} : vector<8x1xf32> -> vector<8x1xf32>
    %235 = vector.broadcast %234 : vector<8x1xf32> to vector<8x8xf32>
    %236 = arith.mulf %231, %235 : vector<8x8xf32>
    %237 = arith.truncf %236 : vector<8x8xf32> to vector<8x8xbf16>
    %cst_94 = arith.constant dense<0.000000e+00> : vector<8x128xf32>
    %238 = tpu.matmul %237, %221, %cst_94 {dimension_numbers = #tpu.dot_dimension_numbers<[1], [0], [0], [1], [0, 0, 1, 1], [], []>} : vector<8x8xbf16>, vector<8x128xbf16>, vector<8x128xf32> -> vector<8x128xf32>
    %239 = arith.truncf %238 : vector<8x128xf32> to vector<8x128xbf16>
    %c0_95 = arith.constant 0 : index
    %240 = arith.index_cast %212 : i32 to index
    %241 = vector.load %arg20[%c0_95, %240] : memref<8x1024xbf16, #tpu.memory_space<vmem>>, vector<8x128xbf16>
    tpu.vector_store %arg20[%c0_95, %240], %239 {strides = array<i32>} : memref<8x1024xbf16, #tpu.memory_space<vmem>>, vector<8x128xbf16>,
    %c7_i32 = arith.constant 7 : i32
    %c128_i32_96 = arith.constant 128 : i32
    %242 = arith.muli %c7_i32, %c128_i32_96 : i32
    %243 = tpu.assume_multiple %242, 128 : i32
    %c0_97 = arith.constant 0 : index
    %244 = arith.index_cast %243 : i32 to index
    %245 = vector.load %arg19[%c0_97, %244] : memref<24x1024xf32, #tpu.memory_space<vmem>>, vector<8x128xf32>
    %246 = arith.truncf %245 : vector<8x128xf32> to vector<8x128xbf16>
    %c8_98 = arith.constant 8 : index
    %247 = arith.index_cast %243 : i32 to index
    %248 = vector.load %arg19[%c8_98, %247] : memref<24x1024xf32, #tpu.memory_space<vmem>>, vector<8x128xf32>
    %249 = arith.truncf %248 : vector<8x128xf32> to vector<8x128xbf16>
    %c16_99 = arith.constant 16 : index
    %250 = arith.index_cast %243 : i32 to index
    %251 = vector.load %arg19[%c16_99, %250] : memref<24x1024xf32, #tpu.memory_space<vmem>>, vector<8x128xf32>
    %252 = arith.truncf %251 : vector<8x128xf32> to vector<8x128xbf16>
    %cst_100 = arith.constant dense<0.000000e+00> : vector<8x8xf32>
    %253 = tpu.matmul %246, %249, %cst_100 {dimension_numbers = #tpu.dot_dimension_numbers<[1], [1], [0], [0], [0, 0, 1, 0], [], []>} : vector<8x128xbf16>, vector<8x128xbf16>, vector<8x8xf32> -> vector<8x8xf32>
    %cst_101 = arith.constant 5.000000e-01 : f32
    %254 = vector.broadcast %cst_101 : f32 to vector<8x8xf32>
    %255 = arith.mulf %253, %254 : vector<8x8xf32>
    %cst_102 = arith.constant -1.000000e+09 : f32
    %256 = vector.broadcast %cst_102 : f32 to vector<8x8xf32>
    %257 = arith.select %24, %255, %256 : vector<8x8xi1>, vector<8x8xf32>
    %cst_103 = arith.constant dense<0xFF800000> : vector<8xf32>
    %258 = vector.multi_reduction <maximumf>, %257, %cst_103 [1] : vector<8x8xf32> to vector<8xf32>
    %259 = vector.shape_cast %258 : vector<8xf32> to vector<8x1xf32>
    %260 = vector.broadcast %259 : vector<8x1xf32> to vector<8x8xf32>
    %261 = arith.subf %257, %260 : vector<8x8xf32>
    %262 = math.exp %261 : vector<8x8xf32>
    %cst_104 = arith.constant dense<0.000000e+00> : vector<8xf32>
    %263 = vector.multi_reduction <add>, %262, %cst_104 [1] : vector<8x8xf32> to vector<8xf32>
    %264 = vector.shape_cast %263 : vector<8xf32> to vector<8x1xf32>
    %265 = tpu.reciprocal %264 {approx = true} : vector<8x1xf32> -> vector<8x1xf32>
    %266 = vector.broadcast %265 : vector<8x1xf32> to vector<8x8xf32>
    %267 = arith.mulf %262, %266 : vector<8x8xf32>
    %268 = arith.truncf %267 : vector<8x8xf32> to vector<8x8xbf16>
    %cst_105 = arith.constant dense<0.000000e+00> : vector<8x128xf32>
    %269 = tpu.matmul %268, %252, %cst_105 {dimension_numbers = #tpu.dot_dimension_numbers<[1], [0], [0], [1], [0, 0, 1, 1], [], []>} : vector<8x8xbf16>, vector<8x128xbf16>, vector<8x128xf32> -> vector<8x128xf32>
    %270 = arith.truncf %269 : vector<8x128xf32> to vector<8x128xbf16>
    %c0_106 = arith.constant 0 : index
    %271 = arith.index_cast %243 : i32 to index
    %272 = vector.load %arg20[%c0_106, %271] : memref<8x1024xbf16, #tpu.memory_space<vmem>>, vector<8x128xbf16>
    tpu.vector_store %arg20[%c0_106, %271], %270 {strides = array<i32>} : memref<8x1024xbf16, #tpu.memory_space<vmem>>, vector<8x128xbf16>,
    %c8_i32 = arith.constant 8 : i32
    %c0_107 = arith.constant 0 : index
    %c0_108 = arith.constant 0 : index
    %273 = vector.load %arg20[%c0_107, %c0_108] : memref<8x1024xbf16, #tpu.memory_space<vmem>>, vector<8x512xbf16>
    %c0_109 = arith.constant 0 : index
    %c0_110 = arith.constant 0 : index
    %274 = vector.load %arg8[%c0_109, %c0_110] : memref<512x320xbf16, #tpu.memory_space<vmem>>, vector<512x320xbf16>
    %cst_111 = arith.constant dense<0.000000e+00> : vector<8x320xf32>
    %275 = tpu.matmul %273, %274, %cst_111 {dimension_numbers = #tpu.dot_dimension_numbers<[1], [0], [0], [1], [0, 0, 1, 1], [], []>} : vector<8x512xbf16>, vector<512x320xbf16>, vector<8x320xf32> -> vector<8x320xf32>
    %c0_112 = arith.constant 0 : index
    %c0_113 = arith.constant 0 : index
    %276 = vector.load %arg9[%c0_112, %c0_113] : memref<1x320xf32, #tpu.memory_space<vmem>>, vector<1x320xf32>
    %277 = vector.broadcast %276 : vector<1x320xf32> to vector<8x320xf32>
    %278 = arith.addf %275, %277 : vector<8x320xf32>
    %cst_114 = arith.constant dense<0.000000e+00> : vector<8xf32>
    %279 = vector.multi_reduction <add>, %278, %cst_114 [1] : vector<8x320xf32> to vector<8xf32>
    %280 = vector.shape_cast %279 : vector<8xf32> to vector<8x1xf32>
    %cst_115 = arith.constant 3.200000e+02 : f32
    %281 = vector.broadcast %cst_115 : f32 to vector<8x1xf32>
    %282 = arith.divf %280, %281 : vector<8x1xf32>
    %283 = vector.broadcast %282 : vector<8x1xf32> to vector<8x320xf32>
    %284 = arith.subf %278, %283 : vector<8x320xf32>
    %285 = arith.mulf %284, %284 : vector<8x320xf32>
    %cst_116 = arith.constant dense<0.000000e+00> : vector<8xf32>
    %286 = vector.multi_reduction <add>, %285, %cst_116 [1] : vector<8x320xf32> to vector<8xf32>
    %287 = vector.shape_cast %286 : vector<8xf32> to vector<8x1xf32>
    %cst_117 = arith.constant 3.200000e+02 : f32
    %288 = vector.broadcast %cst_117 : f32 to vector<8x1xf32>
    %289 = arith.divf %287, %288 : vector<8x1xf32>
    %290 = vector.broadcast %282 : vector<8x1xf32> to vector<8x320xf32>
    %291 = arith.subf %278, %290 : vector<8x320xf32>
    %cst_118 = arith.constant 9.99999974E-6 : f32
    %292 = vector.broadcast %cst_118 : f32 to vector<8x1xf32>
    %293 = arith.addf %289, %292 : vector<8x1xf32>
    %294 = math.rsqrt %293 : vector<8x1xf32>
    %295 = vector.broadcast %294 : vector<8x1xf32> to vector<8x320xf32>
    %296 = arith.mulf %291, %295 : vector<8x320xf32>
    %c0_119 = arith.constant 0 : index
    %c0_120 = arith.constant 0 : index
    %297 = vector.load %arg10[%c0_119, %c0_120] : memref<1x320xf32, #tpu.memory_space<vmem>>, vector<1x320xf32>
    %298 = vector.broadcast %297 : vector<1x320xf32> to vector<8x320xf32>
    %299 = arith.mulf %296, %298 : vector<8x320xf32>
    %c0_121 = arith.constant 0 : index
    %c0_122 = arith.constant 0 : index
    %300 = vector.load %arg11[%c0_121, %c0_122] : memref<1x320xf32, #tpu.memory_space<vmem>>, vector<1x320xf32>
    %301 = vector.broadcast %300 : vector<1x320xf32> to vector<8x320xf32>
    %302 = arith.addf %299, %301 : vector<8x320xf32>
    %303 = arith.truncf %302 : vector<8x320xf32> to vector<8x320xbf16>
    %cst_123 = arith.constant dense<0.000000e+00> : vector<8x8xf32>
    %304 = tpu.matmul %303, %303, %cst_123 {dimension_numbers = #tpu.dot_dimension_numbers<[1], [1], [0], [0], [0, 0, 1, 0], [], []>} : vector<8x320xbf16>, vector<8x320xbf16>, vector<8x8xf32> -> vector<8x8xf32>
    %c0_124 = arith.constant 0 : index
    %c0_125 = arith.constant 0 : index
    %c0_126 = arith.constant 0 : index
    %305 = vector.load %arg16[%c0_124, %c0_125, %c0_126] : memref<1x8x8xf32, #tpu.memory_space<vmem>>, vector<1x8x8xf32>
    %306 = vector.shape_cast %305 : vector<1x8x8xf32> to vector<8x8xf32>
    %307 = vector.shape_cast %304 : vector<8x8xf32> to vector<1x8x8xf32>
    tpu.vector_store %arg16[%c0_124, %c0_125, %c0_126], %307 {strides = array<i32>} : memref<1x8x8xf32, #tpu.memory_space<vmem>>, vector<1x8x8xf32>,
    %c0_127 = arith.constant 0 : index
    %c512 = arith.constant 512 : index
    %308 = vector.load %arg20[%c0_127, %c512] : memref<8x1024xbf16, #tpu.memory_space<vmem>>, vector<8x512xbf16>
    %c0_128 = arith.constant 0 : index
    %c0_129 = arith.constant 0 : index
    %309 = vector.load %arg12[%c0_128, %c0_129] : memref<512x320xbf16, #tpu.memory_space<vmem>>, vector<512x320xbf16>
    %cst_130 = arith.constant dense<0.000000e+00> : vector<8x320xf32>
    %310 = tpu.matmul %308, %309, %cst_130 {dimension_numbers = #tpu.dot_dimension_numbers<[1], [0], [0], [1], [0, 0, 1, 1], [], []>} : vector<8x512xbf16>, vector<512x320xbf16>, vector<8x320xf32> -> vector<8x320xf32>
    %c0_131 = arith.constant 0 : index
    %c0_132 = arith.constant 0 : index
    %311 = vector.load %arg13[%c0_131, %c0_132] : memref<1x320xf32, #tpu.memory_space<vmem>>, vector<1x320xf32>
    %312 = vector.broadcast %311 : vector<1x320xf32> to vector<8x320xf32>
    %313 = arith.addf %310, %312 : vector<8x320xf32>
    %cst_133 = arith.constant dense<0.000000e+00> : vector<8xf32>
    %314 = vector.multi_reduction <add>, %313, %cst_133 [1] : vector<8x320xf32> to vector<8xf32>
    %315 = vector.shape_cast %314 : vector<8xf32> to vector<8x1xf32>
    %cst_134 = arith.constant 3.200000e+02 : f32
    %316 = vector.broadcast %cst_134 : f32 to vector<8x1xf32>
    %317 = arith.divf %315, %316 : vector<8x1xf32>
    %318 = vector.broadcast %317 : vector<8x1xf32> to vector<8x320xf32>
    %319 = arith.subf %313, %318 : vector<8x320xf32>
    %320 = arith.mulf %319, %319 : vector<8x320xf32>
    %cst_135 = arith.constant dense<0.000000e+00> : vector<8xf32>
    %321 = vector.multi_reduction <add>, %320, %cst_135 [1] : vector<8x320xf32> to vector<8xf32>
    %322 = vector.shape_cast %321 : vector<8xf32> to vector<8x1xf32>
    %cst_136 = arith.constant 3.200000e+02 : f32
    %323 = vector.broadcast %cst_136 : f32 to vector<8x1xf32>
    %324 = arith.divf %322, %323 : vector<8x1xf32>
    %325 = vector.broadcast %317 : vector<8x1xf32> to vector<8x320xf32>
    %326 = arith.subf %313, %325 : vector<8x320xf32>
    %cst_137 = arith.constant 9.99999974E-6 : f32
    %327 = vector.broadcast %cst_137 : f32 to vector<8x1xf32>
    %328 = arith.addf %324, %327 : vector<8x1xf32>
    %329 = math.rsqrt %328 : vector<8x1xf32>
    %330 = vector.broadcast %329 : vector<8x1xf32> to vector<8x320xf32>
    %331 = arith.mulf %326, %330 : vector<8x320xf32>
    %c0_138 = arith.constant 0 : index
    %c0_139 = arith.constant 0 : index
    %332 = vector.load %arg14[%c0_138, %c0_139] : memref<1x320xf32, #tpu.memory_space<vmem>>, vector<1x320xf32>
    %333 = vector.broadcast %332 : vector<1x320xf32> to vector<8x320xf32>
    %334 = arith.mulf %331, %333 : vector<8x320xf32>
    %c0_140 = arith.constant 0 : index
    %c0_141 = arith.constant 0 : index
    %335 = vector.load %arg15[%c0_140, %c0_141] : memref<1x320xf32, #tpu.memory_space<vmem>>, vector<1x320xf32>
    %336 = vector.broadcast %335 : vector<1x320xf32> to vector<8x320xf32>
    %337 = arith.addf %334, %336 : vector<8x320xf32>
    %338 = arith.truncf %337 : vector<8x320xf32> to vector<8x320xbf16>
    %cst_142 = arith.constant dense<0.000000e+00> : vector<8x8xf32>
    %339 = tpu.matmul %338, %338, %cst_142 {dimension_numbers = #tpu.dot_dimension_numbers<[1], [1], [0], [0], [0, 0, 1, 0], [], []>} : vector<8x320xbf16>, vector<8x320xbf16>, vector<8x8xf32> -> vector<8x8xf32>
    %c0_143 = arith.constant 0 : index
    %c0_144 = arith.constant 0 : index
    %c0_145 = arith.constant 0 : index
    %340 = vector.load %arg17[%c0_143, %c0_144, %c0_145] : memref<1x8x8xf32, #tpu.memory_space<vmem>>, vector<1x8x8xf32>
    %341 = vector.shape_cast %340 : vector<1x8x8xf32> to vector<8x8xf32>
    %342 = vector.shape_cast %339 : vector<8x8xf32> to vector<1x8x8xf32>
    tpu.vector_store %arg17[%c0_143, %c0_144, %c0_145], %342 {strides = array<i32>} : memref<1x8x8xf32, #tpu.memory_space<vmem>>, vector<1x8x8xf32>,
    %343 = tpu.iota {dimensions = array<i32: 0>} : vector<8x128xi32>
    %c0_i32_146 = arith.constant 0 : i32
    %344 = vector.broadcast %c0_i32_146 : i32 to vector<8x128xi32>
    %345 = arith.cmpi eq, %343, %344 : vector<8x128xi32>
    %346 = vector.shape_cast %304 : vector<8x8xf32> to vector<1x8x8xf32>
    %cst_147 = arith.constant dense<0.000000e+00> : vector<1xf32>
    %347 = vector.multi_reduction <add>, %346, %cst_147 [1, 2] : vector<1x8x8xf32> to vector<1xf32>
    %348 = vector.shape_cast %347 : vector<1xf32> to vector<1x1x1xf32>
    %349 = vector.extract %348[0, 0, 0] : f32 from vector<1x1x1xf32>
    %cst_148 = arith.constant 0.000000e+00 : f32
    %350 = vector.broadcast %349 : f32 to vector<8x128xf32>
    %351 = vector.broadcast %cst_148 : f32 to vector<8x128xf32>
    %352 = arith.select %345, %350, %351 : vector<8x128xi1>, vector<8x128xf32>
    %c1_i32_149 = arith.constant 1 : i32
    %353 = vector.broadcast %c1_i32_149 : i32 to vector<8x128xi32>
    %354 = arith.cmpi eq, %343, %353 : vector<8x128xi32>
    %355 = arith.mulf %304, %304 : vector<8x8xf32>
    %356 = vector.shape_cast %355 : vector<8x8xf32> to vector<1x8x8xf32>
    %cst_150 = arith.constant dense<0.000000e+00> : vector<1xf32>
    %357 = vector.multi_reduction <add>, %356, %cst_150 [1, 2] : vector<1x8x8xf32> to vector<1xf32>
    %358 = vector.shape_cast %357 : vector<1xf32> to vector<1x1x1xf32>
    %359 = vector.extract %358[0, 0, 0] : f32 from vector<1x1x1xf32>
    %cst_151 = arith.constant 0.000000e+00 : f32
    %360 = vector.broadcast %359 : f32 to vector<8x128xf32>
    %361 = vector.broadcast %cst_151 : f32 to vector<8x128xf32>
    %362 = arith.select %354, %360, %361 : vector<8x128xi1>, vector<8x128xf32>
    %363 = arith.addf %352, %362 : vector<8x128xf32>
    %c2_i32_152 = arith.constant 2 : i32
    %364 = vector.broadcast %c2_i32_152 : i32 to vector<8x128xi32>
    %365 = arith.cmpi eq, %343, %364 : vector<8x128xi32>
    %366 = vector.shape_cast %339 : vector<8x8xf32> to vector<1x8x8xf32>
    %cst_153 = arith.constant dense<0.000000e+00> : vector<1xf32>
    %367 = vector.multi_reduction <add>, %366, %cst_153 [1, 2] : vector<1x8x8xf32> to vector<1xf32>
    %368 = vector.shape_cast %367 : vector<1xf32> to vector<1x1x1xf32>
    %369 = vector.extract %368[0, 0, 0] : f32 from vector<1x1x1xf32>
    %cst_154 = arith.constant 0.000000e+00 : f32
    %370 = vector.broadcast %369 : f32 to vector<8x128xf32>
    %371 = vector.broadcast %cst_154 : f32 to vector<8x128xf32>
    %372 = arith.select %365, %370, %371 : vector<8x128xi1>, vector<8x128xf32>
    %373 = arith.addf %363, %372 : vector<8x128xf32>
    %c3_i32_155 = arith.constant 3 : i32
    %374 = vector.broadcast %c3_i32_155 : i32 to vector<8x128xi32>
    %375 = arith.cmpi eq, %343, %374 : vector<8x128xi32>
    %376 = arith.mulf %339, %339 : vector<8x8xf32>
    %377 = vector.shape_cast %376 : vector<8x8xf32> to vector<1x8x8xf32>
    %cst_156 = arith.constant dense<0.000000e+00> : vector<1xf32>
    %378 = vector.multi_reduction <add>, %377, %cst_156 [1, 2] : vector<1x8x8xf32> to vector<1xf32>
    %379 = vector.shape_cast %378 : vector<1xf32> to vector<1x1x1xf32>
    %380 = vector.extract %379[0, 0, 0] : f32 from vector<1x1x1xf32>
    %cst_157 = arith.constant 0.000000e+00 : f32
    %381 = vector.broadcast %380 : f32 to vector<8x128xf32>
    %382 = vector.broadcast %cst_157 : f32 to vector<8x128xf32>
    %383 = arith.select %375, %381, %382 : vector<8x128xi1>, vector<8x128xf32>
    %384 = arith.addf %373, %383 : vector<8x128xf32>
    %c0_158 = arith.constant 0 : index
    %c0_159 = arith.constant 0 : index
    %c0_160 = arith.constant 0 : index
    %385 = vector.load %arg18[%c0_158, %c0_159, %c0_160] : memref<1x8x128xf32, #tpu.memory_space<vmem>>, vector<1x8x128xf32>
    %386 = vector.shape_cast %385 : vector<1x8x128xf32> to vector<8x128xf32>
    %387 = vector.shape_cast %384 : vector<8x128xf32> to vector<1x8x128xf32>
    tpu.vector_store %arg18[%c0_158, %c0_159, %c0_160], %387 {strides = array<i32>} : memref<1x8x128xf32, #tpu.memory_space<vmem>>, vector<1x8x128xf32>,
    return
  }
  func.func @transform_0(%arg0: i32) -> (i32, i32, i32) {
    %c0_i32 = arith.constant 0 : i32
    %c0_i32_0 = arith.constant 0 : i32
    %c0_i32_1 = arith.constant 0 : i32
    return %arg0, %c0_i32, %c0_i32_0 : i32, i32, i32
  }
  func.func @transform_1(%arg0: i32) -> (i32, i32, i32) {
    %c0_i32 = arith.constant 0 : i32
    %c0_i32_0 = arith.constant 0 : i32
    %c0_i32_1 = arith.constant 0 : i32
    return %arg0, %c0_i32, %c0_i32_0 : i32, i32, i32
  }
  func.func @transform_2(%arg0: i32) -> (i32, i32, i32) {
    %c0_i32 = arith.constant 0 : i32
    %c0_i32_0 = arith.constant 0 : i32
    %c0_i32_1 = arith.constant 0 : i32
    return %arg0, %c0_i32, %c0_i32_0 : i32, i32, i32
  }
  func.func @transform_3(%arg0: i32) -> (i32, i32, i32) {
    %c0_i32 = arith.constant 0 : i32
    %c0_i32_0 = arith.constant 0 : i32
    %c0_i32_1 = arith.constant 0 : i32
    return %arg0, %c0_i32, %c0_i32_0 : i32, i32, i32
  }
  func.func @transform_4(%arg0: i32) -> (i32, i32, i32) {
    %c0_i32 = arith.constant 0 : i32
    %c0_i32_0 = arith.constant 0 : i32
    %c0_i32_1 = arith.constant 0 : i32
    return %arg0, %c0_i32, %c0_i32_0 : i32, i32, i32
  }
  func.func @transform_5(%arg0: i32) -> (i32, i32) {
    %c0_i32 = arith.constant 0 : i32
    %c0_i32_0 = arith.constant 0 : i32
    %c0_i32_1 = arith.constant 0 : i32
    return %c0_i32, %c0_i32_0 : i32, i32
  }
  func.func @transform_6(%arg0: i32) -> (i32, i32) {
    %c0_i32 = arith.constant 0 : i32
    %c0_i32_0 = arith.constant 0 : i32
    %c0_i32_1 = arith.constant 0 : i32
    return %c0_i32, %c0_i32_0 : i32, i32
  }
  func.func @transform_7(%arg0: i32) -> (i32, i32) {
    %c0_i32 = arith.constant 0 : i32
    %c0_i32_0 = arith.constant 0 : i32
    %c0_i32_1 = arith.constant 0 : i32
    return %c0_i32, %c0_i32_0 : i32, i32
  }
  func.func @transform_8(%arg0: i32) -> (i32, i32) {
    %c0_i32 = arith.constant 0 : i32
    %c0_i32_0 = arith.constant 0 : i32
    %c0_i32_1 = arith.constant 0 : i32
    return %c0_i32, %c0_i32_0 : i32, i32
  }
  func.func @transform_9(%arg0: i32) -> (i32, i32) {
    %c0_i32 = arith.constant 0 : i32
    %c0_i32_0 = arith.constant 0 : i32
    %c0_i32_1 = arith.constant 0 : i32
    return %c0_i32, %c0_i32_0 : i32, i32
  }
  func.func @transform_10(%arg0: i32) -> (i32, i32) {
    %c0_i32 = arith.constant 0 : i32
    %c0_i32_0 = arith.constant 0 : i32
    %c0_i32_1 = arith.constant 0 : i32
    return %c0_i32, %c0_i32_0 : i32, i32
  }
  func.func @transform_11(%arg0: i32) -> (i32, i32) {
    %c0_i32 = arith.constant 0 : i32
    %c0_i32_0 = arith.constant 0 : i32
    %c0_i32_1 = arith.constant 0 : i32
    return %c0_i32, %c0_i32_0 : i32, i32
  }
  func.func @transform_12(%arg0: i32) -> (i32, i32) {
    %c0_i32 = arith.constant 0 : i32
    %c0_i32_0 = arith.constant 0 : i32
    %c0_i32_1 = arith.constant 0 : i32
    return %c0_i32, %c0_i32_0 : i32, i32
  }
  func.func @transform_13(%arg0: i32) -> (i32, i32) {
    %c0_i32 = arith.constant 0 : i32
    %c0_i32_0 = arith.constant 0 : i32
    %c0_i32_1 = arith.constant 0 : i32
    return %c0_i32, %c0_i32_0 : i32, i32
  }
  func.func @transform_14(%arg0: i32) -> (i32, i32) {
    %c0_i32 = arith.constant 0 : i32
    %c0_i32_0 = arith.constant 0 : i32
    %c0_i32_1 = arith.constant 0 : i32
    return %c0_i32, %c0_i32_0 : i32, i32
  }
  func.func @transform_15(%arg0: i32) -> (i32, i32, i32) {
    %c0_i32 = arith.constant 0 : i32
    %c0_i32_0 = arith.constant 0 : i32
    %c0_i32_1 = arith.constant 0 : i32
    return %arg0, %c0_i32, %c0_i32_0 : i32, i32, i32
  }
  func.func @transform_16(%arg0: i32) -> (i32, i32, i32) {
    %c0_i32 = arith.constant 0 : i32
    %c0_i32_0 = arith.constant 0 : i32
    %c0_i32_1 = arith.constant 0 : i32
    return %arg0, %c0_i32, %c0_i32_0 : i32, i32, i32
  }
  func.func @transform_17(%arg0: i32) -> (i32, i32, i32) {
    %c0_i32 = arith.constant 0 : i32
    %c0_i32_0 = arith.constant 0 : i32
    %c0_i32_1 = arith.constant 0 : i32
    return %arg0, %c0_i32, %c0_i32_0 : i32, i32, i32
  }
}

module attributes {stable_mosaic.version = 11 : i64} {
  func.func @hardkuma_kernel(%arg0: i32, %arg1: i32, %arg2: memref<4xf32, #tpu.memory_space<smem>>, %arg3: memref<1x8x8xf32, #tpu.memory_space<vmem>>, %arg4: memref<1x8x8xf32, #tpu.memory_space<vmem>>, %arg5: memref<8x8xf32, #tpu.memory_space<vmem>>, %arg6: memref<1x8x1xf32, #tpu.memory_space<vmem>>, %arg7: memref<1x8x8xf32, #tpu.memory_space<vmem>>) attributes {dimension_semantics = [#tpu.dimension_semantics<parallel>, #tpu.dimension_semantics<parallel>], iteration_bounds = array<i64: 2, 1>, scalar_prefetch = 0 : i64, scratch_operands = 0 : i64, tpu.core_type = #tpu.core_type<tc>, window_params = [{transform_indices = @transform_0, window_bounds = array<i64: 4>}, {transform_indices = @transform_1, window_bounds = array<i64: 1, 8, 8>}, {transform_indices = @transform_2, window_bounds = array<i64: 1, 8, 8>}, {transform_indices = @transform_3, window_bounds = array<i64: 8, 8>}, {transform_indices = @transform_4, window_bounds = array<i64: 1, 8, 1>}, {transform_indices = @transform_5, window_bounds = array<i64: 1, 8, 8>}]} {
    %c0 = arith.constant 0 : index
    %c0_0 = arith.constant 0 : index
    %0 = vector.load %arg5[%c0, %c0_0] : memref<8x8xf32, #tpu.memory_space<vmem>>, vector<8x8xf32>
    %c0_1 = arith.constant 0 : index
    %c0_2 = arith.constant 0 : index
    %c0_3 = arith.constant 0 : index
    %1 = vector.load %arg3[%c0_1, %c0_2, %c0_3] : memref<1x8x8xf32, #tpu.memory_space<vmem>>, vector<1x8x8xf32>
    %2 = vector.shape_cast %1 : vector<1x8x8xf32> to vector<8x8xf32>
    %c0_4 = arith.constant 0 : index
    %3 = memref.load %arg2[%c0_4] : memref<4xf32, #tpu.memory_space<smem>>
    %4 = vector.broadcast %3 : f32 to vector<8x8xf32>
    %5 = arith.subf %2, %4 : vector<8x8xf32>
    %c1 = arith.constant 1 : index
    %6 = memref.load %arg2[%c1] : memref<4xf32, #tpu.memory_space<smem>>
    %7 = vector.broadcast %6 : f32 to vector<8x8xf32>
    %8 = arith.mulf %5, %7 : vector<8x8xf32>
    %9 = arith.addf %8, %0 : vector<8x8xf32>
    %c0_5 = arith.constant 0 : index
    %c0_6 = arith.constant 0 : index
    %c0_7 = arith.constant 0 : index
    %10 = vector.load %arg4[%c0_5, %c0_6, %c0_7] : memref<1x8x8xf32, #tpu.memory_space<vmem>>, vector<1x8x8xf32>
    %11 = vector.shape_cast %10 : vector<1x8x8xf32> to vector<8x8xf32>
    %c2 = arith.constant 2 : index
    %12 = memref.load %arg2[%c2] : memref<4xf32, #tpu.memory_space<smem>>
    %13 = vector.broadcast %12 : f32 to vector<8x8xf32>
    %14 = arith.subf %11, %13 : vector<8x8xf32>
    %c3 = arith.constant 3 : index
    %15 = memref.load %arg2[%c3] : memref<4xf32, #tpu.memory_space<smem>>
    %16 = vector.broadcast %15 : f32 to vector<8x8xf32>
    %17 = arith.mulf %14, %16 : vector<8x8xf32>
    %18 = arith.addf %17, %0 : vector<8x8xf32>
    %cst = arith.constant 2.000000e+01 : f32
    %19 = vector.broadcast %cst : f32 to vector<8x8xf32>
    %20 = arith.minimumf %9, %19 : vector<8x8xf32>
    %cst_8 = arith.constant 2.000000e+01 : f32
    %21 = vector.broadcast %cst_8 : f32 to vector<8x8xf32>
    %22 = arith.cmpf ogt, %9, %21 : vector<8x8xf32>
    %23 = math.exp %20 : vector<8x8xf32>
    %cst_9 = arith.constant 1.000000e+00 : f32
    %24 = vector.broadcast %cst_9 : f32 to vector<8x8xf32>
    %25 = arith.addf %24, %23 : vector<8x8xf32>
    %26 = math.log %25 : vector<8x8xf32>
    %27 = arith.select %22, %9, %26 : vector<8x8xi1>, vector<8x8xf32>
    %cst_10 = arith.constant 1.000000e-03 : f32
    %cst_11 = arith.constant 1.000000e+02 : f32
    %28 = vector.broadcast %cst_10 : f32 to vector<8x8xf32>
    %29 = arith.maximumf %28, %27 : vector<8x8xf32>
    %30 = vector.broadcast %cst_11 : f32 to vector<8x8xf32>
    %31 = arith.minimumf %30, %29 : vector<8x8xf32>
    %cst_12 = arith.constant 2.000000e+01 : f32
    %32 = vector.broadcast %cst_12 : f32 to vector<8x8xf32>
    %33 = arith.minimumf %18, %32 : vector<8x8xf32>
    %cst_13 = arith.constant 2.000000e+01 : f32
    %34 = vector.broadcast %cst_13 : f32 to vector<8x8xf32>
    %35 = arith.cmpf ogt, %18, %34 : vector<8x8xf32>
    %36 = math.exp %33 : vector<8x8xf32>
    %cst_14 = arith.constant 1.000000e+00 : f32
    %37 = vector.broadcast %cst_14 : f32 to vector<8x8xf32>
    %38 = arith.addf %37, %36 : vector<8x8xf32>
    %39 = math.log %38 : vector<8x8xf32>
    %40 = arith.select %35, %18, %39 : vector<8x8xi1>, vector<8x8xf32>
    %cst_15 = arith.constant 1.000000e-03 : f32
    %cst_16 = arith.constant 1.000000e+02 : f32
    %41 = vector.broadcast %cst_15 : f32 to vector<8x8xf32>
    %42 = arith.maximumf %41, %40 : vector<8x8xf32>
    %43 = vector.broadcast %cst_16 : f32 to vector<8x8xf32>
    %44 = arith.minimumf %43, %42 : vector<8x8xf32>
    %cst_17 = arith.constant -2.48490667 : f32
    %45 = vector.broadcast %cst_17 : f32 to vector<8x8xf32>
    %46 = arith.mulf %31, %45 : vector<8x8xf32>
    %cst_18 = arith.constant 0.0416666679 : f32
    %47 = vector.broadcast %cst_18 : f32 to vector<8x8xf32>
    %48 = arith.mulf %46, %47 : vector<8x8xf32>
    %cst_19 = arith.constant 0.166666672 : f32
    %49 = vector.broadcast %cst_19 : f32 to vector<8x8xf32>
    %50 = arith.addf %49, %48 : vector<8x8xf32>
    %51 = arith.mulf %46, %50 : vector<8x8xf32>
    %cst_20 = arith.constant 5.000000e-01 : f32
    %52 = vector.broadcast %cst_20 : f32 to vector<8x8xf32>
    %53 = arith.addf %52, %51 : vector<8x8xf32>
    %54 = arith.mulf %46, %53 : vector<8x8xf32>
    %cst_21 = arith.constant 1.000000e+00 : f32
    %55 = vector.broadcast %cst_21 : f32 to vector<8x8xf32>
    %56 = arith.addf %55, %54 : vector<8x8xf32>
    %57 = arith.mulf %46, %56 : vector<8x8xf32>
    %cst_22 = arith.constant -5.000000e-02 : f32
    %58 = vector.broadcast %cst_22 : f32 to vector<8x8xf32>
    %59 = arith.cmpf ogt, %46, %58 : vector<8x8xf32>
    %60 = math.exp %46 : vector<8x8xf32>
    %cst_23 = arith.constant 1.000000e+00 : f32
    %61 = vector.broadcast %cst_23 : f32 to vector<8x8xf32>
    %62 = arith.subf %60, %61 : vector<8x8xf32>
    %63 = arith.select %59, %57, %62 : vector<8x8xi1>, vector<8x8xf32>
    %cst_24 = arith.constant 0.000000e+00 : f32
    %64 = vector.broadcast %cst_24 : f32 to vector<8x8xf32>
    %65 = arith.subf %64, %63 : vector<8x8xf32>
    %66 = math.log %65 : vector<8x8xf32>
    %cst_25 = arith.constant -0.0870113745 : f32
    %67 = vector.broadcast %cst_25 : f32 to vector<8x8xf32>
    %68 = arith.mulf %31, %67 : vector<8x8xf32>
    %cst_26 = arith.constant 0.0416666679 : f32
    %69 = vector.broadcast %cst_26 : f32 to vector<8x8xf32>
    %70 = arith.mulf %68, %69 : vector<8x8xf32>
    %cst_27 = arith.constant 0.166666672 : f32
    %71 = vector.broadcast %cst_27 : f32 to vector<8x8xf32>
    %72 = arith.addf %71, %70 : vector<8x8xf32>
    %73 = arith.mulf %68, %72 : vector<8x8xf32>
    %cst_28 = arith.constant 5.000000e-01 : f32
    %74 = vector.broadcast %cst_28 : f32 to vector<8x8xf32>
    %75 = arith.addf %74, %73 : vector<8x8xf32>
    %76 = arith.mulf %68, %75 : vector<8x8xf32>
    %cst_29 = arith.constant 1.000000e+00 : f32
    %77 = vector.broadcast %cst_29 : f32 to vector<8x8xf32>
    %78 = arith.addf %77, %76 : vector<8x8xf32>
    %79 = arith.mulf %68, %78 : vector<8x8xf32>
    %cst_30 = arith.constant -5.000000e-02 : f32
    %80 = vector.broadcast %cst_30 : f32 to vector<8x8xf32>
    %81 = arith.cmpf ogt, %68, %80 : vector<8x8xf32>
    %82 = math.exp %68 : vector<8x8xf32>
    %cst_31 = arith.constant 1.000000e+00 : f32
    %83 = vector.broadcast %cst_31 : f32 to vector<8x8xf32>
    %84 = arith.subf %82, %83 : vector<8x8xf32>
    %85 = arith.select %81, %79, %84 : vector<8x8xi1>, vector<8x8xf32>
    %cst_32 = arith.constant 0.000000e+00 : f32
    %86 = vector.broadcast %cst_32 : f32 to vector<8x8xf32>
    %87 = arith.subf %86, %85 : vector<8x8xf32>
    %88 = math.log %87 : vector<8x8xf32>
    %89 = arith.mulf %44, %66 : vector<8x8xf32>
    %90 = math.exp %89 : vector<8x8xf32>
    %cst_33 = arith.constant 1.000000e+00 : f32
    %91 = vector.broadcast %cst_33 : f32 to vector<8x8xf32>
    %92 = arith.subf %91, %90 : vector<8x8xf32>
    %93 = arith.mulf %44, %88 : vector<8x8xf32>
    %94 = math.exp %93 : vector<8x8xf32>
    %cst_34 = arith.constant 1.000000e+00 : f32
    %95 = vector.broadcast %cst_34 : f32 to vector<8x8xf32>
    %96 = arith.subf %95, %92 : vector<8x8xf32>
    %97 = arith.subf %96, %94 : vector<8x8xf32>
    %98 = arith.cmpf ogt, %92, %94 : vector<8x8xf32>
    %cst_35 = arith.constant 0.000000e+00 : f32
    %cst_36 = arith.constant 1.000000e+00 : f32
    %99 = vector.broadcast %cst_35 : f32 to vector<8x8xf32>
    %100 = vector.broadcast %cst_36 : f32 to vector<8x8xf32>
    %101 = arith.select %98, %99, %100 : vector<8x8xi1>, vector<8x8xf32>
    %cst_37 = arith.constant 1.000000e+00 : f32
    %102 = vector.broadcast %cst_37 : f32 to vector<8x8xf32>
    %103 = arith.divf %102, %31 : vector<8x8xf32>
    %cst_38 = arith.constant 1.000000e+00 : f32
    %104 = vector.broadcast %cst_38 : f32 to vector<8x8xf32>
    %105 = arith.addf %104, %103 : vector<8x8xf32>
    %cst_39 = arith.constant 1.000000e+00 : f32
    %106 = vector.broadcast %cst_39 : f32 to vector<8x8xf32>
    %107 = arith.subf %105, %106 : vector<8x8xf32>
    %cst_40 = arith.constant 7.500000e+00 : f32
    %108 = vector.broadcast %cst_40 : f32 to vector<8x8xf32>
    %109 = arith.addf %107, %108 : vector<8x8xf32>
    %cst_41 = arith.constant 1.000000e+00 : f32
    %110 = vector.broadcast %cst_41 : f32 to vector<8x8xf32>
    %111 = arith.mulf %107, %110 : vector<8x8xf32>
    %cst_42 = arith.constant 60.4583321 : f32
    %112 = vector.broadcast %cst_42 : f32 to vector<8x8xf32>
    %113 = arith.addf %111, %112 : vector<8x8xf32>
    %114 = arith.mulf %113, %107 : vector<8x8xf32>
    %cst_43 = arith.constant 1599.04248 : f32
    %115 = vector.broadcast %cst_43 : f32 to vector<8x8xf32>
    %116 = arith.addf %114, %115 : vector<8x8xf32>
    %117 = arith.mulf %116, %107 : vector<8x8xf32>
    %cst_44 = arith.constant 24165.5098 : f32
    %118 = vector.broadcast %cst_44 : f32 to vector<8x8xf32>
    %119 = arith.addf %117, %118 : vector<8x8xf32>
    %120 = arith.mulf %119, %107 : vector<8x8xf32>
    %cst_45 = arith.constant 228235.219 : f32
    %121 = vector.broadcast %cst_45 : f32 to vector<8x8xf32>
    %122 = arith.addf %120, %121 : vector<8x8xf32>
    %123 = arith.mulf %122, %107 : vector<8x8xf32>
    %cst_46 = arith.constant 1379496.25 : f32
    %124 = vector.broadcast %cst_46 : f32 to vector<8x8xf32>
    %125 = arith.addf %123, %124 : vector<8x8xf32>
    %126 = arith.mulf %125, %107 : vector<8x8xf32>
    %cst_47 = arith.constant 0x4A9F05EA : f32
    %127 = vector.broadcast %cst_47 : f32 to vector<8x8xf32>
    %128 = arith.addf %126, %127 : vector<8x8xf32>
    %129 = arith.mulf %128, %107 : vector<8x8xf32>
    %cst_48 = arith.constant 0x4B2B9D51 : f32
    %130 = vector.broadcast %cst_48 : f32 to vector<8x8xf32>
    %131 = arith.addf %129, %130 : vector<8x8xf32>
    %132 = arith.mulf %131, %107 : vector<8x8xf32>
    %cst_49 = arith.constant 0x4B220ADA : f32
    %133 = vector.broadcast %cst_49 : f32 to vector<8x8xf32>
    %134 = arith.addf %132, %133 : vector<8x8xf32>
    %cst_50 = arith.constant 1.000000e+00 : f32
    %135 = vector.broadcast %cst_50 : f32 to vector<8x8xf32>
    %136 = arith.mulf %107, %135 : vector<8x8xf32>
    %cst_51 = arith.constant 3.600000e+01 : f32
    %137 = vector.broadcast %cst_51 : f32 to vector<8x8xf32>
    %138 = arith.addf %136, %137 : vector<8x8xf32>
    %139 = arith.mulf %138, %107 : vector<8x8xf32>
    %cst_52 = arith.constant 5.460000e+02 : f32
    %140 = vector.broadcast %cst_52 : f32 to vector<8x8xf32>
    %141 = arith.addf %139, %140 : vector<8x8xf32>
    %142 = arith.mulf %141, %107 : vector<8x8xf32>
    %cst_53 = arith.constant 4.536000e+03 : f32
    %143 = vector.broadcast %cst_53 : f32 to vector<8x8xf32>
    %144 = arith.addf %142, %143 : vector<8x8xf32>
    %145 = arith.mulf %144, %107 : vector<8x8xf32>
    %cst_54 = arith.constant 2.244900e+04 : f32
    %146 = vector.broadcast %cst_54 : f32 to vector<8x8xf32>
    %147 = arith.addf %145, %146 : vector<8x8xf32>
    %148 = arith.mulf %147, %107 : vector<8x8xf32>
    %cst_55 = arith.constant 6.728400e+04 : f32
    %149 = vector.broadcast %cst_55 : f32 to vector<8x8xf32>
    %150 = arith.addf %148, %149 : vector<8x8xf32>
    %151 = arith.mulf %150, %107 : vector<8x8xf32>
    %cst_56 = arith.constant 1.181240e+05 : f32
    %152 = vector.broadcast %cst_56 : f32 to vector<8x8xf32>
    %153 = arith.addf %151, %152 : vector<8x8xf32>
    %154 = arith.mulf %153, %107 : vector<8x8xf32>
    %cst_57 = arith.constant 1.095840e+05 : f32
    %155 = vector.broadcast %cst_57 : f32 to vector<8x8xf32>
    %156 = arith.addf %154, %155 : vector<8x8xf32>
    %157 = arith.mulf %156, %107 : vector<8x8xf32>
    %cst_58 = arith.constant 4.032000e+04 : f32
    %158 = vector.broadcast %cst_58 : f32 to vector<8x8xf32>
    %159 = arith.addf %157, %158 : vector<8x8xf32>
    %160 = arith.divf %134, %159 : vector<8x8xf32>
    %cst_59 = arith.constant 5.000000e-01 : f32
    %161 = vector.broadcast %cst_59 : f32 to vector<8x8xf32>
    %162 = arith.addf %107, %161 : vector<8x8xf32>
    %163 = math.log %109 : vector<8x8xf32>
    %164 = arith.mulf %162, %163 : vector<8x8xf32>
    %cst_60 = arith.constant 0.918938517 : f32
    %165 = vector.broadcast %cst_60 : f32 to vector<8x8xf32>
    %166 = arith.addf %165, %164 : vector<8x8xf32>
    %167 = arith.subf %166, %109 : vector<8x8xf32>
    %168 = math.log %160 : vector<8x8xf32>
    %169 = arith.addf %167, %168 : vector<8x8xf32>
    %cst_61 = arith.constant 1.000000e+00 : f32
    %170 = vector.broadcast %cst_61 : f32 to vector<8x8xf32>
    %171 = arith.addf %170, %44 : vector<8x8xf32>
    %cst_62 = arith.constant 1.000000e+00 : f32
    %172 = vector.broadcast %cst_62 : f32 to vector<8x8xf32>
    %173 = arith.subf %171, %172 : vector<8x8xf32>
    %cst_63 = arith.constant 7.500000e+00 : f32
    %174 = vector.broadcast %cst_63 : f32 to vector<8x8xf32>
    %175 = arith.addf %173, %174 : vector<8x8xf32>
    %cst_64 = arith.constant 1.000000e+00 : f32
    %176 = vector.broadcast %cst_64 : f32 to vector<8x8xf32>
    %177 = arith.mulf %173, %176 : vector<8x8xf32>
    %cst_65 = arith.constant 60.4583321 : f32
    %178 = vector.broadcast %cst_65 : f32 to vector<8x8xf32>
    %179 = arith.addf %177, %178 : vector<8x8xf32>
    %180 = arith.mulf %179, %173 : vector<8x8xf32>
    %cst_66 = arith.constant 1599.04248 : f32
    %181 = vector.broadcast %cst_66 : f32 to vector<8x8xf32>
    %182 = arith.addf %180, %181 : vector<8x8xf32>
    %183 = arith.mulf %182, %173 : vector<8x8xf32>
    %cst_67 = arith.constant 24165.5098 : f32
    %184 = vector.broadcast %cst_67 : f32 to vector<8x8xf32>
    %185 = arith.addf %183, %184 : vector<8x8xf32>
    %186 = arith.mulf %185, %173 : vector<8x8xf32>
    %cst_68 = arith.constant 228235.219 : f32
    %187 = vector.broadcast %cst_68 : f32 to vector<8x8xf32>
    %188 = arith.addf %186, %187 : vector<8x8xf32>
    %189 = arith.mulf %188, %173 : vector<8x8xf32>
    %cst_69 = arith.constant 1379496.25 : f32
    %190 = vector.broadcast %cst_69 : f32 to vector<8x8xf32>
    %191 = arith.addf %189, %190 : vector<8x8xf32>
    %192 = arith.mulf %191, %173 : vector<8x8xf32>
    %cst_70 = arith.constant 0x4A9F05EA : f32
    %193 = vector.broadcast %cst_70 : f32 to vector<8x8xf32>
    %194 = arith.addf %192, %193 : vector<8x8xf32>
    %195 = arith.mulf %194, %173 : vector<8x8xf32>
    %cst_71 = arith.constant 0x4B2B9D51 : f32
    %196 = vector.broadcast %cst_71 : f32 to vector<8x8xf32>
    %197 = arith.addf %195, %196 : vector<8x8xf32>
    %198 = arith.mulf %197, %173 : vector<8x8xf32>
    %cst_72 = arith.constant 0x4B220ADA : f32
    %199 = vector.broadcast %cst_72 : f32 to vector<8x8xf32>
    %200 = arith.addf %198, %199 : vector<8x8xf32>
    %cst_73 = arith.constant 1.000000e+00 : f32
    %201 = vector.broadcast %cst_73 : f32 to vector<8x8xf32>
    %202 = arith.mulf %173, %201 : vector<8x8xf32>
    %cst_74 = arith.constant 3.600000e+01 : f32
    %203 = vector.broadcast %cst_74 : f32 to vector<8x8xf32>
    %204 = arith.addf %202, %203 : vector<8x8xf32>
    %205 = arith.mulf %204, %173 : vector<8x8xf32>
    %cst_75 = arith.constant 5.460000e+02 : f32
    %206 = vector.broadcast %cst_75 : f32 to vector<8x8xf32>
    %207 = arith.addf %205, %206 : vector<8x8xf32>
    %208 = arith.mulf %207, %173 : vector<8x8xf32>
    %cst_76 = arith.constant 4.536000e+03 : f32
    %209 = vector.broadcast %cst_76 : f32 to vector<8x8xf32>
    %210 = arith.addf %208, %209 : vector<8x8xf32>
    %211 = arith.mulf %210, %173 : vector<8x8xf32>
    %cst_77 = arith.constant 2.244900e+04 : f32
    %212 = vector.broadcast %cst_77 : f32 to vector<8x8xf32>
    %213 = arith.addf %211, %212 : vector<8x8xf32>
    %214 = arith.mulf %213, %173 : vector<8x8xf32>
    %cst_78 = arith.constant 6.728400e+04 : f32
    %215 = vector.broadcast %cst_78 : f32 to vector<8x8xf32>
    %216 = arith.addf %214, %215 : vector<8x8xf32>
    %217 = arith.mulf %216, %173 : vector<8x8xf32>
    %cst_79 = arith.constant 1.181240e+05 : f32
    %218 = vector.broadcast %cst_79 : f32 to vector<8x8xf32>
    %219 = arith.addf %217, %218 : vector<8x8xf32>
    %220 = arith.mulf %219, %173 : vector<8x8xf32>
    %cst_80 = arith.constant 1.095840e+05 : f32
    %221 = vector.broadcast %cst_80 : f32 to vector<8x8xf32>
    %222 = arith.addf %220, %221 : vector<8x8xf32>
    %223 = arith.mulf %222, %173 : vector<8x8xf32>
    %cst_81 = arith.constant 4.032000e+04 : f32
    %224 = vector.broadcast %cst_81 : f32 to vector<8x8xf32>
    %225 = arith.addf %223, %224 : vector<8x8xf32>
    %226 = arith.divf %200, %225 : vector<8x8xf32>
    %cst_82 = arith.constant 5.000000e-01 : f32
    %227 = vector.broadcast %cst_82 : f32 to vector<8x8xf32>
    %228 = arith.addf %173, %227 : vector<8x8xf32>
    %229 = math.log %175 : vector<8x8xf32>
    %230 = arith.mulf %228, %229 : vector<8x8xf32>
    %cst_83 = arith.constant 0.918938517 : f32
    %231 = vector.broadcast %cst_83 : f32 to vector<8x8xf32>
    %232 = arith.addf %231, %230 : vector<8x8xf32>
    %233 = arith.subf %232, %175 : vector<8x8xf32>
    %234 = math.log %226 : vector<8x8xf32>
    %235 = arith.addf %233, %234 : vector<8x8xf32>
    %236 = arith.addf %169, %235 : vector<8x8xf32>
    %237 = arith.addf %105, %44 : vector<8x8xf32>
    %cst_84 = arith.constant 1.000000e+00 : f32
    %238 = vector.broadcast %cst_84 : f32 to vector<8x8xf32>
    %239 = arith.subf %237, %238 : vector<8x8xf32>
    %cst_85 = arith.constant 7.500000e+00 : f32
    %240 = vector.broadcast %cst_85 : f32 to vector<8x8xf32>
    %241 = arith.addf %239, %240 : vector<8x8xf32>
    %cst_86 = arith.constant 1.000000e+00 : f32
    %242 = vector.broadcast %cst_86 : f32 to vector<8x8xf32>
    %243 = arith.mulf %239, %242 : vector<8x8xf32>
    %cst_87 = arith.constant 60.4583321 : f32
    %244 = vector.broadcast %cst_87 : f32 to vector<8x8xf32>
    %245 = arith.addf %243, %244 : vector<8x8xf32>
    %246 = arith.mulf %245, %239 : vector<8x8xf32>
    %cst_88 = arith.constant 1599.04248 : f32
    %247 = vector.broadcast %cst_88 : f32 to vector<8x8xf32>
    %248 = arith.addf %246, %247 : vector<8x8xf32>
    %249 = arith.mulf %248, %239 : vector<8x8xf32>
    %cst_89 = arith.constant 24165.5098 : f32
    %250 = vector.broadcast %cst_89 : f32 to vector<8x8xf32>
    %251 = arith.addf %249, %250 : vector<8x8xf32>
    %252 = arith.mulf %251, %239 : vector<8x8xf32>
    %cst_90 = arith.constant 228235.219 : f32
    %253 = vector.broadcast %cst_90 : f32 to vector<8x8xf32>
    %254 = arith.addf %252, %253 : vector<8x8xf32>
    %255 = arith.mulf %254, %239 : vector<8x8xf32>
    %cst_91 = arith.constant 1379496.25 : f32
    %256 = vector.broadcast %cst_91 : f32 to vector<8x8xf32>
    %257 = arith.addf %255, %256 : vector<8x8xf32>
    %258 = arith.mulf %257, %239 : vector<8x8xf32>
    %cst_92 = arith.constant 0x4A9F05EA : f32
    %259 = vector.broadcast %cst_92 : f32 to vector<8x8xf32>
    %260 = arith.addf %258, %259 : vector<8x8xf32>
    %261 = arith.mulf %260, %239 : vector<8x8xf32>
    %cst_93 = arith.constant 0x4B2B9D51 : f32
    %262 = vector.broadcast %cst_93 : f32 to vector<8x8xf32>
    %263 = arith.addf %261, %262 : vector<8x8xf32>
    %264 = arith.mulf %263, %239 : vector<8x8xf32>
    %cst_94 = arith.constant 0x4B220ADA : f32
    %265 = vector.broadcast %cst_94 : f32 to vector<8x8xf32>
    %266 = arith.addf %264, %265 : vector<8x8xf32>
    %cst_95 = arith.constant 1.000000e+00 : f32
    %267 = vector.broadcast %cst_95 : f32 to vector<8x8xf32>
    %268 = arith.mulf %239, %267 : vector<8x8xf32>
    %cst_96 = arith.constant 3.600000e+01 : f32
    %269 = vector.broadcast %cst_96 : f32 to vector<8x8xf32>
    %270 = arith.addf %268, %269 : vector<8x8xf32>
    %271 = arith.mulf %270, %239 : vector<8x8xf32>
    %cst_97 = arith.constant 5.460000e+02 : f32
    %272 = vector.broadcast %cst_97 : f32 to vector<8x8xf32>
    %273 = arith.addf %271, %272 : vector<8x8xf32>
    %274 = arith.mulf %273, %239 : vector<8x8xf32>
    %cst_98 = arith.constant 4.536000e+03 : f32
    %275 = vector.broadcast %cst_98 : f32 to vector<8x8xf32>
    %276 = arith.addf %274, %275 : vector<8x8xf32>
    %277 = arith.mulf %276, %239 : vector<8x8xf32>
    %cst_99 = arith.constant 2.244900e+04 : f32
    %278 = vector.broadcast %cst_99 : f32 to vector<8x8xf32>
    %279 = arith.addf %277, %278 : vector<8x8xf32>
    %280 = arith.mulf %279, %239 : vector<8x8xf32>
    %cst_100 = arith.constant 6.728400e+04 : f32
    %281 = vector.broadcast %cst_100 : f32 to vector<8x8xf32>
    %282 = arith.addf %280, %281 : vector<8x8xf32>
    %283 = arith.mulf %282, %239 : vector<8x8xf32>
    %cst_101 = arith.constant 1.181240e+05 : f32
    %284 = vector.broadcast %cst_101 : f32 to vector<8x8xf32>
    %285 = arith.addf %283, %284 : vector<8x8xf32>
    %286 = arith.mulf %285, %239 : vector<8x8xf32>
    %cst_102 = arith.constant 1.095840e+05 : f32
    %287 = vector.broadcast %cst_102 : f32 to vector<8x8xf32>
    %288 = arith.addf %286, %287 : vector<8x8xf32>
    %289 = arith.mulf %288, %239 : vector<8x8xf32>
    %cst_103 = arith.constant 4.032000e+04 : f32
    %290 = vector.broadcast %cst_103 : f32 to vector<8x8xf32>
    %291 = arith.addf %289, %290 : vector<8x8xf32>
    %292 = arith.divf %266, %291 : vector<8x8xf32>
    %cst_104 = arith.constant 5.000000e-01 : f32
    %293 = vector.broadcast %cst_104 : f32 to vector<8x8xf32>
    %294 = arith.addf %239, %293 : vector<8x8xf32>
    %295 = math.log %241 : vector<8x8xf32>
    %296 = arith.mulf %294, %295 : vector<8x8xf32>
    %cst_105 = arith.constant 0.918938517 : f32
    %297 = vector.broadcast %cst_105 : f32 to vector<8x8xf32>
    %298 = arith.addf %297, %296 : vector<8x8xf32>
    %299 = arith.subf %298, %241 : vector<8x8xf32>
    %300 = math.log %292 : vector<8x8xf32>
    %301 = arith.addf %299, %300 : vector<8x8xf32>
    %302 = arith.subf %236, %301 : vector<8x8xf32>
    %303 = math.exp %302 : vector<8x8xf32>
    %cst_106 = arith.constant 1.200000e+00 : f32
    %304 = vector.broadcast %cst_106 : f32 to vector<8x8xf32>
    %305 = arith.mulf %304, %303 : vector<8x8xf32>
    %cst_107 = arith.constant -1.000000e-01 : f32
    %306 = vector.broadcast %cst_107 : f32 to vector<8x8xf32>
    %307 = arith.addf %306, %305 : vector<8x8xf32>
    %cst_108 = arith.constant 0.000000e+00 : f32
    %cst_109 = arith.constant 1.000000e+00 : f32
    %308 = vector.broadcast %cst_108 : f32 to vector<8x8xf32>
    %309 = arith.maximumf %308, %307 : vector<8x8xf32>
    %310 = vector.broadcast %cst_109 : f32 to vector<8x8xf32>
    %311 = arith.minimumf %310, %309 : vector<8x8xf32>
    %cst_110 = arith.constant 5.000000e-01 : f32
    %312 = vector.broadcast %cst_110 : f32 to vector<8x8xf32>
    %313 = arith.cmpf olt, %97, %312 : vector<8x8xf32>
    %314 = arith.select %313, %101, %311 : vector<8x8xi1>, vector<8x8xf32>
    %c0_111 = arith.constant 0 : index
    %c0_112 = arith.constant 0 : index
    %c0_113 = arith.constant 0 : index
    %315 = vector.load %arg6[%c0_111, %c0_112, %c0_113] : memref<1x8x1xf32, #tpu.memory_space<vmem>>, vector<1x8x1xf32>
    %316 = vector.shape_cast %315 : vector<1x8x1xf32> to vector<8x1xf32>
    %317 = vector.broadcast %316 : vector<8x1xf32> to vector<8x8xf32>
    %318 = arith.mulf %314, %317 : vector<8x8xf32>
    %c0_114 = arith.constant 0 : index
    %c0_115 = arith.constant 0 : index
    %c0_116 = arith.constant 0 : index
    %319 = vector.load %arg7[%c0_114, %c0_115, %c0_116] : memref<1x8x8xf32, #tpu.memory_space<vmem>>, vector<1x8x8xf32>
    %320 = vector.shape_cast %319 : vector<1x8x8xf32> to vector<8x8xf32>
    %321 = vector.shape_cast %318 : vector<8x8xf32> to vector<1x8x8xf32>
    tpu.vector_store %arg7[%c0_114, %c0_115, %c0_116], %321 {strides = array<i32>} : memref<1x8x8xf32, #tpu.memory_space<vmem>>, vector<1x8x8xf32>,
    return
  }
  func.func @transform_0(%arg0: i32, %arg1: i32) -> i32 {
    %c0_i32 = arith.constant 0 : i32
    %c0_i32_0 = arith.constant 0 : i32
    return %c0_i32 : i32
  }
  func.func @transform_1(%arg0: i32, %arg1: i32) -> (i32, i32, i32) {
    %c0_i32 = arith.constant 0 : i32
    %c0_i32_0 = arith.constant 0 : i32
    return %arg0, %arg1, %c0_i32 : i32, i32, i32
  }
  func.func @transform_2(%arg0: i32, %arg1: i32) -> (i32, i32, i32) {
    %c0_i32 = arith.constant 0 : i32
    %c0_i32_0 = arith.constant 0 : i32
    return %arg0, %arg1, %c0_i32 : i32, i32, i32
  }
  func.func @transform_3(%arg0: i32, %arg1: i32) -> (i32, i32) {
    %c0_i32 = arith.constant 0 : i32
    %c0_i32_0 = arith.constant 0 : i32
    return %arg1, %c0_i32 : i32, i32
  }
  func.func @transform_4(%arg0: i32, %arg1: i32) -> (i32, i32, i32) {
    %c0_i32 = arith.constant 0 : i32
    %c0_i32_0 = arith.constant 0 : i32
    return %arg0, %arg1, %c0_i32 : i32, i32, i32
  }
  func.func @transform_5(%arg0: i32, %arg1: i32) -> (i32, i32, i32) {
    %c0_i32 = arith.constant 0 : i32
    %c0_i32_0 = arith.constant 0 : i32
    return %arg0, %arg1, %c0_i32 : i32, i32, i32
  }
}

</mosaic_0001>

<llo_original>
// kernel: _lambda_.3
$region0: #{_lambda_.3}
  #allocation0 [shape = 'u32[]', space=smem, size = 0x4, offset = 0x4, fixed_abs, tag = 'smem constant byte address 0x4 - core index']
  #allocation1 [shape = 'u32[144,128]{1,0:T(1,128)}', space=vmem, size = 0x12000, scoped, tag = 'internal scratch']
  %s0 = inlined_call_operand.vmem [shape: f32[4], index: 0, kind: input, shape index: {}]
  %s1 = inlined_call_operand.vmem [shape: f32[2,8,8], index: 1, kind: input, shape index: {}]
  %s2 = inlined_call_operand.vmem [shape: f32[2,8,8], index: 2, kind: input, shape index: {}]
  %s3 = inlined_call_operand.vmem [shape: f32[8,8], index: 3, kind: input, shape index: {}]
  %s4 = inlined_call_operand.vmem [shape: f32[2,8,1], index: 4, kind: input, shape index: {}]
  %s5 = inlined_call_operand.hbm [shape: f32[2,8,8], index: 5, kind: output, shape index: {}]
  %s6 = sld [smem:[#allocation0]]
  $region57: #{_lambda_.3} parent=0
    _
  %s8 = ssub.s32 1, %s6
  %s9 = scalar_select 0, %s8, %s6
  $region1: #{_lambda_.3} parent=0
    #allocation2 [shape = 'u8[512]{0}', space=smem, size = 0x200, scoped, tag = 'input window, operand 0, single buffered']
    #allocation3 [shape = 's32[2]{0}', space=sflag, size = 0x8, scoped, tag = 'scoped memory for _lambda_.3']
    #allocation4 [shape = 's32[2]{0}', space=sflag, size = 0x8, scoped, tag = 'scoped memory for _lambda_.3']
    #allocation5 [shape = 'u8[8192]{0}', space=vmem, size = 0x2000, scoped, tag = 'output window, operand 0']
    %10 = vsyncpa [#allocation4], 0
    %11 = vsyncpa [#allocation3], 0
    %s12 = scalar_lea.sflag [#allocation3], 1
    %13 = vsyncpa %s12, 0
    loop: start=0, step=1, limit=4
    $region2: #{_lambda_.3} parent=1 // loop_pre_header
      _
    $region3: #{_lambda_.3} parent=1 // loop_header
      %s15 = sphi 0, %s19
      %p16 = scmp.ge.s32.totalorder %s15, 4
      %s22 = sphi 0, %s34
      %s23 = sphi 0, %s30
      %s24 = sphi 0, %s22
      %s25 = sphi 0, %s23
      %s26 = sphi 0, %s24
      %s27 = sphi 0, %s25
      %s35 = sphi 0, %s35
      %s37 = sphi 0, %s35
      %s38 = sphi 0, %s37
      %s52 = sphi 0, %s38
      %s60 = sphi 0, %s62
      %s63 = sphi 0, %s60
      %s64 = sphi 0, %s63
      %s80 = sphi 0, %s64
      %s88 = sphi 0, %s90
      %s91 = sphi 0, %s88
      %s92 = sphi 0, %s91
      %s108 = sphi 0, %s92
      %s114 = sphi 0, %s116
      %s117 = sphi 0, %s114
      %s118 = sphi 0, %s117
      %s134 = sphi 0, %s118
      %s142 = sphi 0, %s144
      %s145 = sphi 0, %s142
      %s146 = sphi 0, %s145
      %s162 = sphi 0, %s146
      %s170 = sphi 0, %s172
      %s173 = sphi 0, %s170
      %s174 = sphi 0, %s173
      %s190 = sphi 0, %s174
    $region4: #{_lambda_.3} parent=1 // loop_header_branch
      %18 = sbr.rel (%p16) target = $region8
    $region5: #{_lambda_.3} parent=1 // loop_body
      %s20 = ssub.s32 %s15, 1
      %s21 = ssub.s32 %s15, 2
      %s28 = sadd.s32 1, %s23
      %p29 = scmp.ge.s32.totalorder %s28, 1
      %s30 = scalar_select %p29, 0, %s28
      %s31 = sadd.s32 1, %s22
      %s32 = scalar_select %p29, %s31, %s22
      %p33 = scmp.ge.s32.totalorder %s32, 2
      %s34 = scalar_select %p33, 0, %s32
      %s36 = sadd.s32 %s35, 1
      %p39 = scmp.eq.s32.totalorder %s15, 1
      %p40 = scmp.ne.s32.totalorder %s35, %s37
      %p41 = scmp.eq.s32.totalorder %s15, 0
      %p42 = por %p40, %p41
      %p43 = scmp.ne.s32.totalorder %s35, %s37
      %p44 = scmp.eq.s32.totalorder %s20, 1
      %p45 = por %p43, %p44
      %p46 = scmp.ne.s32.totalorder %s37, %s38
      %p47 = scmp.eq.s32.totalorder %s20, 0
      %p48 = por %p46, %p47
      %p49 = scmp.ne.s32.totalorder %s37, %s38
      %p50 = scmp.eq.s32.totalorder %s21, 1
      %p51 = por %p49, %p50
      %p53 = scmp.ne.s32.totalorder %s38, %s52
      %p54 = scmp.eq.s32.totalorder %s21, 0
      %p55 = por %p53, %p54
      %s56 = ssub.s32 %s22, %s34
      %s57 = ssub.s32 %s23, %s30
      %s58 = sor.u32 %s56, %s57
      %p59 = scmp.eq.s32.totalorder %s58, 0
      %s61 = sadd.s32 %s60, 1
      %s62 = scalar_select %p59, %s60, %s61
      %p65 = pneg %p59
      %p66 = scmp.eq.s32.totalorder %s15, 1
      %p67 = por %p65, %p66
      %p68 = scmp.ne.s32.totalorder %s60, %s63
      %p69 = scmp.eq.s32.totalorder %s15, 0
      %p70 = por %p68, %p69
      %p71 = scmp.ne.s32.totalorder %s60, %s63
      %p72 = scmp.eq.s32.totalorder %s20, 1
      %p73 = por %p71, %p72
      %p74 = scmp.ne.s32.totalorder %s63, %s64
      %p75 = scmp.eq.s32.totalorder %s20, 0
      %p76 = por %p74, %p75
      %p77 = scmp.ne.s32.totalorder %s63, %s64
      %p78 = scmp.eq.s32.totalorder %s21, 1
      %p79 = por %p77, %p78
      %p81 = scmp.ne.s32.totalorder %s64, %s80
      %p82 = scmp.eq.s32.totalorder %s21, 0
      %p83 = por %p81, %p82
      %s84 = ssub.s32 %s22, %s34
      %s85 = ssub.s32 %s23, %s30
      %s86 = sor.u32 %s84, %s85
      %p87 = scmp.eq.s32.totalorder %s86, 0
      %s89 = sadd.s32 %s88, 1
      %s90 = scalar_select %p87, %s88, %s89
      %p93 = pneg %p87
      %p94 = scmp.eq.s32.totalorder %s15, 1
      %p95 = por %p93, %p94
      %p96 = scmp.ne.s32.totalorder %s88, %s91
      %p97 = scmp.eq.s32.totalorder %s15, 0
      %p98 = por %p96, %p97
      %p99 = scmp.ne.s32.totalorder %s88, %s91
      %p100 = scmp.eq.s32.totalorder %s20, 1
      %p101 = por %p99, %p100
      %p102 = scmp.ne.s32.totalorder %s91, %s92
      %p103 = scmp.eq.s32.totalorder %s20, 0
      %p104 = por %p102, %p103
      %p105 = scmp.ne.s32.totalorder %s91, %s92
      %p106 = scmp.eq.s32.totalorder %s21, 1
      %p107 = por %p105, %p106
      %p109 = scmp.ne.s32.totalorder %s92, %s108
      %p110 = scmp.eq.s32.totalorder %s21, 0
      %p111 = por %p109, %p110
      %s112 = ssub.s32 %s23, %s30
      %p113 = scmp.eq.s32.totalorder %s112, 0
      %s115 = sadd.s32 %s114, 1
      %s116 = scalar_select %p113, %s114, %s115
      %p119 = pneg %p113
      %p120 = scmp.eq.s32.totalorder %s15, 1
      %p121 = por %p119, %p120
      %p122 = scmp.ne.s32.totalorder %s114, %s117
      %p123 = scmp.eq.s32.totalorder %s15, 0
      %p124 = por %p122, %p123
      %p125 = scmp.ne.s32.totalorder %s114, %s117
      %p126 = scmp.eq.s32.totalorder %s20, 1
      %p127 = por %p125, %p126
      %p128 = scmp.ne.s32.totalorder %s117, %s118
      %p129 = scmp.eq.s32.totalorder %s20, 0
      %p130 = por %p128, %p129
      %p131 = scmp.ne.s32.totalorder %s117, %s118
      %p132 = scmp.eq.s32.totalorder %s21, 1
      %p133 = por %p131, %p132
      %p135 = scmp.ne.s32.totalorder %s118, %s134
      %p136 = scmp.eq.s32.totalorder %s21, 0
      %p137 = por %p135, %p136
      %s138 = ssub.s32 %s22, %s34
      %s139 = ssub.s32 %s23, %s30
      %s140 = sor.u32 %s138, %s139
      %p141 = scmp.eq.s32.totalorder %s140, 0
      %s143 = sadd.s32 %s142, 1
      %s144 = scalar_select %p141, %s142, %s143
      %p147 = pneg %p141
      %p148 = scmp.eq.s32.totalorder %s15, 1
      %p149 = por %p147, %p148
      %p150 = scmp.ne.s32.totalorder %s142, %s145
      %p151 = scmp.eq.s32.totalorder %s15, 0
      %p152 = por %p150, %p151
      %p153 = scmp.ne.s32.totalorder %s142, %s145
      %p154 = scmp.eq.s32.totalorder %s20, 1
      %p155 = por %p153, %p154
      %p156 = scmp.ne.s32.totalorder %s145, %s146
      %p157 = scmp.eq.s32.totalorder %s20, 0
      %p158 = por %p156, %p157
      %p159 = scmp.ne.s32.totalorder %s145, %s146
      %p160 = scmp.eq.s32.totalorder %s21, 1
      %p161 = por %p159, %p160
      %p163 = scmp.ne.s32.totalorder %s146, %s162
      %p164 = scmp.eq.s32.totalorder %s21, 0
      %p165 = por %p163, %p164
      %s166 = ssub.s32 %s22, %s34
      %s167 = ssub.s32 %s23, %s30
      %s168 = sor.u32 %s166, %s167
      %p169 = scmp.eq.s32.totalorder %s168, 0
      %s171 = sadd.s32 %s170, 1
      %s172 = scalar_select %p169, %s170, %s171
      %p175 = pneg %p169
      %p176 = scmp.eq.s32.totalorder %s15, 1
      %p177 = por %p175, %p176
      %p178 = scmp.ne.s32.totalorder %s170, %s173
      %p179 = scmp.eq.s32.totalorder %s15, 0
      %p180 = por %p178, %p179
      %p181 = scmp.ne.s32.totalorder %s170, %s173
      %p182 = scmp.eq.s32.totalorder %s20, 1
      %p183 = por %p181, %p182
      %p184 = scmp.ne.s32.totalorder %s173, %s174
      %p185 = scmp.eq.s32.totalorder %s20, 0
      %p186 = por %p184, %p185
      %p187 = scmp.ne.s32.totalorder %s173, %s174
      %p188 = scmp.eq.s32.totalorder %s21, 1
      %p189 = por %p187, %p188
      %p191 = scmp.ne.s32.totalorder %s174, %s190
      %p192 = scmp.eq.s32.totalorder %s21, 0
      %p193 = por %p191, %p192
      %p194 = scmp.le.s32.totalorder 1, %s15
      %p195 = scmp.lt.s32.totalorder %s15, 3
      %p196 = pnand %p194, %p195
      %p197 = pneg %p196
      // Predicated region
      $region9: #{_lambda_.3} parent=5 // pred_check
        _
      $region10: #{_lambda_.3} parent=5 // pred_check_branch
        %199 = sbr.rel (%p196) target = $region12
      $region11: #{_lambda_.3} parent=5 // pred_region
        %s200 = ssub.s32 %s15, 1
        // Predicated region
        $region13: #{_lambda_.3} parent=11 // pred_check
          %p201 = pneg %p48
        $region14: #{_lambda_.3} parent=11 // pred_check_branch
          %203 = sbr.rel (%p201) target = $region16
        $region15: #{_lambda_.3} parent=11 // pred_region
          %s205 = ssub.s32 16, 16
          %206 = vsyncadd [#allocation4], %s205
          %s208 = sshll.u32 %s0, 4
          %s209 = int_to_ptr.vmem [resolvable:$true] %s208
          %211 = dma.vmem_to_smem %s209, 16, [#allocation2], [#allocation4]
        $region16: #{_lambda_.3} parent=11 // pred_fallthru
          _
        // Predicated region
        $region17: #{_lambda_.3} parent=11 // pred_check
          %p212 = pneg %p130
        $region18: #{_lambda_.3} parent=11 // pred_check_branch
          %214 = sbr.rel (%p212) target = $region20
        $region19: #{_lambda_.3} parent=11 // pred_region
          %p215 = scmp.lt.s32.totalorder %s25, 0
          %s216 = scalar_select %p215, %s25, 0
          %s217 = smul.addr %s216, 8
          %s218 = scalar_lea.vmem %s3, %s217
        $region20: #{_lambda_.3} parent=11 // pred_fallthru
          _
      $region12: #{_lambda_.3} parent=5 // pred_fallthru
        _
      %p219 = scmp.lt.s32.totalorder %s15, 2
      // Predicated region
      $region21: #{_lambda_.3} parent=5 // pred_check
        %p220 = pneg %p219
      $region22: #{_lambda_.3} parent=5 // pred_check_branch
        %222 = sbr.rel (%p220) target = $region24
      $region23: #{_lambda_.3} parent=5 // pred_region
        // Predicated region
        $region25: #{_lambda_.3} parent=23 // pred_check
          %p223 = pneg %p70
        $region26: #{_lambda_.3} parent=23 // pred_check_branch
          %225 = sbr.rel (%p223) target = $region28
        $region27: #{_lambda_.3} parent=23 // pred_region
          %p226 = scmp.lt.s32.totalorder %s22, 1
          %s227 = scalar_select %p226, %s22, 1
          %p228 = scmp.lt.s32.totalorder %s23, 0
          %s229 = scalar_select %p228, %s23, 0
          %s230 = sadd.s32 %s229, %s227
          %s231 = smul.addr %s230, 8
          %s232 = scalar_lea.vmem %s1, %s231
        $region28: #{_lambda_.3} parent=23 // pred_fallthru
          _
        // Predicated region
        $region29: #{_lambda_.3} parent=23 // pred_check
          %p233 = pneg %p98
        $region30: #{_lambda_.3} parent=23 // pred_check_branch
          %235 = sbr.rel (%p233) target = $region32
        $region31: #{_lambda_.3} parent=23 // pred_region
          %p236 = scmp.lt.s32.totalorder %s22, 1
          %s237 = scalar_select %p236, %s22, 1
          %p238 = scmp.lt.s32.totalorder %s23, 0
          %s239 = scalar_select %p238, %s23, 0
          %s240 = sadd.s32 %s239, %s237
          %s241 = smul.addr %s240, 8
          %s242 = scalar_lea.vmem %s2, %s241
        $region32: #{_lambda_.3} parent=23 // pred_fallthru
          _
        // Predicated region
        $region33: #{_lambda_.3} parent=23 // pred_check
          %p243 = pneg %p152
        $region34: #{_lambda_.3} parent=23 // pred_check_branch
          %245 = sbr.rel (%p243) target = $region36
        $region35: #{_lambda_.3} parent=23 // pred_region
          %p246 = scmp.lt.s32.totalorder %s22, 1
          %s247 = scalar_select %p246, %s22, 1
          %p248 = scmp.lt.s32.totalorder %s23, 0
          %s249 = scalar_select %p248, %s23, 0
          %s250 = sadd.s32 %s249, %s247
          %s251 = smul.addr %s250, 8
          %s252 = scalar_lea.vmem %s4, %s251
        $region36: #{_lambda_.3} parent=23 // pred_fallthru
          _
      $region24: #{_lambda_.3} parent=5 // pred_fallthru
        _
      %p253 = scmp.le.s32.totalorder 1, %s15
      %p254 = scmp.lt.s32.totalorder %s15, 3
      %p255 = pnand %p253, %p254
      %p256 = pneg %p255
      // Predicated region
      $region37: #{_lambda_.3} parent=5 // pred_check
        _
      $region38: #{_lambda_.3} parent=5 // pred_check_branch
        %258 = sbr.rel (%p255) target = $region40
      $region39: #{_lambda_.3} parent=5 // pred_region
        %s259 = ssub.s32 %s15, 1
        // Predicated region
        $region41: #{_lambda_.3} parent=39 // pred_check
          %p260 = pneg %p48
        $region42: #{_lambda_.3} parent=39 // pred_check_branch
          %262 = sbr.rel (%p260) target = $region44
        $region43: #{_lambda_.3} parent=39 // pred_region
          %263 = dma.done [#allocation4], 16
        $region44: #{_lambda_.3} parent=39 // pred_fallthru
          _
        %264 = sfence
        %p265 = pneg %p48
        %p266 = pneg %p45
        %p267 = scmp.lt.s32.totalorder %s24, 1
        %s268 = scalar_select %p267, %s24, 1
        %p269 = scmp.lt.s32.totalorder %s25, 0
        %s270 = scalar_select %p269, %s25, 0
        %s271 = sadd.s32 %s270, %s268
        %s272 = smul.addr %s271, 8
        %s273 = scalar_lea.vmem %s1, %s272
        %p274 = pneg %p76
        %p275 = pneg %p73
        %p276 = scmp.lt.s32.totalorder %s24, 1
        %s277 = scalar_select %p276, %s24, 1
        %p278 = scmp.lt.s32.totalorder %s25, 0
        %s279 = scalar_select %p278, %s25, 0
        %s280 = sadd.s32 %s279, %s277
        %s281 = smul.addr %s280, 8
        %s282 = scalar_lea.vmem %s2, %s281
        %p283 = pneg %p104
        %p284 = pneg %p101
        %p285 = scmp.lt.s32.totalorder %s25, 0
        %s286 = scalar_select %p285, %s25, 0
        %s287 = smul.addr %s286, 8
        %s288 = scalar_lea.vmem %s3, %s287
        %p289 = pneg %p130
        %p290 = pneg %p127
        %p291 = scmp.lt.s32.totalorder %s24, 1
        %s292 = scalar_select %p291, %s24, 1
        %p293 = scmp.lt.s32.totalorder %s25, 0
        %s294 = scalar_select %p293, %s25, 0
        %s295 = sadd.s32 %s294, %s292
        %s296 = smul.addr %s295, 8
        %s297 = scalar_lea.vmem %s4, %s296
        %p298 = pneg %p158
        %p299 = pneg %p155
        %p300 = pneg %p186
        %p301 = pneg %p183
        %s302 = sand.u32 %s173, 1
        %s303 = scalar_lea.sflag [#allocation3], %s302
        %s304 = sand.u32 %s173, 1
        %s305 = smul.addr %s304, 8
        %s306 = scalar_lea.vmem [#allocation5], %s305
        %p307 = scmp.lt.s32.totalorder %s24, 1
        %s308 = scalar_select %p307, %s24, 1
        %p309 = scmp.lt.s32.totalorder %s25, 0
        %s310 = scalar_select %p309, %s25, 0
        %s311 = sadd.s32 %s310, %s308
        %s312 = smul.addr %s311, 8
        %s313 = scalar_lea.vmem %s1, %s312
        %p314 = scmp.lt.s32.totalorder %s24, 1
        %s315 = scalar_select %p314, %s24, 1
        %p316 = scmp.lt.s32.totalorder %s25, 0
        %s317 = scalar_select %p316, %s25, 0
        %s318 = sadd.s32 %s317, %s315
        %s319 = smul.addr %s318, 8
        %s320 = scalar_lea.vmem %s2, %s319
        %p321 = scmp.lt.s32.totalorder %s25, 0
        %s322 = scalar_select %p321, %s25, 0
        %s323 = smul.addr %s322, 8
        %s324 = scalar_lea.vmem %s3, %s323
        %p325 = scmp.lt.s32.totalorder %s24, 1
        %s326 = scalar_select %p325, %s24, 1
        %p327 = scmp.lt.s32.totalorder %s25, 0
        %s328 = scalar_select %p327, %s25, 0
        %s329 = sadd.s32 %s328, %s326
        %s330 = smul.addr %s329, 8
        %s331 = scalar_lea.vmem %s4, %s330
        %v332 = vld [vmem:[%s324] sm:$0xff]
        %v333 = vld [vmem:[%s313] sm:$0xff]
        %s334 = sld [smem:[#allocation2]]
        %v335 = vstv %s334
        %v336 = vsub.f32 %v333, %v335
        %s337 = sld [smem:[#allocation2 + $0x1]]
        %v338 = vstv %s337
        %v339 = vmul.f32 %v336, %v338
        %v340 = vadd.f32 %v339, %v332
        %v341 = vld [vmem:[%s320] sm:$0xff]
        %s342 = sld [smem:[#allocation2 + $0x2]]
        %v343 = vstv %s342
        %v344 = vsub.f32 %v341, %v343
        %s345 = sld [smem:[#allocation2 + $0x3]]
        %v346 = vstv %s345
        %v347 = vmul.f32 %v344, %v346
        %v348 = vadd.f32 %v347, %v332
        %v349 = vmin.f32 %v340, 20.0
        %vm350 = vcmp.gt.f32.partialorder %v340, 20.0
        %v351 = vmul.f32 %v349, 1.442695
        %v352 = vpow.pop %v351
        %v353 = vadd.f32 %v352, 1.0
        %v354 = vlog2.pop %v353
        %v355 = vmul.f32 %v354, 0.6931472
        %v356 = vsel %vm350, %v340, %v355
        %v357 = vmax.f32 %v356, 0.001
        %v358 = vmin.f32 %v357, 100.0
        %v359 = vmin.f32 %v348, 20.0
        %vm360 = vcmp.gt.f32.partialorder %v348, 20.0
        %v361 = vmul.f32 %v359, 1.442695
        %v362 = vpow.pop %v361
        %v363 = vadd.f32 %v362, 1.0
        %v364 = vlog2.pop %v363
        %v365 = vmul.f32 %v364, 0.6931472
        %v366 = vsel %vm360, %v348, %v365
        %v367 = vmax.f32 %v366, 0.001
        %v368 = vmin.f32 %v367, 100.0
        %v369 = vmul.f32 %v358, -2.4849067
        %v370 = vmul.f32 %v369, 0.041666668
        %v371 = vadd.f32 %v370, 0.16666667
        %v372 = vmul.f32 %v369, %v371
        %v373 = vadd.f32 %v372, 0.5
        %v374 = vmul.f32 %v369, %v373
        %v375 = vadd.f32 %v374, 1.0
        %v376 = vmul.f32 %v369, %v375
        %vm377 = vcmp.gt.f32.partialorder %v369, -0.05
        %v378 = vmul.f32 %v369, 1.442695
        %v379 = vpow.pop %v378
        %v380 = vsub.f32 %v379, 1.0
        %v381 = vsel %vm377, %v376, %v380
        %v382 = vsub.f32 0.0, %v381
        %v383 = vlog2.pop %v382
        %v384 = vmul.f32 %v383, 0.6931472
        %v385 = vmul.f32 %v358, -0.087011375
        %v386 = vmul.f32 %v385, 0.041666668
        %v387 = vadd.f32 %v386, 0.16666667
        %v388 = vmul.f32 %v385, %v387
        %v389 = vadd.f32 %v388, 0.5
        %v390 = vmul.f32 %v385, %v389
        %v391 = vadd.f32 %v390, 1.0
        %v392 = vmul.f32 %v385, %v391
        %vm393 = vcmp.gt.f32.partialorder %v385, -0.05
        %v394 = vmul.f32 %v385, 1.442695
        %v395 = vpow.pop %v394
        %v396 = vsub.f32 %v395, 1.0
        %v397 = vsel %vm393, %v392, %v396
        %v398 = vsub.f32 0.0, %v397
        %v399 = vlog2.pop %v398
        %v400 = vmul.f32 %v399, 0.6931472
        %v401 = vmul.f32 %v368, %v384
        %v402 = vmul.f32 %v401, 1.442695
        %v403 = vpow.pop %v402
        %v404 = vsub.f32 1.0, %v403
        %v405 = vmul.f32 %v368, %v400
        %v406 = vmul.f32 %v405, 1.442695
        %v407 = vpow.pop %v406
        %v408 = vsub.f32 1.0, %v404
        %v409 = vsub.f32 %v408, %v407
        %vm410 = vcmp.gt.f32.partialorder %v404, %v407
        %v411 = vsel %vm410, 0.0, 1.0
        %v412 = vrcp.pop %v358
        %v413 = vmul.f32 1.0, %v412
        %v414 = vadd.f32 %v413, 1.0
        %v415 = vsub.f32 %v414, 1.0
        %v416 = vadd.f32 %v415, 7.5
        %v417 = vadd.f32 %v415, 60.458332
        %v418 = vmul.f32 %v417, %v415
        %v419 = vadd.f32 %v418, 1599.0425
        %v420 = vmul.f32 %v419, %v415
        %v421 = vadd.f32 %v420, 24165.51
        %v422 = vmul.f32 %v421, %v415
        %v423 = vadd.f32 %v422, 228235.22
        %v424 = vmul.f32 %v423, %v415
        %v425 = vadd.f32 %v424, 1379496.3
        %v426 = vmul.f32 %v425, %v415
        %v427 = vadd.f32 %v426, 5210869.0
        %v428 = vmul.f32 %v427, %v415
        %v429 = vadd.f32 %v428, 11246929.0
        %v430 = vmul.f32 %v429, %v415
        %v431 = vadd.f32 %v430, 10619610.0
        %v432 = vadd.f32 %v415, 36.0
        %v433 = vmul.f32 %v432, %v415
        %v434 = vadd.f32 %v433, 546.0
        %v435 = vmul.f32 %v434, %v415
        %v436 = vadd.f32 %v435, 4536.0
        %v437 = vmul.f32 %v436, %v415
        %v438 = vadd.f32 %v437, 22449.0
        %v439 = vmul.f32 %v438, %v415
        %v440 = vadd.f32 %v439, 67284.0
        %v441 = vmul.f32 %v440, %v415
        %v442 = vadd.f32 %v441, 118124.0
        %v443 = vmul.f32 %v442, %v415
        %v444 = vadd.f32 %v443, 109584.0
        %v445 = vmul.f32 %v444, %v415
        %v446 = vadd.f32 %v445, 40320.0
        %v447 = vrcp.pop %v446
        %v448 = vmul.f32 %v431, %v447
        %v449 = vadd.f32 %v415, 0.5
        %v450 = vlog2.pop %v416
        %v451 = vmul.f32 %v450, 0.6931472
        %v452 = vmul.f32 %v449, %v451
        %v453 = vadd.f32 %v452, 0.9189385
        %v454 = vsub.f32 %v453, %v416
        %v455 = vlog2.pop %v448
        %v456 = vmul.f32 %v455, 0.6931472
        %v457 = vadd.f32 %v454, %v456
        %v458 = vadd.f32 %v368, 1.0
        %v459 = vsub.f32 %v458, 1.0
        %v460 = vadd.f32 %v459, 7.5
        %v461 = vadd.f32 %v459, 60.458332
        %v462 = vmul.f32 %v461, %v459
        %v463 = vadd.f32 %v462, 1599.0425
        %v464 = vmul.f32 %v463, %v459
        %v465 = vadd.f32 %v464, 24165.51
        %v466 = vmul.f32 %v465, %v459
        %v467 = vadd.f32 %v466, 228235.22
        %v468 = vmul.f32 %v467, %v459
        %v469 = vadd.f32 %v468, 1379496.3
        %v470 = vmul.f32 %v469, %v459
        %v471 = vadd.f32 %v470, 5210869.0
        %v472 = vmul.f32 %v471, %v459
        %v473 = vadd.f32 %v472, 11246929.0
        %v474 = vmul.f32 %v473, %v459
        %v475 = vadd.f32 %v474, 10619610.0
        %v476 = vadd.f32 %v459, 36.0
        %v477 = vmul.f32 %v476, %v459
        %v478 = vadd.f32 %v477, 546.0
        %v479 = vmul.f32 %v478, %v459
        %v480 = vadd.f32 %v479, 4536.0
        %v481 = vmul.f32 %v480, %v459
        %v482 = vadd.f32 %v481, 22449.0
        %v483 = vmul.f32 %v482, %v459
        %v484 = vadd.f32 %v483, 67284.0
        %v485 = vmul.f32 %v484, %v459
        %v486 = vadd.f32 %v485, 118124.0
        %v487 = vmul.f32 %v486, %v459
        %v488 = vadd.f32 %v487, 109584.0
        %v489 = vmul.f32 %v488, %v459
        %v490 = vadd.f32 %v489, 40320.0
        %v491 = vrcp.pop %v490
        %v492 = vmul.f32 %v475, %v491
        %v493 = vadd.f32 %v459, 0.5
        %v494 = vlog2.pop %v460
        %v495 = vmul.f32 %v494, 0.6931472
        %v496 = vmul.f32 %v493, %v495
        %v497 = vadd.f32 %v496, 0.9189385
        %v498 = vsub.f32 %v497, %v460
        %v499 = vlog2.pop %v492
        %v500 = vmul.f32 %v499, 0.6931472
        %v501 = vadd.f32 %v498, %v500
        %v502 = vadd.f32 %v457, %v501
        %v503 = vadd.f32 %v414, %v368
        %v504 = vsub.f32 %v503, 1.0
        %v505 = vadd.f32 %v504, 7.5
        %v506 = vadd.f32 %v504, 60.458332
        %v507 = vmul.f32 %v506, %v504
        %v508 = vadd.f32 %v507, 1599.0425
        %v509 = vmul.f32 %v508, %v504
        %v510 = vadd.f32 %v509, 24165.51
        %v511 = vmul.f32 %v510, %v504
        %v512 = vadd.f32 %v511, 228235.22
        %v513 = vmul.f32 %v512, %v504
        %v514 = vadd.f32 %v513, 1379496.3
        %v515 = vmul.f32 %v514, %v504
        %v516 = vadd.f32 %v515, 5210869.0
        %v517 = vmul.f32 %v516, %v504
        %v518 = vadd.f32 %v517, 11246929.0
        %v519 = vmul.f32 %v518, %v504
        %v520 = vadd.f32 %v519, 10619610.0
        %v521 = vadd.f32 %v504, 36.0
        %v522 = vmul.f32 %v521, %v504
        %v523 = vadd.f32 %v522, 546.0
        %v524 = vmul.f32 %v523, %v504
        %v525 = vadd.f32 %v524, 4536.0
        %v526 = vmul.f32 %v525, %v504
        %v527 = vadd.f32 %v526, 22449.0
        %v528 = vmul.f32 %v527, %v504
        %v529 = vadd.f32 %v528, 67284.0
        %v530 = vmul.f32 %v529, %v504
        %v531 = vadd.f32 %v530, 118124.0
        %v532 = vmul.f32 %v531, %v504
        %v533 = vadd.f32 %v532, 109584.0
        %v534 = vmul.f32 %v533, %v504
        %v535 = vadd.f32 %v534, 40320.0
        %v536 = vrcp.pop %v535
        %v537 = vmul.f32 %v520, %v536
        %v538 = vadd.f32 %v504, 0.5
        %v539 = vlog2.pop %v505
        %v540 = vmul.f32 %v539, 0.6931472
        %v541 = vmul.f32 %v538, %v540
        %v542 = vadd.f32 %v541, 0.9189385
        %v543 = vsub.f32 %v542, %v505
        %v544 = vlog2.pop %v537
        %v545 = vmul.f32 %v544, 0.6931472
        %v546 = vadd.f32 %v543, %v545
        %v547 = vsub.f32 %v502, %v546
        %v548 = vmul.f32 %v547, 1.442695
        %v549 = vpow.pop %v548
        %v550 = vmul.f32 %v549, 1.2
        %v551 = vadd.f32 %v550, -0.1
        %v552 = vmax.f32 %v551, 0.0
        %v553 = vmin.f32 %v552, 1.0
        %vm554 = vcmp.lt.f32.partialorder %v409, 0.5
        %v555 = vsel %vm554, %v411, %v553
        %v556 = vld [vmem:[%s331] sm:$0xff]
        %558 = vset.pattern.permute.xlu0 0
        %559 = vperm.xlu0 %558, %v556
        %v560 = vpop.permute.xlu0 %559
        %v562 = vmul.f32 %v555, %v560
        %vm563 = vcmask 64512
        %564 = vst.msk [vmem:[%s306] sm:$0xff] %vm563, %v562
        %s565 = sand.u32 %s173, 1
        %s566 = scalar_lea.sflag [#allocation3], %s565
        %s567 = sand.u32 %s173, 1
        %s568 = smul.addr %s567, 8
        %s569 = scalar_lea.vmem [#allocation5], %s568
        // Predicated region
        $region45: #{_lambda_.3} parent=39 // pred_check
          %p570 = pneg %p183
        $region46: #{_lambda_.3} parent=39 // pred_check_branch
          %572 = sbr.rel (%p570) target = $region48
        $region47: #{_lambda_.3} parent=39 // pred_region
          %s574 = ssub.s32 128, 128
          %575 = vsyncadd %s566, %s574
          %s576 = sadd.s32 %s25, %s24
          %s577 = smul.addr %s576, 128
          %s578 = scalar_lea.hbm %s5, %s577
          %s580 = sshll.u32 %s569, 4
          %s581 = int_to_ptr.vmem [resolvable:$true] %s580
          %583 = dma.vmem_to_hbm [thread:$0]  %s581, 128, %s578, %s566
        $region48: #{_lambda_.3} parent=39 // pred_fallthru
          _
      $region40: #{_lambda_.3} parent=5 // pred_fallthru
        _
      %p584 = scmp.le.s32.totalorder 2, %s15
      // Predicated region
      $region49: #{_lambda_.3} parent=5 // pred_check
        %p585 = pneg %p584
      $region50: #{_lambda_.3} parent=5 // pred_check_branch
        %587 = sbr.rel (%p585) target = $region52
      $region51: #{_lambda_.3} parent=5 // pred_region
        %s588 = ssub.s32 %s15, 2
        // Predicated region
        $region53: #{_lambda_.3} parent=51 // pred_check
          %p589 = pneg %p189
        $region54: #{_lambda_.3} parent=51 // pred_check_branch
          %591 = sbr.rel (%p589) target = $region56
        $region55: #{_lambda_.3} parent=51 // pred_region
          %s592 = sand.u32 %s174, 1
          %s593 = scalar_lea.sflag [#allocation3], %s592
          %s594 = sand.u32 %s174, 1
          %s595 = smul.addr %s594, 8
          %s596 = scalar_lea.vmem [#allocation5], %s595
          %597 = dma.done %s593, 128
        $region56: #{_lambda_.3} parent=51 // pred_fallthru
          _
      $region52: #{_lambda_.3} parent=5 // pred_fallthru
        _
    $region6: #{_lambda_.3} parent=1 // loop_footer
      %s19 = sadd.s32 1, %s15
    $region7: #{_lambda_.3} parent=1 // loop_footer_branch
      %14 = sbr.rel target = $region3
    $region8: #{_lambda_.3} parent=1 // loop_exit
      _
    %598 = vsyncpa [#allocation3], 1
    %s599 = scalar_lea.sflag [#allocation3], 1
    %600 = vsyncpa %s599, 1
    %601 = vsyncpa [#allocation4], 1
    %s602 = scalar_lea.sflag [#allocation4], 1
    %603 = vsyncpa %s602, 1

// kernel: _lambda_.2
$region0: #{_lambda_.2}
  #allocation0 [shape = 'u32[]', space=smem, size = 0x4, offset = 0x4, fixed_abs, tag = 'smem constant byte address 0x4 - core index']
  #allocation1 [shape = 'u32[144,128]{1,0:T(1,128)}', space=vmem, size = 0x12000, scoped, tag = 'internal scratch']
  #allocation2 [shape = 'f32[24,1024]{1,0:T(8,128)}', space=vmem, size = 0x18000, scoped, tag = 'scratch operand']
  #allocation3 [shape = 'bf16[8,1024]{1,0:T(8,128)(2,1)}', space=vmem, size = 0x4000, scoped, tag = 'scratch operand']
  %s0 = inlined_call_operand.vmem [shape: f32[2,8,128], index: 0, kind: input, shape index: {}]
  %s1 = inlined_call_operand.vmem [shape: f32[2,8,128], index: 1, kind: input, shape index: {}]
  %s2 = inlined_call_operand.hbm [shape: f32[2,8,128], index: 2, kind: input, shape index: {}]
  %s3 = inlined_call_operand.vmem [shape: f32[2,8,1], index: 3, kind: input, shape index: {}]
  %s4 = inlined_call_operand.hbm [shape: f32[2,1,8], index: 4, kind: input, shape index: {}]
  %s5 = inlined_call_operand.hbm [shape: bf16[128,1024], index: 5, kind: input, shape index: {}]
  %s6 = inlined_call_operand.vmem [shape: f32[1,1024], index: 6, kind: input, shape index: {}]
  %s7 = inlined_call_operand.hbm [shape: bf16[512,320], index: 7, kind: input, shape index: {}]
  %s8 = inlined_call_operand.vmem [shape: f32[1,320], index: 8, kind: input, shape index: {}]
  %s9 = inlined_call_operand.vmem [shape: f32[1,320], index: 9, kind: input, shape index: {}, may-alias: {9,13}]
  %s10 = inlined_call_operand.vmem [shape: f32[1,320], index: 10, kind: input, shape index: {}, may-alias: {10,14}]
  %s11 = inlined_call_operand.hbm [shape: bf16[512,320], index: 11, kind: input, shape index: {}]
  %s12 = inlined_call_operand.hbm [shape: f32[1,320], index: 12, kind: input, shape index: {}]
  %s13 = inlined_call_operand.vmem [shape: f32[1,320], index: 13, kind: input, shape index: {}, may-alias: {9,13}]
  %s14 = inlined_call_operand.vmem [shape: f32[1,320], index: 14, kind: input, shape index: {}, may-alias: {10,14}]
  %s15 = inlined_call_operand.vmem [shape: f32[2,8,8], index: 15, kind: output, shape index: {0}]
  %s16 = inlined_call_operand.vmem [shape: f32[2,8,8], index: 16, kind: output, shape index: {1}]
  %s17 = inlined_call_operand.vmem [shape: f32[2,8,128], index: 17, kind: output, shape index: {2}]
  %18 = xla_tuple %s15, %s16, %s17
  %s19 = sld [smem:[#allocation0]]
  $region133: #{_lambda_.2} parent=0
    _
  %s21 = ssub.s32 1, %s19
  %s22 = scalar_select 0, %s21, %s19
  $region1: #{_lambda_.2} parent=0
    #allocation4 [shape = 'u8[8192]{0}', space=vmem, size = 0x2000, scoped, tag = 'input window, operand 2']
    #allocation5 [shape = 's32[2]{0}', space=sflag, size = 0x8, scoped, tag = 'scoped memory for _lambda_.2']
    #allocation6 [shape = 'u8[1024]{0}', space=vmem, size = 0x400, scoped, tag = 'input window, operand 4']
    #allocation7 [shape = 's32[2]{0}', space=sflag, size = 0x8, scoped, tag = 'scoped memory for _lambda_.2']
    #allocation8 [shape = 'u8[262144]{0}', space=vmem, size = 0x40000, scoped, tag = 'input window, operand 5, single buffered']
    #allocation9 [shape = 'u8[393216]{0}', space=vmem, size = 0x60000, scoped, tag = 'input window, operand 7, single buffered']
    #allocation10 [shape = 's32[1]{0}', space=sflag, size = 0x4, scoped, tag = 'scoped memory for _lambda_.2']
    #allocation11 [shape = 'u8[393216]{0}', space=vmem, size = 0x60000, scoped, tag = 'input window, operand 11, single buffered']
    #allocation12 [shape = 'u8[1536]{0}', space=vmem, size = 0x800, scoped, tag = 'input window, operand 12, single buffered']
    #allocation13 [shape = 's32[1]{0}', space=sflag, size = 0x4, scoped, tag = 'scoped memory for _lambda_.2']
    %23 = vsyncpa [#allocation5], 0
    %s24 = scalar_lea.sflag [#allocation5], 1
    %25 = vsyncpa %s24, 0
    %26 = vsyncpa [#allocation7], 0
    %s27 = scalar_lea.sflag [#allocation7], 1
    %28 = vsyncpa %s27, 0
    %29 = vsyncpa [#allocation10], 0
    %30 = vsyncpa [#allocation13], 0
    loop: start=0, step=1, limit=4
    $region2: #{_lambda_.2} parent=1 // loop_pre_header
      _
    $region3: #{_lambda_.2} parent=1 // loop_header
      %s32 = sphi 0, %s36
      %p33 = scmp.ge.s32.totalorder %s32, 4
      %s42 = sphi 0, %s44
      %s45 = sphi 0, %s42
      %s46 = sphi 0, %s45
      %s62 = sphi 0, %s46
      %s68 = sphi 0, %s70
      %s71 = sphi 0, %s68
      %s72 = sphi 0, %s71
      %s88 = sphi 0, %s72
      %s94 = sphi 0, %s96
      %s97 = sphi 0, %s94
      %s98 = sphi 0, %s97
      %s114 = sphi 0, %s98
      %s120 = sphi 0, %s122
      %s123 = sphi 0, %s120
      %s124 = sphi 0, %s123
      %s140 = sphi 0, %s124
      %s146 = sphi 0, %s148
      %s149 = sphi 0, %s146
      %s150 = sphi 0, %s149
      %s166 = sphi 0, %s150
      %s170 = sphi 0, %s170
      %s172 = sphi 0, %s170
      %s173 = sphi 0, %s172
      %s187 = sphi 0, %s173
      %s191 = sphi 0, %s191
      %s193 = sphi 0, %s191
      %s194 = sphi 0, %s193
      %s208 = sphi 0, %s194
      %s212 = sphi 0, %s212
      %s214 = sphi 0, %s212
      %s215 = sphi 0, %s214
      %s229 = sphi 0, %s215
      %s233 = sphi 0, %s233
      %s235 = sphi 0, %s233
      %s236 = sphi 0, %s235
      %s250 = sphi 0, %s236
      %s254 = sphi 0, %s254
      %s256 = sphi 0, %s254
      %s257 = sphi 0, %s256
      %s271 = sphi 0, %s257
      %s275 = sphi 0, %s275
      %s277 = sphi 0, %s275
      %s278 = sphi 0, %s277
      %s292 = sphi 0, %s278
      %s296 = sphi 0, %s296
      %s298 = sphi 0, %s296
      %s299 = sphi 0, %s298
      %s313 = sphi 0, %s299
      %s317 = sphi 0, %s317
      %s319 = sphi 0, %s317
      %s320 = sphi 0, %s319
      %s334 = sphi 0, %s320
      %s338 = sphi 0, %s338
      %s340 = sphi 0, %s338
      %s341 = sphi 0, %s340
      %s355 = sphi 0, %s341
      %s359 = sphi 0, %s359
      %s361 = sphi 0, %s359
      %s362 = sphi 0, %s361
      %s376 = sphi 0, %s362
      %s382 = sphi 0, %s384
      %s385 = sphi 0, %s382
      %s386 = sphi 0, %s385
      %s402 = sphi 0, %s386
      %s408 = sphi 0, %s410
      %s411 = sphi 0, %s408
      %s412 = sphi 0, %s411
      %s428 = sphi 0, %s412
      %s434 = sphi 0, %s436
      %s437 = sphi 0, %s434
      %s438 = sphi 0, %s437
      %s454 = sphi 0, %s438
    $region4: #{_lambda_.2} parent=1 // loop_header_branch
      %35 = sbr.rel (%p33) target = $region8
    $region5: #{_lambda_.2} parent=1 // loop_body
      %s37 = ssub.s32 %s32, 1
      %s38 = ssub.s32 %s32, 2
      %s39 = sadd.s32 %s32, 1
      %s40 = ssub.s32 %s32, %s39
      %p41 = scmp.eq.s32.totalorder %s40, 0
      %s43 = sadd.s32 %s42, 1
      %s44 = scalar_select %p41, %s42, %s43
      %p47 = pneg %p41
      %p48 = scmp.eq.s32.totalorder %s32, 1
      %p49 = por %p47, %p48
      %p50 = scmp.ne.s32.totalorder %s42, %s45
      %p51 = scmp.eq.s32.totalorder %s32, 0
      %p52 = por %p50, %p51
      %p53 = scmp.ne.s32.totalorder %s42, %s45
      %p54 = scmp.eq.s32.totalorder %s37, 1
      %p55 = por %p53, %p54
      %p56 = scmp.ne.s32.totalorder %s45, %s46
      %p57 = scmp.eq.s32.totalorder %s37, 0
      %p58 = por %p56, %p57
      %p59 = scmp.ne.s32.totalorder %s45, %s46
      %p60 = scmp.eq.s32.totalorder %s38, 1
      %p61 = por %p59, %p60
      %p63 = scmp.ne.s32.totalorder %s46, %s62
      %p64 = scmp.eq.s32.totalorder %s38, 0
      %p65 = por %p63, %p64
      %s66 = ssub.s32 %s32, %s39
      %p67 = scmp.eq.s32.totalorder %s66, 0
      %s69 = sadd.s32 %s68, 1
      %s70 = scalar_select %p67, %s68, %s69
      %p73 = pneg %p67
      %p74 = scmp.eq.s32.totalorder %s32, 1
      %p75 = por %p73, %p74
      %p76 = scmp.ne.s32.totalorder %s68, %s71
      %p77 = scmp.eq.s32.totalorder %s32, 0
      %p78 = por %p76, %p77
      %p79 = scmp.ne.s32.totalorder %s68, %s71
      %p80 = scmp.eq.s32.totalorder %s37, 1
      %p81 = por %p79, %p80
      %p82 = scmp.ne.s32.totalorder %s71, %s72
      %p83 = scmp.eq.s32.totalorder %s37, 0
      %p84 = por %p82, %p83
      %p85 = scmp.ne.s32.totalorder %s71, %s72
      %p86 = scmp.eq.s32.totalorder %s38, 1
      %p87 = por %p85, %p86
      %p89 = scmp.ne.s32.totalorder %s72, %s88
      %p90 = scmp.eq.s32.totalorder %s38, 0
      %p91 = por %p89, %p90
      %s92 = ssub.s32 %s32, %s39
      %p93 = scmp.eq.s32.totalorder %s92, 0
      %s95 = sadd.s32 %s94, 1
      %s96 = scalar_select %p93, %s94, %s95
      %p99 = pneg %p93
      %p100 = scmp.eq.s32.totalorder %s32, 1
      %p101 = por %p99, %p100
      %p102 = scmp.ne.s32.totalorder %s94, %s97
      %p103 = scmp.eq.s32.totalorder %s32, 0
      %p104 = por %p102, %p103
      %p105 = scmp.ne.s32.totalorder %s94, %s97
      %p106 = scmp.eq.s32.totalorder %s37, 1
      %p107 = por %p105, %p106
      %p108 = scmp.ne.s32.totalorder %s97, %s98
      %p109 = scmp.eq.s32.totalorder %s37, 0
      %p110 = por %p108, %p109
      %p111 = scmp.ne.s32.totalorder %s97, %s98
      %p112 = scmp.eq.s32.totalorder %s38, 1
      %p113 = por %p111, %p112
      %p115 = scmp.ne.s32.totalorder %s98, %s114
      %p116 = scmp.eq.s32.totalorder %s38, 0
      %p117 = por %p115, %p116
      %s118 = ssub.s32 %s32, %s39
      %p119 = scmp.eq.s32.totalorder %s118, 0
      %s121 = sadd.s32 %s120, 1
      %s122 = scalar_select %p119, %s120, %s121
      %p125 = pneg %p119
      %p126 = scmp.eq.s32.totalorder %s32, 1
      %p127 = por %p125, %p126
      %p128 = scmp.ne.s32.totalorder %s120, %s123
      %p129 = scmp.eq.s32.totalorder %s32, 0
      %p130 = por %p128, %p129
      %p131 = scmp.ne.s32.totalorder %s120, %s123
      %p132 = scmp.eq.s32.totalorder %s37, 1
      %p133 = por %p131, %p132
      %p134 = scmp.ne.s32.totalorder %s123, %s124
      %p135 = scmp.eq.s32.totalorder %s37, 0
      %p136 = por %p134, %p135
      %p137 = scmp.ne.s32.totalorder %s123, %s124
      %p138 = scmp.eq.s32.totalorder %s38, 1
      %p139 = por %p137, %p138
      %p141 = scmp.ne.s32.totalorder %s124, %s140
      %p142 = scmp.eq.s32.totalorder %s38, 0
      %p143 = por %p141, %p142
      %s144 = ssub.s32 %s32, %s39
      %p145 = scmp.eq.s32.totalorder %s144, 0
      %s147 = sadd.s32 %s146, 1
      %s148 = scalar_select %p145, %s146, %s147
      %p151 = pneg %p145
      %p152 = scmp.eq.s32.totalorder %s32, 1
      %p153 = por %p151, %p152
      %p154 = scmp.ne.s32.totalorder %s146, %s149
      %p155 = scmp.eq.s32.totalorder %s32, 0
      %p156 = por %p154, %p155
      %p157 = scmp.ne.s32.totalorder %s146, %s149
      %p158 = scmp.eq.s32.totalorder %s37, 1
      %p159 = por %p157, %p158
      %p160 = scmp.ne.s32.totalorder %s149, %s150
      %p161 = scmp.eq.s32.totalorder %s37, 0
      %p162 = por %p160, %p161
      %p163 = scmp.ne.s32.totalorder %s149, %s150
      %p164 = scmp.eq.s32.totalorder %s38, 1
      %p165 = por %p163, %p164
      %p167 = scmp.ne.s32.totalorder %s150, %s166
      %p168 = scmp.eq.s32.totalorder %s38, 0
      %p169 = por %p167, %p168
      %s171 = sadd.s32 %s170, 1
      %p174 = scmp.eq.s32.totalorder %s32, 1
      %p175 = scmp.ne.s32.totalorder %s170, %s172
      %p176 = scmp.eq.s32.totalorder %s32, 0
      %p177 = por %p175, %p176
      %p178 = scmp.ne.s32.totalorder %s170, %s172
      %p179 = scmp.eq.s32.totalorder %s37, 1
      %p180 = por %p178, %p179
      %p181 = scmp.ne.s32.totalorder %s172, %s173
      %p182 = scmp.eq.s32.totalorder %s37, 0
      %p183 = por %p181, %p182
      %p184 = scmp.ne.s32.totalorder %s172, %s173
      %p185 = scmp.eq.s32.totalorder %s38, 1
      %p186 = por %p184, %p185
      %p188 = scmp.ne.s32.totalorder %s173, %s187
      %p189 = scmp.eq.s32.totalorder %s38, 0
      %p190 = por %p188, %p189
      %s192 = sadd.s32 %s191, 1
      %p195 = scmp.eq.s32.totalorder %s32, 1
      %p196 = scmp.ne.s32.totalorder %s191, %s193
      %p197 = scmp.eq.s32.totalorder %s32, 0
      %p198 = por %p196, %p197
      %p199 = scmp.ne.s32.totalorder %s191, %s193
      %p200 = scmp.eq.s32.totalorder %s37, 1
      %p201 = por %p199, %p200
      %p202 = scmp.ne.s32.totalorder %s193, %s194
      %p203 = scmp.eq.s32.totalorder %s37, 0
      %p204 = por %p202, %p203
      %p205 = scmp.ne.s32.totalorder %s193, %s194
      %p206 = scmp.eq.s32.totalorder %s38, 1
      %p207 = por %p205, %p206
      %p209 = scmp.ne.s32.totalorder %s194, %s208
      %p210 = scmp.eq.s32.totalorder %s38, 0
      %p211 = por %p209, %p210
      %s213 = sadd.s32 %s212, 1
      %p216 = scmp.eq.s32.totalorder %s32, 1
      %p217 = scmp.ne.s32.totalorder %s212, %s214
      %p218 = scmp.eq.s32.totalorder %s32, 0
      %p219 = por %p217, %p218
      %p220 = scmp.ne.s32.totalorder %s212, %s214
      %p221 = scmp.eq.s32.totalorder %s37, 1
      %p222 = por %p220, %p221
      %p223 = scmp.ne.s32.totalorder %s214, %s215
      %p224 = scmp.eq.s32.totalorder %s37, 0
      %p225 = por %p223, %p224
      %p226 = scmp.ne.s32.totalorder %s214, %s215
      %p227 = scmp.eq.s32.totalorder %s38, 1
      %p228 = por %p226, %p227
      %p230 = scmp.ne.s32.totalorder %s215, %s229
      %p231 = scmp.eq.s32.totalorder %s38, 0
      %p232 = por %p230, %p231
      %s234 = sadd.s32 %s233, 1
      %p237 = scmp.eq.s32.totalorder %s32, 1
      %p238 = scmp.ne.s32.totalorder %s233, %s235
      %p239 = scmp.eq.s32.totalorder %s32, 0
      %p240 = por %p238, %p239
      %p241 = scmp.ne.s32.totalorder %s233, %s235
      %p242 = scmp.eq.s32.totalorder %s37, 1
      %p243 = por %p241, %p242
      %p244 = scmp.ne.s32.totalorder %s235, %s236
      %p245 = scmp.eq.s32.totalorder %s37, 0
      %p246 = por %p244, %p245
      %p247 = scmp.ne.s32.totalorder %s235, %s236
      %p248 = scmp.eq.s32.totalorder %s38, 1
      %p249 = por %p247, %p248
      %p251 = scmp.ne.s32.totalorder %s236, %s250
      %p252 = scmp.eq.s32.totalorder %s38, 0
      %p253 = por %p251, %p252
      %s255 = sadd.s32 %s254, 1
      %p258 = scmp.eq.s32.totalorder %s32, 1
      %p259 = scmp.ne.s32.totalorder %s254, %s256
      %p260 = scmp.eq.s32.totalorder %s32, 0
      %p261 = por %p259, %p260
      %p262 = scmp.ne.s32.totalorder %s254, %s256
      %p263 = scmp.eq.s32.totalorder %s37, 1
      %p264 = por %p262, %p263
      %p265 = scmp.ne.s32.totalorder %s256, %s257
      %p266 = scmp.eq.s32.totalorder %s37, 0
      %p267 = por %p265, %p266
      %p268 = scmp.ne.s32.totalorder %s256, %s257
      %p269 = scmp.eq.s32.totalorder %s38, 1
      %p270 = por %p268, %p269
      %p272 = scmp.ne.s32.totalorder %s257, %s271
      %p273 = scmp.eq.s32.totalorder %s38, 0
      %p274 = por %p272, %p273
      %s276 = sadd.s32 %s275, 1
      %p279 = scmp.eq.s32.totalorder %s32, 1
      %p280 = scmp.ne.s32.totalorder %s275, %s277
      %p281 = scmp.eq.s32.totalorder %s32, 0
      %p282 = por %p280, %p281
      %p283 = scmp.ne.s32.totalorder %s275, %s277
      %p284 = scmp.eq.s32.totalorder %s37, 1
      %p285 = por %p283, %p284
      %p286 = scmp.ne.s32.totalorder %s277, %s278
      %p287 = scmp.eq.s32.totalorder %s37, 0
      %p288 = por %p286, %p287
      %p289 = scmp.ne.s32.totalorder %s277, %s278
      %p290 = scmp.eq.s32.totalorder %s38, 1
      %p291 = por %p289, %p290
      %p293 = scmp.ne.s32.totalorder %s278, %s292
      %p294 = scmp.eq.s32.totalorder %s38, 0
      %p295 = por %p293, %p294
      %s297 = sadd.s32 %s296, 1
      %p300 = scmp.eq.s32.totalorder %s32, 1
      %p301 = scmp.ne.s32.totalorder %s296, %s298
      %p302 = scmp.eq.s32.totalorder %s32, 0
      %p303 = por %p301, %p302
      %p304 = scmp.ne.s32.totalorder %s296, %s298
      %p305 = scmp.eq.s32.totalorder %s37, 1
      %p306 = por %p304, %p305
      %p307 = scmp.ne.s32.totalorder %s298, %s299
      %p308 = scmp.eq.s32.totalorder %s37, 0
      %p309 = por %p307, %p308
      %p310 = scmp.ne.s32.totalorder %s298, %s299
      %p311 = scmp.eq.s32.totalorder %s38, 1
      %p312 = por %p310, %p311
      %p314 = scmp.ne.s32.totalorder %s299, %s313
      %p315 = scmp.eq.s32.totalorder %s38, 0
      %p316 = por %p314, %p315
      %s318 = sadd.s32 %s317, 1
      %p321 = scmp.eq.s32.totalorder %s32, 1
      %p322 = scmp.ne.s32.totalorder %s317, %s319
      %p323 = scmp.eq.s32.totalorder %s32, 0
      %p324 = por %p322, %p323
      %p325 = scmp.ne.s32.totalorder %s317, %s319
      %p326 = scmp.eq.s32.totalorder %s37, 1
      %p327 = por %p325, %p326
      %p328 = scmp.ne.s32.totalorder %s319, %s320
      %p329 = scmp.eq.s32.totalorder %s37, 0
      %p330 = por %p328, %p329
      %p331 = scmp.ne.s32.totalorder %s319, %s320
      %p332 = scmp.eq.s32.totalorder %s38, 1
      %p333 = por %p331, %p332
      %p335 = scmp.ne.s32.totalorder %s320, %s334
      %p336 = scmp.eq.s32.totalorder %s38, 0
      %p337 = por %p335, %p336
      %s339 = sadd.s32 %s338, 1
      %p342 = scmp.eq.s32.totalorder %s32, 1
      %p343 = scmp.ne.s32.totalorder %s338, %s340
      %p344 = scmp.eq.s32.totalorder %s32, 0
      %p345 = por %p343, %p344
      %p346 = scmp.ne.s32.totalorder %s338, %s340
      %p347 = scmp.eq.s32.totalorder %s37, 1
      %p348 = por %p346, %p347
      %p349 = scmp.ne.s32.totalorder %s340, %s341
      %p350 = scmp.eq.s32.totalorder %s37, 0
      %p351 = por %p349, %p350
      %p352 = scmp.ne.s32.totalorder %s340, %s341
      %p353 = scmp.eq.s32.totalorder %s38, 1
      %p354 = por %p352, %p353
      %p356 = scmp.ne.s32.totalorder %s341, %s355
      %p357 = scmp.eq.s32.totalorder %s38, 0
      %p358 = por %p356, %p357
      %s360 = sadd.s32 %s359, 1
      %p363 = scmp.eq.s32.totalorder %s32, 1
      %p364 = scmp.ne.s32.totalorder %s359, %s361
      %p365 = scmp.eq.s32.totalorder %s32, 0
      %p366 = por %p364, %p365
      %p367 = scmp.ne.s32.totalorder %s359, %s361
      %p368 = scmp.eq.s32.totalorder %s37, 1
      %p369 = por %p367, %p368
      %p370 = scmp.ne.s32.totalorder %s361, %s362
      %p371 = scmp.eq.s32.totalorder %s37, 0
      %p372 = por %p370, %p371
      %p373 = scmp.ne.s32.totalorder %s361, %s362
      %p374 = scmp.eq.s32.totalorder %s38, 1
      %p375 = por %p373, %p374
      %p377 = scmp.ne.s32.totalorder %s362, %s376
      %p378 = scmp.eq.s32.totalorder %s38, 0
      %p379 = por %p377, %p378
      %s380 = ssub.s32 %s32, %s39
      %p381 = scmp.eq.s32.totalorder %s380, 0
      %s383 = sadd.s32 %s382, 1
      %s384 = scalar_select %p381, %s382, %s383
      %p387 = pneg %p381
      %p388 = scmp.eq.s32.totalorder %s32, 1
      %p389 = por %p387, %p388
      %p390 = scmp.ne.s32.totalorder %s382, %s385
      %p391 = scmp.eq.s32.totalorder %s32, 0
      %p392 = por %p390, %p391
      %p393 = scmp.ne.s32.totalorder %s382, %s385
      %p394 = scmp.eq.s32.totalorder %s37, 1
      %p395 = por %p393, %p394
      %p396 = scmp.ne.s32.totalorder %s385, %s386
      %p397 = scmp.eq.s32.totalorder %s37, 0
      %p398 = por %p396, %p397
      %p399 = scmp.ne.s32.totalorder %s385, %s386
      %p400 = scmp.eq.s32.totalorder %s38, 1
      %p401 = por %p399, %p400
      %p403 = scmp.ne.s32.totalorder %s386, %s402
      %p404 = scmp.eq.s32.totalorder %s38, 0
      %p405 = por %p403, %p404
      %s406 = ssub.s32 %s32, %s39
      %p407 = scmp.eq.s32.totalorder %s406, 0
      %s409 = sadd.s32 %s408, 1
      %s410 = scalar_select %p407, %s408, %s409
      %p413 = pneg %p407
      %p414 = scmp.eq.s32.totalorder %s32, 1
      %p415 = por %p413, %p414
      %p416 = scmp.ne.s32.totalorder %s408, %s411
      %p417 = scmp.eq.s32.totalorder %s32, 0
      %p418 = por %p416, %p417
      %p419 = scmp.ne.s32.totalorder %s408, %s411
      %p420 = scmp.eq.s32.totalorder %s37, 1
      %p421 = por %p419, %p420
      %p422 = scmp.ne.s32.totalorder %s411, %s412
      %p423 = scmp.eq.s32.totalorder %s37, 0
      %p424 = por %p422, %p423
      %p425 = scmp.ne.s32.totalorder %s411, %s412
      %p426 = scmp.eq.s32.totalorder %s38, 1
      %p427 = por %p425, %p426
      %p429 = scmp.ne.s32.totalorder %s412, %s428
      %p430 = scmp.eq.s32.totalorder %s38, 0
      %p431 = por %p429, %p430
      %s432 = ssub.s32 %s32, %s39
      %p433 = scmp.eq.s32.totalorder %s432, 0
      %s435 = sadd.s32 %s434, 1
      %s436 = scalar_select %p433, %s434, %s435
      %p439 = pneg %p433
      %p440 = scmp.eq.s32.totalorder %s32, 1
      %p441 = por %p439, %p440
      %p442 = scmp.ne.s32.totalorder %s434, %s437
      %p443 = scmp.eq.s32.totalorder %s32, 0
      %p444 = por %p442, %p443
      %p445 = scmp.ne.s32.totalorder %s434, %s437
      %p446 = scmp.eq.s32.totalorder %s37, 1
      %p447 = por %p445, %p446
      %p448 = scmp.ne.s32.totalorder %s437, %s438
      %p449 = scmp.eq.s32.totalorder %s37, 0
      %p450 = por %p448, %p449
      %p451 = scmp.ne.s32.totalorder %s437, %s438
      %p452 = scmp.eq.s32.totalorder %s38, 1
      %p453 = por %p451, %p452
      %p455 = scmp.ne.s32.totalorder %s438, %s454
      %p456 = scmp.eq.s32.totalorder %s38, 0
      %p457 = por %p455, %p456
      %p458 = scmp.le.s32.totalorder 1, %s32
      %p459 = scmp.lt.s32.totalorder %s32, 3
      %p460 = pnand %p458, %p459
      %p461 = pneg %p460
      // Predicated region
      $region9: #{_lambda_.2} parent=5 // pred_check
        _
      $region10: #{_lambda_.2} parent=5 // pred_check_branch
        %463 = sbr.rel (%p460) target = $region12
      $region11: #{_lambda_.2} parent=5 // pred_region
        %s464 = ssub.s32 %s32, 1
        // Predicated region
        $region13: #{_lambda_.2} parent=11 // pred_check
          %p465 = pneg %p183
        $region14: #{_lambda_.2} parent=11 // pred_check_branch
          %467 = sbr.rel (%p465) target = $region16
        $region15: #{_lambda_.2} parent=11 // pred_region
          %s469 = ssub.s32 8192, 8192
          %470 = vsyncadd [#allocation7], %s469
          %s471 = sshll.u32 [#allocation8], 4
          %s472 = int_to_ptr.vmem [resolvable:$true] %s471
          %477 = dma.hbm_to_vmem [thread:$0]  %s5, 8192, %s472, [#allocation7], 512, 512, 32
        $region16: #{_lambda_.2} parent=11 // pred_fallthru
          _
        // Predicated region
        $region17: #{_lambda_.2} parent=11 // pred_check
          %p478 = pneg %p204
        $region18: #{_lambda_.2} parent=11 // pred_check_branch
          %480 = sbr.rel (%p478) target = $region20
        $region19: #{_lambda_.2} parent=11 // pred_region
          _
        $region20: #{_lambda_.2} parent=11 // pred_fallthru
          _
        // Predicated region
        $region21: #{_lambda_.2} parent=11 // pred_check
          %p481 = pneg %p225
        $region22: #{_lambda_.2} parent=11 // pred_check_branch
          %483 = sbr.rel (%p481) target = $region24
        $region23: #{_lambda_.2} parent=11 // pred_region
          %s485 = ssub.s32 12288, 12288
          %486 = vsyncadd [#allocation10], %s485
          %s487 = sshll.u32 [#allocation9], 4
          %s488 = int_to_ptr.vmem [resolvable:$true] %s487
          %493 = dma.hbm_to_vmem [thread:$0]  %s7, 12288, %s488, [#allocation10], 192, 192, 12
        $region24: #{_lambda_.2} parent=11 // pred_fallthru
          _
        // Predicated region
        $region25: #{_lambda_.2} parent=11 // pred_check
          %p494 = pneg %p246
        $region26: #{_lambda_.2} parent=11 // pred_check_branch
          %496 = sbr.rel (%p494) target = $region28
        $region27: #{_lambda_.2} parent=11 // pred_region
          _
        $region28: #{_lambda_.2} parent=11 // pred_fallthru
          _
        // Predicated region
        $region29: #{_lambda_.2} parent=11 // pred_check
          %p497 = pneg %p267
        $region30: #{_lambda_.2} parent=11 // pred_check_branch
          %499 = sbr.rel (%p497) target = $region32
        $region31: #{_lambda_.2} parent=11 // pred_region
          _
        $region32: #{_lambda_.2} parent=11 // pred_fallthru
          _
        // Predicated region
        $region33: #{_lambda_.2} parent=11 // pred_check
          %p500 = pneg %p288
        $region34: #{_lambda_.2} parent=11 // pred_check_branch
          %502 = sbr.rel (%p500) target = $region36
        $region35: #{_lambda_.2} parent=11 // pred_region
          _
        $region36: #{_lambda_.2} parent=11 // pred_fallthru
          _
        // Predicated region
        $region37: #{_lambda_.2} parent=11 // pred_check
          %p503 = pneg %p309
        $region38: #{_lambda_.2} parent=11 // pred_check_branch
          %505 = sbr.rel (%p503) target = $region40
        $region39: #{_lambda_.2} parent=11 // pred_region
          %s507 = ssub.s32 12288, 12288
          %508 = vsyncadd [#allocation10], %s507
          %s509 = sshll.u32 [#allocation11], 4
          %s510 = int_to_ptr.vmem [resolvable:$true] %s509
          %515 = dma.hbm_to_vmem [thread:$0]  %s11, 12288, %s510, [#allocation10], 192, 192, 12
        $region40: #{_lambda_.2} parent=11 // pred_fallthru
          _
        // Predicated region
        $region41: #{_lambda_.2} parent=11 // pred_check
          %p516 = pneg %p330
        $region42: #{_lambda_.2} parent=11 // pred_check_branch
          %518 = sbr.rel (%p516) target = $region44
        $region43: #{_lambda_.2} parent=11 // pred_region
          %s520 = ssub.s32 48, 48
          %521 = vsyncadd [#allocation13], %s520
          %s523 = sshll.u32 [#allocation12], 4
          %s524 = int_to_ptr.vmem [resolvable:$true] %s523
          %526 = dma.hbm_to_vmem [thread:$0]  %s12, 48, %s524, [#allocation13]
        $region44: #{_lambda_.2} parent=11 // pred_fallthru
          _
        // Predicated region
        $region45: #{_lambda_.2} parent=11 // pred_check
          %p527 = pneg %p351
        $region46: #{_lambda_.2} parent=11 // pred_check_branch
          %529 = sbr.rel (%p527) target = $region48
        $region47: #{_lambda_.2} parent=11 // pred_region
          _
        $region48: #{_lambda_.2} parent=11 // pred_fallthru
          _
        // Predicated region
        $region49: #{_lambda_.2} parent=11 // pred_check
          %p530 = pneg %p372
        $region50: #{_lambda_.2} parent=11 // pred_check_branch
          %532 = sbr.rel (%p530) target = $region52
        $region51: #{_lambda_.2} parent=11 // pred_region
          _
        $region52: #{_lambda_.2} parent=11 // pred_fallthru
          _
      $region12: #{_lambda_.2} parent=5 // pred_fallthru
        _
      %p533 = scmp.lt.s32.totalorder %s32, 2
      // Predicated region
      $region53: #{_lambda_.2} parent=5 // pred_check
        %p534 = pneg %p533
      $region54: #{_lambda_.2} parent=5 // pred_check_branch
        %536 = sbr.rel (%p534) target = $region56
      $region55: #{_lambda_.2} parent=5 // pred_region
        // Predicated region
        $region57: #{_lambda_.2} parent=55 // pred_check
          %p537 = pneg %p52
        $region58: #{_lambda_.2} parent=55 // pred_check_branch
          %539 = sbr.rel (%p537) target = $region60
        $region59: #{_lambda_.2} parent=55 // pred_region
          %p540 = scmp.lt.s32.totalorder %s32, 1
          %s541 = scalar_select %p540, %s32, 1
          %s542 = smul.addr %s541, 8
          %s543 = scalar_lea.vmem %s0, %s542
        $region60: #{_lambda_.2} parent=55 // pred_fallthru
          _
        // Predicated region
        $region61: #{_lambda_.2} parent=55 // pred_check
          %p544 = pneg %p78
        $region62: #{_lambda_.2} parent=55 // pred_check_branch
          %546 = sbr.rel (%p544) target = $region64
        $region63: #{_lambda_.2} parent=55 // pred_region
          %p547 = scmp.lt.s32.totalorder %s32, 1
          %s548 = scalar_select %p547, %s32, 1
          %s549 = smul.addr %s548, 8
          %s550 = scalar_lea.vmem %s1, %s549
        $region64: #{_lambda_.2} parent=55 // pred_fallthru
          _
        // Predicated region
        $region65: #{_lambda_.2} parent=55 // pred_check
          %p551 = pneg %p104
        $region66: #{_lambda_.2} parent=55 // pred_check_branch
          %553 = sbr.rel (%p551) target = $region68
        $region67: #{_lambda_.2} parent=55 // pred_region
          %s554 = sand.u32 %s94, 1
          %s555 = scalar_lea.sflag [#allocation5], %s554
          %s556 = sand.u32 %s94, 1
          %s557 = smul.addr %s556, 8
          %s558 = scalar_lea.vmem [#allocation4], %s557
          %s560 = ssub.s32 128, 128
          %561 = vsyncadd %s555, %s560
          %s562 = smul.addr %s32, 128
          %s563 = scalar_lea.hbm %s2, %s562
          %s565 = sshll.u32 %s558, 4
          %s566 = int_to_ptr.vmem [resolvable:$true] %s565
          %568 = dma.hbm_to_vmem [thread:$0]  %s563, 128, %s566, %s555
        $region68: #{_lambda_.2} parent=55 // pred_fallthru
          _
        // Predicated region
        $region69: #{_lambda_.2} parent=55 // pred_check
          %p569 = pneg %p130
        $region70: #{_lambda_.2} parent=55 // pred_check_branch
          %571 = sbr.rel (%p569) target = $region72
        $region71: #{_lambda_.2} parent=55 // pred_region
          %p572 = scmp.lt.s32.totalorder %s32, 1
          %s573 = scalar_select %p572, %s32, 1
          %s574 = smul.addr %s573, 8
          %s575 = scalar_lea.vmem %s3, %s574
        $region72: #{_lambda_.2} parent=55 // pred_fallthru
          _
        // Predicated region
        $region73: #{_lambda_.2} parent=55 // pred_check
          %p576 = pneg %p156
        $region74: #{_lambda_.2} parent=55 // pred_check_branch
          %578 = sbr.rel (%p576) target = $region76
        $region75: #{_lambda_.2} parent=55 // pred_region
          %s579 = sand.u32 %s32, 1
          %s580 = scalar_lea.sflag [#allocation7], %s579
          %s581 = sand.u32 %s146, 1
          %s582 = scalar_lea.vmem [#allocation6], %s581
          %s584 = ssub.s32 16, 16
          %585 = vsyncadd %s580, %s584
          %s586 = smul.addr %s32, 16
          %s587 = scalar_lea.hbm %s4, %s586
          %s589 = sshll.u32 %s582, 4
          %s590 = int_to_ptr.vmem [resolvable:$true] %s589
          %592 = dma.hbm_to_vmem [thread:$0]  %s587, 16, %s590, %s580
        $region76: #{_lambda_.2} parent=55 // pred_fallthru
          _
      $region56: #{_lambda_.2} parent=5 // pred_fallthru
        _
      %p593 = scmp.le.s32.totalorder 1, %s32
      %p594 = scmp.lt.s32.totalorder %s32, 3
      %p595 = pnand %p593, %p594
      %p596 = pneg %p595
      // Predicated region
      $region77: #{_lambda_.2} parent=5 // pred_check
        _
      $region78: #{_lambda_.2} parent=5 // pred_check_branch
        %598 = sbr.rel (%p595) target = $region80
      $region79: #{_lambda_.2} parent=5 // pred_region
        %s599 = ssub.s32 %s32, 1
        %s600 = sand.u32 %s97, 1
        %s601 = scalar_lea.sflag [#allocation5], %s600
        %s602 = sand.u32 %s97, 1
        %s603 = smul.addr %s602, 8
        %s604 = scalar_lea.vmem [#allocation4], %s603
        // Predicated region
        $region81: #{_lambda_.2} parent=79 // pred_check
          %p605 = pneg %p110
        $region82: #{_lambda_.2} parent=79 // pred_check_branch
          %607 = sbr.rel (%p605) target = $region84
        $region83: #{_lambda_.2} parent=79 // pred_region
          %608 = dma.done %s601, 128
        $region84: #{_lambda_.2} parent=79 // pred_fallthru
          _
        %s609 = sand.u32 %s37, 1
        %s610 = scalar_lea.sflag [#allocation7], %s609
        %s611 = sand.u32 %s149, 1
        %s612 = scalar_lea.vmem [#allocation6], %s611
        // Predicated region
        $region85: #{_lambda_.2} parent=79 // pred_check
          %p613 = pneg %p162
        $region86: #{_lambda_.2} parent=79 // pred_check_branch
          %615 = sbr.rel (%p613) target = $region88
        $region87: #{_lambda_.2} parent=79 // pred_region
          %616 = dma.done %s610, 16
        $region88: #{_lambda_.2} parent=79 // pred_fallthru
          _
        // Predicated region
        $region89: #{_lambda_.2} parent=79 // pred_check
          %p617 = pneg %p183
        $region90: #{_lambda_.2} parent=79 // pred_check_branch
          %619 = sbr.rel (%p617) target = $region92
        $region91: #{_lambda_.2} parent=79 // pred_region
          %620 = dma.done [#allocation7], 8192
        $region92: #{_lambda_.2} parent=79 // pred_fallthru
          _
        // Predicated region
        $region93: #{_lambda_.2} parent=79 // pred_check
          %p621 = pneg %p225
        $region94: #{_lambda_.2} parent=79 // pred_check_branch
          %623 = sbr.rel (%p621) target = $region96
        $region95: #{_lambda_.2} parent=79 // pred_region
          %624 = dma.done [#allocation10], 12288
        $region96: #{_lambda_.2} parent=79 // pred_fallthru
          _
        // Predicated region
        $region97: #{_lambda_.2} parent=79 // pred_check
          %p625 = pneg %p309
        $region98: #{_lambda_.2} parent=79 // pred_check_branch
          %627 = sbr.rel (%p625) target = $region100
        $region99: #{_lambda_.2} parent=79 // pred_region
          %628 = dma.done [#allocation10], 12288
        $region100: #{_lambda_.2} parent=79 // pred_fallthru
          _
        // Predicated region
        $region101: #{_lambda_.2} parent=79 // pred_check
          %p629 = pneg %p330
        $region102: #{_lambda_.2} parent=79 // pred_check_branch
          %631 = sbr.rel (%p629) target = $region104
        $region103: #{_lambda_.2} parent=79 // pred_region
          %632 = dma.done [#allocation13], 48
        $region104: #{_lambda_.2} parent=79 // pred_fallthru
          _
        %p633 = scmp.lt.s32.totalorder %s37, 1
        %s634 = scalar_select %p633, %s37, 1
        %s635 = smul.addr %s634, 8
        %s636 = scalar_lea.vmem %s0, %s635
        %p637 = pneg %p58
        %p638 = pneg %p55
        %p639 = scmp.lt.s32.totalorder %s37, 1
        %s640 = scalar_select %p639, %s37, 1
        %s641 = smul.addr %s640, 8
        %s642 = scalar_lea.vmem %s1, %s641
        %p643 = pneg %p84
        %p644 = pneg %p81
        %s645 = sand.u32 %s97, 1
        %s646 = scalar_lea.sflag [#allocation5], %s645
        %s647 = sand.u32 %s97, 1
        %s648 = smul.addr %s647, 8
        %s649 = scalar_lea.vmem [#allocation4], %s648
        %p650 = pneg %p110
        %p651 = pneg %p107
        %p652 = scmp.lt.s32.totalorder %s37, 1
        %s653 = scalar_select %p652, %s37, 1
        %s654 = smul.addr %s653, 8
        %s655 = scalar_lea.vmem %s3, %s654
        %p656 = pneg %p136
        %p657 = pneg %p133
        %s658 = sand.u32 %s37, 1
        %s659 = scalar_lea.sflag [#allocation7], %s658
        %s660 = sand.u32 %s149, 1
        %s661 = scalar_lea.vmem [#allocation6], %s660
        %p662 = pneg %p162
        %p663 = pneg %p159
        %p664 = pneg %p183
        %p665 = pneg %p180
        %p666 = pneg %p204
        %p667 = pneg %p201
        %p668 = pneg %p225
        %p669 = pneg %p222
        %p670 = pneg %p246
        %p671 = pneg %p243
        %p672 = pneg %p267
        %p673 = pneg %p264
        %p674 = pneg %p288
        %p675 = pneg %p285
        %p676 = pneg %p309
        %p677 = pneg %p306
        %p678 = pneg %p330
        %p679 = pneg %p327
        %p680 = pneg %p351
        %p681 = pneg %p348
        %p682 = pneg %p372
        %p683 = pneg %p369
        %p684 = pneg %p398
        %p685 = pneg %p395
        %p686 = scmp.lt.s32.totalorder %s37, 1
        %s687 = scalar_select %p686, %s37, 1
        %s688 = smul.addr %s687, 8
        %s689 = scalar_lea.vmem %s15, %s688
        %p690 = pneg %p424
        %p691 = pneg %p421
        %p692 = scmp.lt.s32.totalorder %s37, 1
        %s693 = scalar_select %p692, %s37, 1
        %s694 = smul.addr %s693, 8
        %s695 = scalar_lea.vmem %s16, %s694
        %p696 = pneg %p450
        %p697 = pneg %p447
        %p698 = scmp.lt.s32.totalorder %s37, 1
        %s699 = scalar_select %p698, %s37, 1
        %s700 = smul.addr %s699, 8
        %s701 = scalar_lea.vmem %s17, %s700
        %p702 = scmp.lt.s32.totalorder %s37, 1
        %s703 = scalar_select %p702, %s37, 1
        %s704 = smul.addr %s703, 8
        %s705 = scalar_lea.vmem %s0, %s704
        %p706 = scmp.lt.s32.totalorder %s37, 1
        %s707 = scalar_select %p706, %s37, 1
        %s708 = smul.addr %s707, 8
        %s709 = scalar_lea.vmem %s1, %s708
        %p710 = scmp.lt.s32.totalorder %s37, 1
        %s711 = scalar_select %p710, %s37, 1
        %s712 = smul.addr %s711, 8
        %s713 = scalar_lea.vmem %s3, %s712
        %p714 = scmp.lt.s32.totalorder %s37, 1
        %s715 = scalar_select %p714, %s37, 1
        %s716 = smul.addr %s715, 8
        %s717 = scalar_lea.vmem %s15, %s716
        %p718 = scmp.lt.s32.totalorder %s37, 1
        %s719 = scalar_select %p718, %s37, 1
        %s720 = smul.addr %s719, 8
        %s721 = scalar_lea.vmem %s16, %s720
        %p722 = scmp.lt.s32.totalorder %s37, 1
        %s723 = scalar_select %p722, %s37, 1
        %s724 = smul.addr %s723, 8
        %s725 = scalar_lea.vmem %s17, %s724
        %v727 = vld [vmem:[%s705] sm:$0xff]
        %v728 = vld [vmem:[%s709] sm:$0xff]
        %v729 = vld [vmem:[%s604] sm:$0xff]
        %v730 = vpack.c.bf16 %v728, %v727
        %v731 = vpack.c.bf16 %v729, %v729
        %v732 = vld [vmem:[#allocation8] sm:$0xff]
        %v733 = vld [vmem:[#allocation8 + $0x8] sm:$0xff]
        %v734 = vld [vmem:[#allocation8 + $0x10] sm:$0xff]
        %v735 = vld [vmem:[#allocation8 + $0x18] sm:$0xff]
        %v736 = vld [vmem:[#allocation8 + $0x20] sm:$0xff]
        %v737 = vld [vmem:[#allocation8 + $0x28] sm:$0xff]
        %v738 = vld [vmem:[#allocation8 + $0x30] sm:$0xff]
        %v739 = vld [vmem:[#allocation8 + $0x38] sm:$0xff]
        %v740 = vld [vmem:[#allocation8 + $0x40] sm:$0xff]
        %v741 = vld [vmem:[#allocation8 + $0x48] sm:$0xff]
        %v742 = vld [vmem:[#allocation8 + $0x50] sm:$0xff]
        %v743 = vld [vmem:[#allocation8 + $0x58] sm:$0xff]
        %v744 = vld [vmem:[#allocation8 + $0x60] sm:$0xff]
        %v745 = vld [vmem:[#allocation8 + $0x68] sm:$0xff]
        %v746 = vld [vmem:[#allocation8 + $0x70] sm:$0xff]
        %v747 = vld [vmem:[#allocation8 + $0x78] sm:$0xff]
        %v748 = vld [vmem:[#allocation8 + $0x80] sm:$0xff]
        %v749 = vld [vmem:[#allocation8 + $0x88] sm:$0xff]
        %v750 = vld [vmem:[#allocation8 + $0x90] sm:$0xff]
        %v751 = vld [vmem:[#allocation8 + $0x98] sm:$0xff]
        %v752 = vld [vmem:[#allocation8 + $0xa0] sm:$0xff]
        %v753 = vld [vmem:[#allocation8 + $0xa8] sm:$0xff]
        %v754 = vld [vmem:[#allocation8 + $0xb0] sm:$0xff]
        %v755 = vld [vmem:[#allocation8 + $0xb8] sm:$0xff]
        %v756 = vld [vmem:[#allocation8 + $0xc0] sm:$0xff]
        %v757 = vld [vmem:[#allocation8 + $0xc8] sm:$0xff]
        %v758 = vld [vmem:[#allocation8 + $0xd0] sm:$0xff]
        %v759 = vld [vmem:[#allocation8 + $0xd8] sm:$0xff]
        %v760 = vld [vmem:[#allocation8 + $0xe0] sm:$0xff]
        %v761 = vld [vmem:[#allocation8 + $0xe8] sm:$0xff]
        %v762 = vld [vmem:[#allocation8 + $0xf0] sm:$0xff]
        %v763 = vld [vmem:[#allocation8 + $0xf8] sm:$0xff]
        %v764 = vld [vmem:[#allocation8 + $0x100] sm:$0xff]
        %v765 = vld [vmem:[#allocation8 + $0x108] sm:$0xff]
        %v766 = vld [vmem:[#allocation8 + $0x110] sm:$0xff]
        %v767 = vld [vmem:[#allocation8 + $0x118] sm:$0xff]
        %v768 = vld [vmem:[#allocation8 + $0x120] sm:$0xff]
        %v769 = vld [vmem:[#allocation8 + $0x128] sm:$0xff]
        %v770 = vld [vmem:[#allocation8 + $0x130] sm:$0xff]
        %v771 = vld [vmem:[#allocation8 + $0x138] sm:$0xff]
        %v772 = vld [vmem:[#allocation8 + $0x140] sm:$0xff]
        %v773 = vld [vmem:[#allocation8 + $0x148] sm:$0xff]
        %v774 = vld [vmem:[#allocation8 + $0x150] sm:$0xff]
        %v775 = vld [vmem:[#allocation8 + $0x158] sm:$0xff]
        %v776 = vld [vmem:[#allocation8 + $0x160] sm:$0xff]
        %v777 = vld [vmem:[#allocation8 + $0x168] sm:$0xff]
        %v778 = vld [vmem:[#allocation8 + $0x170] sm:$0xff]
        %v779 = vld [vmem:[#allocation8 + $0x178] sm:$0xff]
        %v780 = vld [vmem:[#allocation8 + $0x180] sm:$0xff]
        %v781 = vld [vmem:[#allocation8 + $0x188] sm:$0xff]
        %v782 = vld [vmem:[#allocation8 + $0x190] sm:$0xff]
        %v783 = vld [vmem:[#allocation8 + $0x198] sm:$0xff]
        %v784 = vld [vmem:[#allocation8 + $0x1a0] sm:$0xff]
        %v785 = vld [vmem:[#allocation8 + $0x1a8] sm:$0xff]
        %v786 = vld [vmem:[#allocation8 + $0x1b0] sm:$0xff]
        %v787 = vld [vmem:[#allocation8 + $0x1b8] sm:$0xff]
        %v788 = vld [vmem:[#allocation8 + $0x1c0] sm:$0xff]
        %v789 = vld [vmem:[#allocation8 + $0x1c8] sm:$0xff]
        %v790 = vld [vmem:[#allocation8 + $0x1d0] sm:$0xff]
        %v791 = vld [vmem:[#allocation8 + $0x1d8] sm:$0xff]
        %v792 = vld [vmem:[#allocation8 + $0x1e0] sm:$0xff]
        %v793 = vld [vmem:[#allocation8 + $0x1e8] sm:$0xff]
        %v794 = vld [vmem:[#allocation8 + $0x1f0] sm:$0xff]
        %v795 = vld [vmem:[#allocation8 + $0x1f8] sm:$0xff]
        %v796 = vld [vmem:[%s6] sm:$0xff]
        %v798 = vlaneseq
        %v799 = vshrl.u32 %v798, 7
        %v800 = vsub.s32 0, %v799
        %v801 = vrot.slane %v796, %v800
        %v802 = vlaneseq
        %v803 = vshrl.u32 %v802, 7
        %v804 = vsub.s32 1, %v803
        %v805 = vrot.slane %v796, %v804
        %v806 = vlaneseq
        %v807 = vshrl.u32 %v806, 7
        %v808 = vsub.s32 2, %v807
        %v809 = vrot.slane %v796, %v808
        %v810 = vlaneseq
        %v811 = vshrl.u32 %v810, 7
        %v812 = vsub.s32 3, %v811
        %v813 = vrot.slane %v796, %v812
        %v814 = vlaneseq
        %v815 = vshrl.u32 %v814, 7
        %v816 = vsub.s32 4, %v815
        %v817 = vrot.slane %v796, %v816
        %v818 = vlaneseq
        %v819 = vshrl.u32 %v818, 7
        %v820 = vsub.s32 5, %v819
        %v821 = vrot.slane %v796, %v820
        %v822 = vlaneseq
        %v823 = vshrl.u32 %v822, 7
        %v824 = vsub.s32 6, %v823
        %v825 = vrot.slane %v796, %v824
        %v826 = vlaneseq
        %v827 = vshrl.u32 %v826, 7
        %v828 = vsub.s32 7, %v827
        %v829 = vrot.slane %v796, %v828
        %v902 = vunpack.c.l.b16 %v732
        %v903 = vunpack.c.h.b16 %v732
        %v904 = vunpack.c.l.b16 %v733
        %v905 = vunpack.c.h.b16 %v733
        %v906 = vunpack.c.l.b16 %v734
        %v907 = vunpack.c.h.b16 %v734
        %v908 = vunpack.c.l.b16 %v735
        %v909 = vunpack.c.h.b16 %v735
        %v910 = vunpack.c.l.b16 %v736
        %v911 = vunpack.c.h.b16 %v736
        %v912 = vunpack.c.l.b16 %v737
        %v913 = vunpack.c.h.b16 %v737
        %v914 = vunpack.c.l.b16 %v738
        %v915 = vunpack.c.h.b16 %v738
        %v916 = vunpack.c.l.b16 %v739
        %v917 = vunpack.c.h.b16 %v739
        %v918 = vunpack.c.l.b16 %v740
        %v919 = vunpack.c.h.b16 %v740
        %v920 = vunpack.c.l.b16 %v741
        %v921 = vunpack.c.h.b16 %v741
        %v922 = vunpack.c.l.b16 %v742
        %v923 = vunpack.c.h.b16 %v742
        %v924 = vunpack.c.l.b16 %v743
        %v925 = vunpack.c.h.b16 %v743
        %v926 = vunpack.c.l.b16 %v744
        %v927 = vunpack.c.h.b16 %v744
        %v928 = vunpack.c.l.b16 %v745
        %v929 = vunpack.c.h.b16 %v745
        %v930 = vunpack.c.l.b16 %v746
        %v931 = vunpack.c.h.b16 %v746
        %v932 = vunpack.c.l.b16 %v747
        %v933 = vunpack.c.h.b16 %v747
        %v934 = vunpack.c.l.b16 %v748
        %v935 = vunpack.c.h.b16 %v748
        %v936 = vunpack.c.l.b16 %v749
        %v937 = vunpack.c.h.b16 %v749
        %v938 = vunpack.c.l.b16 %v750
        %v939 = vunpack.c.h.b16 %v750
        %v940 = vunpack.c.l.b16 %v751
        %v941 = vunpack.c.h.b16 %v751
        %v942 = vunpack.c.l.b16 %v752
        %v943 = vunpack.c.h.b16 %v752
        %v944 = vunpack.c.l.b16 %v753
        %v945 = vunpack.c.h.b16 %v753
        %v946 = vunpack.c.l.b16 %v754
        %v947 = vunpack.c.h.b16 %v754
        %v948 = vunpack.c.l.b16 %v755
        %v949 = vunpack.c.h.b16 %v755
        %v950 = vunpack.c.l.b16 %v756
        %v951 = vunpack.c.h.b16 %v756
        %v952 = vunpack.c.l.b16 %v757
        %v953 = vunpack.c.h.b16 %v757
        %v954 = vunpack.c.l.b16 %v758
        %v955 = vunpack.c.h.b16 %v758
        %v956 = vunpack.c.l.b16 %v759
        %v957 = vunpack.c.h.b16 %v759
        %v958 = vunpack.c.l.b16 %v760
        %v959 = vunpack.c.h.b16 %v760
        %v960 = vunpack.c.l.b16 %v761
        %v961 = vunpack.c.h.b16 %v761
        %v962 = vunpack.c.l.b16 %v762
        %v963 = vunpack.c.h.b16 %v762
        %v964 = vunpack.c.l.b16 %v763
        %v965 = vunpack.c.h.b16 %v763
        %v966 = vunpack.c.l.b16 %v764
        %v967 = vunpack.c.h.b16 %v764
        %v968 = vunpack.c.l.b16 %v765
        %v969 = vunpack.c.h.b16 %v765
        %v970 = vunpack.c.l.b16 %v766
        %v971 = vunpack.c.h.b16 %v766
        %v972 = vunpack.c.l.b16 %v767
        %v973 = vunpack.c.h.b16 %v767
        %v974 = vunpack.c.l.b16 %v768
        %v975 = vunpack.c.h.b16 %v768
        %v976 = vunpack.c.l.b16 %v769
        %v977 = vunpack.c.h.b16 %v769
        %v978 = vunpack.c.l.b16 %v770
        %v979 = vunpack.c.h.b16 %v770
        %v980 = vunpack.c.l.b16 %v771
        %v981 = vunpack.c.h.b16 %v771
        %v982 = vunpack.c.l.b16 %v772
        %v983 = vunpack.c.h.b16 %v772
        %v984 = vunpack.c.l.b16 %v773
        %v985 = vunpack.c.h.b16 %v773
        %v986 = vunpack.c.l.b16 %v774
        %v987 = vunpack.c.h.b16 %v774
        %v988 = vunpack.c.l.b16 %v775
        %v989 = vunpack.c.h.b16 %v775
        %v990 = vunpack.c.l.b16 %v776
        %v991 = vunpack.c.h.b16 %v776
        %v992 = vunpack.c.l.b16 %v777
        %v993 = vunpack.c.h.b16 %v777
        %v994 = vunpack.c.l.b16 %v778
        %v995 = vunpack.c.h.b16 %v778
        %v996 = vunpack.c.l.b16 %v779
        %v997 = vunpack.c.h.b16 %v779
        %v998 = vunpack.c.l.b16 %v780
        %v999 = vunpack.c.h.b16 %v780
        %v1000 = vunpack.c.l.b16 %v781
        %v1001 = vunpack.c.h.b16 %v781
        %v1002 = vunpack.c.l.b16 %v782
        %v1003 = vunpack.c.h.b16 %v782
        %v1004 = vunpack.c.l.b16 %v783
        %v1005 = vunpack.c.h.b16 %v783
        %v1006 = vunpack.c.l.b16 %v784
        %v1007 = vunpack.c.h.b16 %v784
        %v1008 = vunpack.c.l.b16 %v785
        %v1009 = vunpack.c.h.b16 %v785
        %v1010 = vunpack.c.l.b16 %v786
        %v1011 = vunpack.c.h.b16 %v786
        %v1012 = vunpack.c.l.b16 %v787
        %v1013 = vunpack.c.h.b16 %v787
        %v1014 = vunpack.c.l.b16 %v788
        %v1015 = vunpack.c.h.b16 %v788
        %v1016 = vunpack.c.l.b16 %v789
        %v1017 = vunpack.c.h.b16 %v789
        %v1018 = vunpack.c.l.b16 %v790
        %v1019 = vunpack.c.h.b16 %v790
        %v1020 = vunpack.c.l.b16 %v791
        %v1021 = vunpack.c.h.b16 %v791
        %v1022 = vunpack.c.l.b16 %v792
        %v1023 = vunpack.c.h.b16 %v792
        %v1024 = vunpack.c.l.b16 %v793
        %v1025 = vunpack.c.h.b16 %v793
        %v1026 = vunpack.c.l.b16 %v794
        %v1027 = vunpack.c.h.b16 %v794
        %v1028 = vunpack.c.l.b16 %v795
        %v1029 = vunpack.c.h.b16 %v795
        %v1030 = vpack.c.b16 %v910, %v902
        %v1031 = vpack.c.b16 %v911, %v903
        %v1032 = vpack.c.b16 %v912, %v904
        %v1033 = vpack.c.b16 %v913, %v905
        %v1034 = vpack.c.b16 %v914, %v906
        %v1035 = vpack.c.b16 %v915, %v907
        %v1036 = vpack.c.b16 %v916, %v908
        %v1037 = vpack.c.b16 %v917, %v909
        %v1038 = vpack.c.b16 %v926, %v918
        %v1039 = vpack.c.b16 %v927, %v919
        %v1040 = vpack.c.b16 %v928, %v920
        %v1041 = vpack.c.b16 %v929, %v921
        %v1042 = vpack.c.b16 %v930, %v922
        %v1043 = vpack.c.b16 %v931, %v923
        %v1044 = vpack.c.b16 %v932, %v924
        %v1045 = vpack.c.b16 %v933, %v925
        %v1046 = vpack.c.b16 %v942, %v934
        %v1047 = vpack.c.b16 %v943, %v935
        %v1048 = vpack.c.b16 %v944, %v936
        %v1049 = vpack.c.b16 %v945, %v937
        %v1050 = vpack.c.b16 %v946, %v938
        %v1051 = vpack.c.b16 %v947, %v939
        %v1052 = vpack.c.b16 %v948, %v940
        %v1053 = vpack.c.b16 %v949, %v941
        %v1054 = vpack.c.b16 %v958, %v950
        %v1055 = vpack.c.b16 %v959, %v951
        %v1056 = vpack.c.b16 %v960, %v952
        %v1057 = vpack.c.b16 %v961, %v953
        %v1058 = vpack.c.b16 %v962, %v954
        %v1059 = vpack.c.b16 %v963, %v955
        %v1060 = vpack.c.b16 %v964, %v956
        %v1061 = vpack.c.b16 %v965, %v957
        %v1062 = vpack.c.b16 %v974, %v966
        %v1063 = vpack.c.b16 %v975, %v967
        %v1064 = vpack.c.b16 %v976, %v968
        %v1065 = vpack.c.b16 %v977, %v969
        %v1066 = vpack.c.b16 %v978, %v970
        %v1067 = vpack.c.b16 %v979, %v971
        %v1068 = vpack.c.b16 %v980, %v972
        %v1069 = vpack.c.b16 %v981, %v973
        %v1070 = vpack.c.b16 %v990, %v982
        %v1071 = vpack.c.b16 %v991, %v983
        %v1072 = vpack.c.b16 %v992, %v984
        %v1073 = vpack.c.b16 %v993, %v985
        %v1074 = vpack.c.b16 %v994, %v986
        %v1075 = vpack.c.b16 %v995, %v987
        %v1076 = vpack.c.b16 %v996, %v988
        %v1077 = vpack.c.b16 %v997, %v989
        %v1078 = vpack.c.b16 %v1006, %v998
        %v1079 = vpack.c.b16 %v1007, %v999
        %v1080 = vpack.c.b16 %v1008, %v1000
        %v1081 = vpack.c.b16 %v1009, %v1001
        %v1082 = vpack.c.b16 %v1010, %v1002
        %v1083 = vpack.c.b16 %v1011, %v1003
        %v1084 = vpack.c.b16 %v1012, %v1004
        %v1085 = vpack.c.b16 %v1013, %v1005
        %v1086 = vpack.c.b16 %v1022, %v1014
        %v1087 = vpack.c.b16 %v1023, %v1015
        %v1088 = vpack.c.b16 %v1024, %v1016
        %v1089 = vpack.c.b16 %v1025, %v1017
        %v1090 = vpack.c.b16 %v1026, %v1018
        %v1091 = vpack.c.b16 %v1027, %v1019
        %v1092 = vpack.c.b16 %v1028, %v1020
        %v1093 = vpack.c.b16 %v1029, %v1021
        %1158 = vmatprep.subr.bf16.mxu0 %v1087
        %1159 = vmatpush1.bf16.msra.mxu0 %v1086
        %1160 = vmatprep.subr.bf16.mxu0 %v1079
        %1161 = vmatpush1.bf16.msra.mxu0 %v1078
        %1162 = vmatprep.subr.bf16.mxu0 %v1071
        %1163 = vmatpush1.bf16.msra.mxu0 %v1070
        %1164 = vmatprep.subr.bf16.mxu0 %v1063
        %1165 = vmatpush1.bf16.msra.mxu0 %v1062
        %1166 = vmatprep.subr.bf16.mxu0 %v1055
        %1167 = vmatpush1.bf16.msra.mxu0 %v1054
        %1168 = vmatprep.subr.bf16.mxu0 %v1047
        %1169 = vmatpush1.bf16.msra.mxu0 %v1046
        %1170 = vmatprep.subr.bf16.mxu0 %v1039
        %1171 = vmatpush1.bf16.msra.mxu0 %v1038
        %1172 = vmatprep.subr.bf16.mxu0 %v1031
        %1173 = vmatpush1.bf16.msra.mxu0 %v1030
        %1174 = vmatprep.subr.bf16.mxu0 0
        %1175 = vmatpush2.bf16.msra.mxu0 0
        %1176 = vmatprep.subr.bf16.mxu0 0
        %1177 = vmatpush2.bf16.msra.mxu0 0
        %1178 = vmatprep.subr.bf16.mxu0 0
        %1179 = vmatpush2.bf16.msra.mxu0 0
        %1180 = vmatprep.subr.bf16.mxu0 0
        %1181 = vmatpush2.bf16.msra.mxu0 0
        %1182 = vmatprep.subr.bf16.mxu0 0
        %1183 = vmatpush2.bf16.msra.mxu0 0
        %1184 = vmatprep.subr.bf16.mxu0 0
        %1185 = vmatpush2.bf16.msra.mxu0 0
        %1186 = vmatprep.subr.bf16.mxu0 0
        %1187 = vmatpush2.bf16.msra.mxu0 0
        %1188 = vmatprep.subr.bf16.mxu0 0
        %1189 = vmatpush2.bf16.msra.mxu0 0
        %1190 = vmatprep.mubr.bf16.mxu0 0
        %1191 = vmatmul.mubr.bf16.gmra.mxu0 %v730
        %v1192 = vpop.f32.mrf.mxu0
        %v1193 = vadd.f32 %v801, %v1192
        %v1194 = vpop.f32.mrf.mxu0
        %v1195 = vadd.f32 %v805, %v1194
        %v1196 = vpop.f32.mrf.mxu0
        %v1197 = vadd.f32 %v801, %v1196
        %v1198 = vpop.f32.mrf.mxu0
        %v1199 = vadd.f32 %v805, %v1198
        %1200 = vmatprep.mubr.bf16.mxu0 0
        %1201 = vmatmul.mubr.bf16.gmra.mxu0 %v731
        %v1202 = vpop.f32.mrf.mxu0
        %v1203 = vadd.f32 %v801, %v1202
        %v1204 = vpop.f32.mrf.mxu0
        %v1205 = vadd.f32 %v805, %v1204
        %v1206 = vpop.f32.mrf.mxu0
        %v1207 = vpop.f32.mrf.mxu0
        %1208 = vdwg.mxu0
        %1209 = vmatprep.subr.bf16.mxu0 %v1089
        %1210 = vmatpush1.bf16.msra.mxu0 %v1088
        %1211 = vmatprep.subr.bf16.mxu0 %v1081
        %1212 = vmatpush1.bf16.msra.mxu0 %v1080
        %1213 = vmatprep.subr.bf16.mxu0 %v1073
        %1214 = vmatpush1.bf16.msra.mxu0 %v1072
        %1215 = vmatprep.subr.bf16.mxu0 %v1065
        %1216 = vmatpush1.bf16.msra.mxu0 %v1064
        %1217 = vmatprep.subr.bf16.mxu0 %v1057
        %1218 = vmatpush1.bf16.msra.mxu0 %v1056
        %1219 = vmatprep.subr.bf16.mxu0 %v1049
        %1220 = vmatpush1.bf16.msra.mxu0 %v1048
        %1221 = vmatprep.subr.bf16.mxu0 %v1041
        %1222 = vmatpush1.bf16.msra.mxu0 %v1040
        %1223 = vmatprep.subr.bf16.mxu0 %v1033
        %1224 = vmatpush1.bf16.msra.mxu0 %v1032
        %1225 = vmatprep.subr.bf16.mxu0 0
        %1226 = vmatpush2.bf16.msra.mxu0 0
        %1227 = vmatprep.subr.bf16.mxu0 0
        %1228 = vmatpush2.bf16.msra.mxu0 0
        %1229 = vmatprep.subr.bf16.mxu0 0
        %1230 = vmatpush2.bf16.msra.mxu0 0
        %1231 = vmatprep.subr.bf16.mxu0 0
        %1232 = vmatpush2.bf16.msra.mxu0 0
        %1233 = vmatprep.subr.bf16.mxu0 0
        %1234 = vmatpush2.bf16.msra.mxu0 0
        %1235 = vmatprep.subr.bf16.mxu0 0
        %1236 = vmatpush2.bf16.msra.mxu0 0
        %1237 = vmatprep.subr.bf16.mxu0 0
        %1238 = vmatpush2.bf16.msra.mxu0 0
        %1239 = vmatprep.subr.bf16.mxu0 0
        %1240 = vmatpush2.bf16.msra.mxu0 0
        %1241 = vmatprep.mubr.bf16.mxu0 0
        %1242 = vmatmul.mubr.bf16.gmra.mxu0 %v730
        %v1243 = vpop.f32.mrf.mxu0
        %v1244 = vadd.f32 %v809, %v1243
        %v1245 = vpop.f32.mrf.mxu0
        %v1246 = vadd.f32 %v813, %v1245
        %v1247 = vpop.f32.mrf.mxu0
        %v1248 = vadd.f32 %v809, %v1247
        %v1249 = vpop.f32.mrf.mxu0
        %v1250 = vadd.f32 %v813, %v1249
        %1251 = vmatprep.mubr.bf16.mxu0 0
        %1252 = vmatmul.mubr.bf16.gmra.mxu0 %v731
        %v1253 = vpop.f32.mrf.mxu0
        %v1254 = vadd.f32 %v809, %v1253
        %v1255 = vpop.f32.mrf.mxu0
        %v1256 = vadd.f32 %v813, %v1255
        %v1257 = vpop.f32.mrf.mxu0
        %v1258 = vpop.f32.mrf.mxu0
        %1259 = vdwg.mxu0
        %1260 = vmatprep.subr.bf16.mxu0 %v1091
        %1261 = vmatpush1.bf16.msra.mxu0 %v1090
        %1262 = vmatprep.subr.bf16.mxu0 %v1083
        %1263 = vmatpush1.bf16.msra.mxu0 %v1082
        %1264 = vmatprep.subr.bf16.mxu0 %v1075
        %1265 = vmatpush1.bf16.msra.mxu0 %v1074
        %1266 = vmatprep.subr.bf16.mxu0 %v1067
        %1267 = vmatpush1.bf16.msra.mxu0 %v1066
        %1268 = vmatprep.subr.bf16.mxu0 %v1059
        %1269 = vmatpush1.bf16.msra.mxu0 %v1058
        %1270 = vmatprep.subr.bf16.mxu0 %v1051
        %1271 = vmatpush1.bf16.msra.mxu0 %v1050
        %1272 = vmatprep.subr.bf16.mxu0 %v1043
        %1273 = vmatpush1.bf16.msra.mxu0 %v1042
        %1274 = vmatprep.subr.bf16.mxu0 %v1035
        %1275 = vmatpush1.bf16.msra.mxu0 %v1034
        %1276 = vmatprep.subr.bf16.mxu0 0
        %1277 = vmatpush2.bf16.msra.mxu0 0
        %1278 = vmatprep.subr.bf16.mxu0 0
        %1279 = vmatpush2.bf16.msra.mxu0 0
        %1280 = vmatprep.subr.bf16.mxu0 0
        %1281 = vmatpush2.bf16.msra.mxu0 0
        %1282 = vmatprep.subr.bf16.mxu0 0
        %1283 = vmatpush2.bf16.msra.mxu0 0
        %1284 = vmatprep.subr.bf16.mxu0 0
        %1285 = vmatpush2.bf16.msra.mxu0 0
        %1286 = vmatprep.subr.bf16.mxu0 0
        %1287 = vmatpush2.bf16.msra.mxu0 0
        %1288 = vmatprep.subr.bf16.mxu0 0
        %1289 = vmatpush2.bf16.msra.mxu0 0
        %1290 = vmatprep.subr.bf16.mxu0 0
        %1291 = vmatpush2.bf16.msra.mxu0 0
        %1292 = vmatprep.mubr.bf16.mxu0 0
        %1293 = vmatmul.mubr.bf16.gmra.mxu0 %v730
        %v1294 = vpop.f32.mrf.mxu0
        %v1295 = vadd.f32 %v817, %v1294
        %v1296 = vpop.f32.mrf.mxu0
        %v1297 = vadd.f32 %v821, %v1296
        %v1298 = vpop.f32.mrf.mxu0
        %v1299 = vadd.f32 %v817, %v1298
        %v1300 = vpop.f32.mrf.mxu0
        %v1301 = vadd.f32 %v821, %v1300
        %1302 = vmatprep.mubr.bf16.mxu0 0
        %1303 = vmatmul.mubr.bf16.gmra.mxu0 %v731
        %v1304 = vpop.f32.mrf.mxu0
        %v1305 = vadd.f32 %v817, %v1304
        %v1306 = vpop.f32.mrf.mxu0
        %v1307 = vadd.f32 %v821, %v1306
        %v1308 = vpop.f32.mrf.mxu0
        %v1309 = vpop.f32.mrf.mxu0
        %1310 = vdwg.mxu0
        %1311 = vmatprep.subr.bf16.mxu0 %v1093
        %1312 = vmatpush1.bf16.msra.mxu0 %v1092
        %1313 = vmatprep.subr.bf16.mxu0 %v1085
        %1314 = vmatpush1.bf16.msra.mxu0 %v1084
        %1315 = vmatprep.subr.bf16.mxu0 %v1077
        %1316 = vmatpush1.bf16.msra.mxu0 %v1076
        %1317 = vmatprep.subr.bf16.mxu0 %v1069
        %1318 = vmatpush1.bf16.msra.mxu0 %v1068
        %1319 = vmatprep.subr.bf16.mxu0 %v1061
        %1320 = vmatpush1.bf16.msra.mxu0 %v1060
        %1321 = vmatprep.subr.bf16.mxu0 %v1053
        %1322 = vmatpush1.bf16.msra.mxu0 %v1052
        %1323 = vmatprep.subr.bf16.mxu0 %v1045
        %1324 = vmatpush1.bf16.msra.mxu0 %v1044
        %1325 = vmatprep.subr.bf16.mxu0 %v1037
        %1326 = vmatpush1.bf16.msra.mxu0 %v1036
        %1327 = vmatprep.subr.bf16.mxu0 0
        %1328 = vmatpush2.bf16.msra.mxu0 0
        %1329 = vmatprep.subr.bf16.mxu0 0
        %1330 = vmatpush2.bf16.msra.mxu0 0
        %1331 = vmatprep.subr.bf16.mxu0 0
        %1332 = vmatpush2.bf16.msra.mxu0 0
        %1333 = vmatprep.subr.bf16.mxu0 0
        %1334 = vmatpush2.bf16.msra.mxu0 0
        %1335 = vmatprep.subr.bf16.mxu0 0
        %1336 = vmatpush2.bf16.msra.mxu0 0
        %1337 = vmatprep.subr.bf16.mxu0 0
        %1338 = vmatpush2.bf16.msra.mxu0 0
        %1339 = vmatprep.subr.bf16.mxu0 0
        %1340 = vmatpush2.bf16.msra.mxu0 0
        %1341 = vmatprep.subr.bf16.mxu0 0
        %1342 = vmatpush2.bf16.msra.mxu0 0
        %1343 = vmatprep.mubr.bf16.mxu0 0
        %1344 = vmatmul.mubr.bf16.gmra.mxu0 %v730
        %v1345 = vpop.f32.mrf.mxu0
        %v1346 = vadd.f32 %v825, %v1345
        %v1347 = vpop.f32.mrf.mxu0
        %v1348 = vadd.f32 %v829, %v1347
        %v1349 = vpop.f32.mrf.mxu0
        %v1350 = vadd.f32 %v825, %v1349
        %v1351 = vpop.f32.mrf.mxu0
        %v1352 = vadd.f32 %v829, %v1351
        %1353 = vmatprep.mubr.bf16.mxu0 0
        %1354 = vmatmul.mubr.bf16.gmra.mxu0 %v731
        %v1355 = vpop.f32.mrf.mxu0
        %v1356 = vadd.f32 %v825, %v1355
        %v1357 = vpop.f32.mrf.mxu0
        %v1358 = vadd.f32 %v829, %v1357
        %v1359 = vpop.f32.mrf.mxu0
        %v1360 = vpop.f32.mrf.mxu0
        %1361 = vdwg.mxu0
        %1362 = vst [vmem:[#allocation2] sm:$0xff] %v1193
        %1363 = vst [vmem:[#allocation2 + $0x8] sm:$0xff] %v1195
        %1364 = vst [vmem:[#allocation2 + $0x10] sm:$0xff] %v1244
        %1365 = vst [vmem:[#allocation2 + $0x18] sm:$0xff] %v1246
        %1366 = vst [vmem:[#allocation2 + $0x20] sm:$0xff] %v1295
        %1367 = vst [vmem:[#allocation2 + $0x28] sm:$0xff] %v1297
        %1368 = vst [vmem:[#allocation2 + $0x30] sm:$0xff] %v1346
        %1369 = vst [vmem:[#allocation2 + $0x38] sm:$0xff] %v1348
        %1370 = vst [vmem:[#allocation2 + $0x40] sm:$0xff] %v1197
        %1371 = vst [vmem:[#allocation2 + $0x48] sm:$0xff] %v1199
        %1372 = vst [vmem:[#allocation2 + $0x50] sm:$0xff] %v1248
        %1373 = vst [vmem:[#allocation2 + $0x58] sm:$0xff] %v1250
        %1374 = vst [vmem:[#allocation2 + $0x60] sm:$0xff] %v1299
        %1375 = vst [vmem:[#allocation2 + $0x68] sm:$0xff] %v1301
        %1376 = vst [vmem:[#allocation2 + $0x70] sm:$0xff] %v1350
        %1377 = vst [vmem:[#allocation2 + $0x78] sm:$0xff] %v1352
        %1378 = vst [vmem:[#allocation2 + $0x80] sm:$0xff] %v1203
        %1379 = vst [vmem:[#allocation2 + $0x88] sm:$0xff] %v1205
        %1380 = vst [vmem:[#allocation2 + $0x90] sm:$0xff] %v1254
        %1381 = vst [vmem:[#allocation2 + $0x98] sm:$0xff] %v1256
        %1382 = vst [vmem:[#allocation2 + $0xa0] sm:$0xff] %v1305
        %1383 = vst [vmem:[#allocation2 + $0xa8] sm:$0xff] %v1307
        %1384 = vst [vmem:[#allocation2 + $0xb0] sm:$0xff] %v1356
        %1385 = vst [vmem:[#allocation2 + $0xb8] sm:$0xff] %v1358
        %v1386 = vld [vmem:[%s713] sm:$0xff]
        %vm1387 = vcmp.gt.f32.partialorder %v1386, 0.0
        %v1388 = vld [vmem:[%s612] sm:$0x1]
        %vm1389 = vcmp.gt.f32.partialorder %v1388, 0.0
        %v1390 = vsel %vm1387, 1, 0
        %1391 = vset.pattern.permute.xlu0 0
        %1392 = vperm.xlu0 %1391, %v1390
        %v1393 = vpop.permute.xlu0 %1392
        %vm1394 = vcmp.eq.s32.totalorder %v1393, 1
        %v1395 = vsel %vm1389, 1, 0
        %v1396 = vlaneseq
        %v1397 = vshrl.u32 %v1396, 7
        %v1398 = vsub.s32 0, %v1397
        %v1399 = vrot.slane %v1395, %v1398
        %vm1400 = vcmp.eq.s32.totalorder %v1399, 1
        %vm1401 = vmand %vm1394, %vm1400
        %v1402 = vld [vmem:[#allocation2] sm:$0xff]
        %v1403 = vpack.c.bf16 %v1402, %v1402
        %v1404 = vld [vmem:[#allocation2 + $0x40] sm:$0xff]
        %v1405 = vpack.c.bf16 %v1404, %v1404
        %v1406 = vld [vmem:[#allocation2 + $0x80] sm:$0xff]
        %v1407 = vpack.c.bf16 %v1406, %v1406
        %1408 = vmatprep.subr.bf16.mxu0 0
        %1409 = vmatpush1.bf16.xpose.msra.mxu0 0
        %1410 = vmatprep.subr.bf16.mxu0 0
        %1411 = vmatpush1.bf16.xpose.msra.mxu0 0
        %1412 = vmatprep.subr.bf16.mxu0 0
        %1413 = vmatpush1.bf16.xpose.msra.mxu0 0
        %1414 = vmatprep.subr.bf16.mxu0 0
        %1415 = vmatpush1.bf16.xpose.msra.mxu0 0
        %1416 = vmatprep.subr.bf16.mxu0 0
        %1417 = vmatpush1.bf16.xpose.msra.mxu0 0
        %1418 = vmatprep.subr.bf16.mxu0 0
        %1419 = vmatpush1.bf16.xpose.msra.mxu0 0
        %1420 = vmatprep.subr.bf16.mxu0 0
        %1421 = vmatpush1.bf16.xpose.msra.mxu0 0
        %1422 = vmatprep.subr.bf16.mxu0 0
        %1423 = vmatpush1.bf16.xpose.msra.mxu0 %v1405
        %1424 = vmatprep.subr.bf16.mxu0 0
        %1425 = vmatpush2.bf16.xpose.msra.mxu0 0
        %1426 = vmatprep.subr.bf16.mxu0 0
        %1427 = vmatpush2.bf16.xpose.msra.mxu0 0
        %1428 = vmatprep.subr.bf16.mxu0 0
        %1429 = vmatpush2.bf16.xpose.msra.mxu0 0
        %1430 = vmatprep.subr.bf16.mxu0 0
        %1431 = vmatpush2.bf16.xpose.msra.mxu0 0
        %1432 = vmatprep.subr.bf16.mxu0 0
        %1433 = vmatpush2.bf16.xpose.msra.mxu0 0
        %1434 = vmatprep.subr.bf16.mxu0 0
        %1435 = vmatpush2.bf16.xpose.msra.mxu0 0
        %1436 = vmatprep.subr.bf16.mxu0 0
        %1437 = vmatpush2.bf16.xpose.msra.mxu0 0
        %1438 = vmatprep.subr.bf16.mxu0 0
        %1439 = vmatpush2.bf16.xpose.msra.mxu0 0
        %1440 = vmatprep.mubr.bf16.mxu0 0
        %1441 = vmatmul.mubr.bf16.gmra.mxu0 %v1403
        %v1442 = vpop.f32.mrf.mxu0
        %v1443 = vadd.f32 0.0, %v1442
        %v1444 = vpop.f32.mrf.mxu0
        %v1445 = vpop.f32.mrf.mxu0
        %v1446 = vpop.f32.mrf.mxu0
        %1447 = vdwg.mxu0
        %v1448 = vmul.f32 %v1443, 0.5
        %v1449 = vsel %vm1401, %v1448, -1e+09
        %vm1450 = vcmask 64512
        %v1451 = vsel %vm1450, %v1449, -inf
        %1452 = vmax.xlane.f32.xlu0 %v1451
        %v1453 = vpop.xlane.xlu0 %1452
        %v1454 = vsub.f32 %v1449, %v1453
        %v1455 = vmul.f32 %v1454, 1.442695
        %v1456 = vpow.pop %v1455
        %v1457 = vsel %vm1450, %v1456, 0.0
        %1458 = vadd.xlane.f32.xlu0 %v1457
        %v1459 = vpop.xlane.xlu0 %1458
        %v1460 = vrcp.pop %v1459
        %v1461 = vmul.f32 %v1456, %v1460
        %v1462 = vpack.c.bf16 %v1461, %v1461
        %v1464 = vsel %vm1450, %v1462, 0
        %vm1466 = vcmask 1043456
        %v1468 = vsel %vm1466, %v1407, 0
        %1470 = vmatprep.subr.bf16.mxu0 0
        %1471 = vmatpush1.bf16.msra.mxu0 0
        %1472 = vmatprep.subr.bf16.mxu0 0
        %1473 = vmatpush1.bf16.msra.mxu0 0
        %1474 = vmatprep.subr.bf16.mxu0 0
        %1475 = vmatpush1.bf16.msra.mxu0 0
        %1476 = vmatprep.subr.bf16.mxu0 0
        %1477 = vmatpush1.bf16.msra.mxu0 0
        %1478 = vmatprep.subr.bf16.mxu0 0
        %1479 = vmatpush1.bf16.msra.mxu0 0
        %1480 = vmatprep.subr.bf16.mxu0 0
        %1481 = vmatpush1.bf16.msra.mxu0 0
        %1482 = vmatprep.subr.bf16.mxu0 0
        %1483 = vmatpush1.bf16.msra.mxu0 0
        %1484 = vmatprep.subr.bf16.mxu0 0
        %1485 = vmatpush1.bf16.msra.mxu0 %v1468
        %1486 = vmatprep.subr.bf16.mxu0 0
        %1487 = vmatpush2.bf16.msra.mxu0 0
        %1488 = vmatprep.subr.bf16.mxu0 0
        %1489 = vmatpush2.bf16.msra.mxu0 0
        %1490 = vmatprep.subr.bf16.mxu0 0
        %1491 = vmatpush2.bf16.msra.mxu0 0
        %1492 = vmatprep.subr.bf16.mxu0 0
        %1493 = vmatpush2.bf16.msra.mxu0 0
        %1494 = vmatprep.subr.bf16.mxu0 0
        %1495 = vmatpush2.bf16.msra.mxu0 0
        %1496 = vmatprep.subr.bf16.mxu0 0
        %1497 = vmatpush2.bf16.msra.mxu0 0
        %1498 = vmatprep.subr.bf16.mxu0 0
        %1499 = vmatpush2.bf16.msra.mxu0 0
        %1500 = vmatprep.subr.bf16.mxu0 0
        %1501 = vmatpush2.bf16.msra.mxu0 0
        %1502 = vmatprep.mubr.bf16.mxu0 0
        %1503 = vmatmul.mubr.bf16.gmra.mxu0 %v1464
        %v1504 = vpop.f32.mrf.mxu0
        %v1505 = vadd.f32 0.0, %v1504
        %v1506 = vpop.f32.mrf.mxu0
        %v1507 = vpop.f32.mrf.mxu0
        %v1508 = vpop.f32.mrf.mxu0
        %1509 = vdwg.mxu0
        %v1510 = vpack.c.bf16 %v1505, %v1505
        %1511 = vst [vmem:[#allocation3] sm:$0xf] %v1510
        %s1512 = scalar_lea.vmem [#allocation2], 8
        %v1513 = vld [vmem:[%s1512] sm:$0xff]
        %v1514 = vpack.c.bf16 %v1513, %v1513
        %v1515 = vld [vmem:[%s1512 + $0x40] sm:$0xff]
        %v1516 = vpack.c.bf16 %v1515, %v1515
        %v1517 = vld [vmem:[%s1512 + $0x80] sm:$0xff]
        %v1518 = vpack.c.bf16 %v1517, %v1517
        %1519 = vmatprep.subr.bf16.mxu0 0
        %1520 = vmatpush1.bf16.xpose.msra.mxu0 0
        %1521 = vmatprep.subr.bf16.mxu0 0
        %1522 = vmatpush1.bf16.xpose.msra.mxu0 0
        %1523 = vmatprep.subr.bf16.mxu0 0
        %1524 = vmatpush1.bf16.xpose.msra.mxu0 0
        %1525 = vmatprep.subr.bf16.mxu0 0
        %1526 = vmatpush1.bf16.xpose.msra.mxu0 0
        %1527 = vmatprep.subr.bf16.mxu0 0
        %1528 = vmatpush1.bf16.xpose.msra.mxu0 0
        %1529 = vmatprep.subr.bf16.mxu0 0
        %1530 = vmatpush1.bf16.xpose.msra.mxu0 0
        %1531 = vmatprep.subr.bf16.mxu0 0
        %1532 = vmatpush1.bf16.xpose.msra.mxu0 0
        %1533 = vmatprep.subr.bf16.mxu0 0
        %1534 = vmatpush1.bf16.xpose.msra.mxu0 %v1516
        %1535 = vmatprep.subr.bf16.mxu0 0
        %1536 = vmatpush2.bf16.xpose.msra.mxu0 0
        %1537 = vmatprep.subr.bf16.mxu0 0
        %1538 = vmatpush2.bf16.xpose.msra.mxu0 0
        %1539 = vmatprep.subr.bf16.mxu0 0
        %1540 = vmatpush2.bf16.xpose.msra.mxu0 0
        %1541 = vmatprep.subr.bf16.mxu0 0
        %1542 = vmatpush2.bf16.xpose.msra.mxu0 0
        %1543 = vmatprep.subr.bf16.mxu0 0
        %1544 = vmatpush2.bf16.xpose.msra.mxu0 0
        %1545 = vmatprep.subr.bf16.mxu0 0
        %1546 = vmatpush2.bf16.xpose.msra.mxu0 0
        %1547 = vmatprep.subr.bf16.mxu0 0
        %1548 = vmatpush2.bf16.xpose.msra.mxu0 0
        %1549 = vmatprep.subr.bf16.mxu0 0
        %1550 = vmatpush2.bf16.xpose.msra.mxu0 0
        %1551 = vmatprep.mubr.bf16.mxu0 0
        %1552 = vmatmul.mubr.bf16.gmra.mxu0 %v1514
        %v1553 = vpop.f32.mrf.mxu0
        %v1554 = vadd.f32 0.0, %v1553
        %v1555 = vpop.f32.mrf.mxu0
        %v1556 = vpop.f32.mrf.mxu0
        %v1557 = vpop.f32.mrf.mxu0
        %1558 = vdwg.mxu0
        %v1559 = vmul.f32 %v1554, 0.5
        %v1560 = vsel %vm1401, %v1559, -1e+09
        %v1561 = vsel %vm1450, %v1560, -inf
        %1562 = vmax.xlane.f32.xlu0 %v1561
        %v1563 = vpop.xlane.xlu0 %1562
        %v1564 = vsub.f32 %v1560, %v1563
        %v1565 = vmul.f32 %v1564, 1.442695
        %v1566 = vpow.pop %v1565
        %v1567 = vsel %vm1450, %v1566, 0.0
        %1568 = vadd.xlane.f32.xlu0 %v1567
        %v1569 = vpop.xlane.xlu0 %1568
        %v1570 = vrcp.pop %v1569
        %v1571 = vmul.f32 %v1566, %v1570
        %v1572 = vpack.c.bf16 %v1571, %v1571
        %v1574 = vsel %vm1450, %v1572, 0
        %v1577 = vsel %vm1466, %v1518, 0
        %1579 = vmatprep.subr.bf16.mxu0 0
        %1580 = vmatpush1.bf16.msra.mxu0 0
        %1581 = vmatprep.subr.bf16.mxu0 0
        %1582 = vmatpush1.bf16.msra.mxu0 0
        %1583 = vmatprep.subr.bf16.mxu0 0
        %1584 = vmatpush1.bf16.msra.mxu0 0
        %1585 = vmatprep.subr.bf16.mxu0 0
        %1586 = vmatpush1.bf16.msra.mxu0 0
        %1587 = vmatprep.subr.bf16.mxu0 0
        %1588 = vmatpush1.bf16.msra.mxu0 0
        %1589 = vmatprep.subr.bf16.mxu0 0
        %1590 = vmatpush1.bf16.msra.mxu0 0
        %1591 = vmatprep.subr.bf16.mxu0 0
        %1592 = vmatpush1.bf16.msra.mxu0 0
        %1593 = vmatprep.subr.bf16.mxu0 0
        %1594 = vmatpush1.bf16.msra.mxu0 %v1577
        %1595 = vmatprep.subr.bf16.mxu0 0
        %1596 = vmatpush2.bf16.msra.mxu0 0
        %1597 = vmatprep.subr.bf16.mxu0 0
        %1598 = vmatpush2.bf16.msra.mxu0 0
        %1599 = vmatprep.subr.bf16.mxu0 0
        %1600 = vmatpush2.bf16.msra.mxu0 0
        %1601 = vmatprep.subr.bf16.mxu0 0
        %1602 = vmatpush2.bf16.msra.mxu0 0
        %1603 = vmatprep.subr.bf16.mxu0 0
        %1604 = vmatpush2.bf16.msra.mxu0 0
        %1605 = vmatprep.subr.bf16.mxu0 0
        %1606 = vmatpush2.bf16.msra.mxu0 0
        %1607 = vmatprep.subr.bf16.mxu0 0
        %1608 = vmatpush2.bf16.msra.mxu0 0
        %1609 = vmatprep.subr.bf16.mxu0 0
        %1610 = vmatpush2.bf16.msra.mxu0 0
        %1611 = vmatprep.mubr.bf16.mxu0 0
        %1612 = vmatmul.mubr.bf16.gmra.mxu0 %v1574
        %v1613 = vpop.f32.mrf.mxu0
        %v1614 = vadd.f32 0.0, %v1613
        %v1615 = vpop.f32.mrf.mxu0
        %v1616 = vpop.f32.mrf.mxu0
        %v1617 = vpop.f32.mrf.mxu0
        %1618 = vdwg.mxu0
        %v1619 = vpack.c.bf16 %v1614, %v1614
        %s1620 = scalar_lea.vmem [#allocation3], 4
        %1621 = vst [vmem:[%s1620] sm:$0xf] %v1619
        %s1622 = scalar_lea.vmem [#allocation2], 16
        %v1623 = vld [vmem:[%s1622] sm:$0xff]
        %v1624 = vpack.c.bf16 %v1623, %v1623
        %v1625 = vld [vmem:[%s1622 + $0x40] sm:$0xff]
        %v1626 = vpack.c.bf16 %v1625, %v1625
        %v1627 = vld [vmem:[%s1622 + $0x80] sm:$0xff]
        %v1628 = vpack.c.bf16 %v1627, %v1627
        %1629 = vmatprep.subr.bf16.mxu0 0
        %1630 = vmatpush1.bf16.xpose.msra.mxu0 0
        %1631 = vmatprep.subr.bf16.mxu0 0
        %1632 = vmatpush1.bf16.xpose.msra.mxu0 0
        %1633 = vmatprep.subr.bf16.mxu0 0
        %1634 = vmatpush1.bf16.xpose.msra.mxu0 0
        %1635 = vmatprep.subr.bf16.mxu0 0
        %1636 = vmatpush1.bf16.xpose.msra.mxu0 0
        %1637 = vmatprep.subr.bf16.mxu0 0
        %1638 = vmatpush1.bf16.xpose.msra.mxu0 0
        %1639 = vmatprep.subr.bf16.mxu0 0
        %1640 = vmatpush1.bf16.xpose.msra.mxu0 0
        %1641 = vmatprep.subr.bf16.mxu0 0
        %1642 = vmatpush1.bf16.xpose.msra.mxu0 0
        %1643 = vmatprep.subr.bf16.mxu0 0
        %1644 = vmatpush1.bf16.xpose.msra.mxu0 %v1626
        %1645 = vmatprep.subr.bf16.mxu0 0
        %1646 = vmatpush2.bf16.xpose.msra.mxu0 0
        %1647 = vmatprep.subr.bf16.mxu0 0
        %1648 = vmatpush2.bf16.xpose.msra.mxu0 0
        %1649 = vmatprep.subr.bf16.mxu0 0
        %1650 = vmatpush2.bf16.xpose.msra.mxu0 0
        %1651 = vmatprep.subr.bf16.mxu0 0
        %1652 = vmatpush2.bf16.xpose.msra.mxu0 0
        %1653 = vmatprep.subr.bf16.mxu0 0
        %1654 = vmatpush2.bf16.xpose.msra.mxu0 0
        %1655 = vmatprep.subr.bf16.mxu0 0
        %1656 = vmatpush2.bf16.xpose.msra.mxu0 0
        %1657 = vmatprep.subr.bf16.mxu0 0
        %1658 = vmatpush2.bf16.xpose.msra.mxu0 0
        %1659 = vmatprep.subr.bf16.mxu0 0
        %1660 = vmatpush2.bf16.xpose.msra.mxu0 0
        %1661 = vmatprep.mubr.bf16.mxu0 0
        %1662 = vmatmul.mubr.bf16.gmra.mxu0 %v1624
        %v1663 = vpop.f32.mrf.mxu0
        %v1664 = vadd.f32 0.0, %v1663
        %v1665 = vpop.f32.mrf.mxu0
        %v1666 = vpop.f32.mrf.mxu0
        %v1667 = vpop.f32.mrf.mxu0
        %1668 = vdwg.mxu0
        %v1669 = vmul.f32 %v1664, 0.5
        %v1670 = vsel %vm1401, %v1669, -1e+09
        %v1671 = vsel %vm1450, %v1670, -inf
        %1672 = vmax.xlane.f32.xlu0 %v1671
        %v1673 = vpop.xlane.xlu0 %1672
        %v1674 = vsub.f32 %v1670, %v1673
        %v1675 = vmul.f32 %v1674, 1.442695
        %v1676 = vpow.pop %v1675
        %v1677 = vsel %vm1450, %v1676, 0.0
        %1678 = vadd.xlane.f32.xlu0 %v1677
        %v1679 = vpop.xlane.xlu0 %1678
        %v1680 = vrcp.pop %v1679
        %v1681 = vmul.f32 %v1676, %v1680
        %v1682 = vpack.c.bf16 %v1681, %v1681
        %v1684 = vsel %vm1450, %v1682, 0
        %v1687 = vsel %vm1466, %v1628, 0
        %1689 = vmatprep.subr.bf16.mxu0 0
        %1690 = vmatpush1.bf16.msra.mxu0 0
        %1691 = vmatprep.subr.bf16.mxu0 0
        %1692 = vmatpush1.bf16.msra.mxu0 0
        %1693 = vmatprep.subr.bf16.mxu0 0
        %1694 = vmatpush1.bf16.msra.mxu0 0
        %1695 = vmatprep.subr.bf16.mxu0 0
        %1696 = vmatpush1.bf16.msra.mxu0 0
        %1697 = vmatprep.subr.bf16.mxu0 0
        %1698 = vmatpush1.bf16.msra.mxu0 0
        %1699 = vmatprep.subr.bf16.mxu0 0
        %1700 = vmatpush1.bf16.msra.mxu0 0
        %1701 = vmatprep.subr.bf16.mxu0 0
        %1702 = vmatpush1.bf16.msra.mxu0 0
        %1703 = vmatprep.subr.bf16.mxu0 0
        %1704 = vmatpush1.bf16.msra.mxu0 %v1687
        %1705 = vmatprep.subr.bf16.mxu0 0
        %1706 = vmatpush2.bf16.msra.mxu0 0
        %1707 = vmatprep.subr.bf16.mxu0 0
        %1708 = vmatpush2.bf16.msra.mxu0 0
        %1709 = vmatprep.subr.bf16.mxu0 0
        %1710 = vmatpush2.bf16.msra.mxu0 0
        %1711 = vmatprep.subr.bf16.mxu0 0
        %1712 = vmatpush2.bf16.msra.mxu0 0
        %1713 = vmatprep.subr.bf16.mxu0 0
        %1714 = vmatpush2.bf16.msra.mxu0 0
        %1715 = vmatprep.subr.bf16.mxu0 0
        %1716 = vmatpush2.bf16.msra.mxu0 0
        %1717 = vmatprep.subr.bf16.mxu0 0
        %1718 = vmatpush2.bf16.msra.mxu0 0
        %1719 = vmatprep.subr.bf16.mxu0 0
        %1720 = vmatpush2.bf16.msra.mxu0 0
        %1721 = vmatprep.mubr.bf16.mxu0 0
        %1722 = vmatmul.mubr.bf16.gmra.mxu0 %v1684
        %v1723 = vpop.f32.mrf.mxu0
        %v1724 = vadd.f32 0.0, %v1723
        %v1725 = vpop.f32.mrf.mxu0
        %v1726 = vpop.f32.mrf.mxu0
        %v1727 = vpop.f32.mrf.mxu0
        %1728 = vdwg.mxu0
        %v1729 = vpack.c.bf16 %v1724, %v1724
        %s1730 = scalar_lea.vmem [#allocation3], 8
        %1731 = vst [vmem:[%s1730] sm:$0xf] %v1729
        %s1732 = scalar_lea.vmem [#allocation2], 24
        %v1733 = vld [vmem:[%s1732] sm:$0xff]
        %v1734 = vpack.c.bf16 %v1733, %v1733
        %v1735 = vld [vmem:[%s1732 + $0x40] sm:$0xff]
        %v1736 = vpack.c.bf16 %v1735, %v1735
        %v1737 = vld [vmem:[%s1732 + $0x80] sm:$0xff]
        %v1738 = vpack.c.bf16 %v1737, %v1737
        %1739 = vmatprep.subr.bf16.mxu0 0
        %1740 = vmatpush1.bf16.xpose.msra.mxu0 0
        %1741 = vmatprep.subr.bf16.mxu0 0
        %1742 = vmatpush1.bf16.xpose.msra.mxu0 0
        %1743 = vmatprep.subr.bf16.mxu0 0
        %1744 = vmatpush1.bf16.xpose.msra.mxu0 0
        %1745 = vmatprep.subr.bf16.mxu0 0
        %1746 = vmatpush1.bf16.xpose.msra.mxu0 0
        %1747 = vmatprep.subr.bf16.mxu0 0
        %1748 = vmatpush1.bf16.xpose.msra.mxu0 0
        %1749 = vmatprep.subr.bf16.mxu0 0
        %1750 = vmatpush1.bf16.xpose.msra.mxu0 0
        %1751 = vmatprep.subr.bf16.mxu0 0
        %1752 = vmatpush1.bf16.xpose.msra.mxu0 0
        %1753 = vmatprep.subr.bf16.mxu0 0
        %1754 = vmatpush1.bf16.xpose.msra.mxu0 %v1736
        %1755 = vmatprep.subr.bf16.mxu0 0
        %1756 = vmatpush2.bf16.xpose.msra.mxu0 0
        %1757 = vmatprep.subr.bf16.mxu0 0
        %1758 = vmatpush2.bf16.xpose.msra.mxu0 0
        %1759 = vmatprep.subr.bf16.mxu0 0
        %1760 = vmatpush2.bf16.xpose.msra.mxu0 0
        %1761 = vmatprep.subr.bf16.mxu0 0
        %1762 = vmatpush2.bf16.xpose.msra.mxu0 0
        %1763 = vmatprep.subr.bf16.mxu0 0
        %1764 = vmatpush2.bf16.xpose.msra.mxu0 0
        %1765 = vmatprep.subr.bf16.mxu0 0
        %1766 = vmatpush2.bf16.xpose.msra.mxu0 0
        %1767 = vmatprep.subr.bf16.mxu0 0
        %1768 = vmatpush2.bf16.xpose.msra.mxu0 0
        %1769 = vmatprep.subr.bf16.mxu0 0
        %1770 = vmatpush2.bf16.xpose.msra.mxu0 0
        %1771 = vmatprep.mubr.bf16.mxu0 0
        %1772 = vmatmul.mubr.bf16.gmra.mxu0 %v1734
        %v1773 = vpop.f32.mrf.mxu0
        %v1774 = vadd.f32 0.0, %v1773
        %v1775 = vpop.f32.mrf.mxu0
        %v1776 = vpop.f32.mrf.mxu0
        %v1777 = vpop.f32.mrf.mxu0
        %1778 = vdwg.mxu0
        %v1779 = vmul.f32 %v1774, 0.5
        %v1780 = vsel %vm1401, %v1779, -1e+09
        %v1781 = vsel %vm1450, %v1780, -inf
        %1782 = vmax.xlane.f32.xlu0 %v1781
        %v1783 = vpop.xlane.xlu0 %1782
        %v1784 = vsub.f32 %v1780, %v1783
        %v1785 = vmul.f32 %v1784, 1.442695
        %v1786 = vpow.pop %v1785
        %v1787 = vsel %vm1450, %v1786, 0.0
        %1788 = vadd.xlane.f32.xlu0 %v1787
        %v1789 = vpop.xlane.xlu0 %1788
        %v1790 = vrcp.pop %v1789
        %v1791 = vmul.f32 %v1786, %v1790
        %v1792 = vpack.c.bf16 %v1791, %v1791
        %v1794 = vsel %vm1450, %v1792, 0
        %v1797 = vsel %vm1466, %v1738, 0
        %1799 = vmatprep.subr.bf16.mxu0 0
        %1800 = vmatpush1.bf16.msra.mxu0 0
        %1801 = vmatprep.subr.bf16.mxu0 0
        %1802 = vmatpush1.bf16.msra.mxu0 0
        %1803 = vmatprep.subr.bf16.mxu0 0
        %1804 = vmatpush1.bf16.msra.mxu0 0
        %1805 = vmatprep.subr.bf16.mxu0 0
        %1806 = vmatpush1.bf16.msra.mxu0 0
        %1807 = vmatprep.subr.bf16.mxu0 0
        %1808 = vmatpush1.bf16.msra.mxu0 0
        %1809 = vmatprep.subr.bf16.mxu0 0
        %1810 = vmatpush1.bf16.msra.mxu0 0
        %1811 = vmatprep.subr.bf16.mxu0 0
        %1812 = vmatpush1.bf16.msra.mxu0 0
        %1813 = vmatprep.subr.bf16.mxu0 0
        %1814 = vmatpush1.bf16.msra.mxu0 %v1797
        %1815 = vmatprep.subr.bf16.mxu0 0
        %1816 = vmatpush2.bf16.msra.mxu0 0
        %1817 = vmatprep.subr.bf16.mxu0 0
        %1818 = vmatpush2.bf16.msra.mxu0 0
        %1819 = vmatprep.subr.bf16.mxu0 0
        %1820 = vmatpush2.bf16.msra.mxu0 0
        %1821 = vmatprep.subr.bf16.mxu0 0
        %1822 = vmatpush2.bf16.msra.mxu0 0
        %1823 = vmatprep.subr.bf16.mxu0 0
        %1824 = vmatpush2.bf16.msra.mxu0 0
        %1825 = vmatprep.subr.bf16.mxu0 0
        %1826 = vmatpush2.bf16.msra.mxu0 0
        %1827 = vmatprep.subr.bf16.mxu0 0
        %1828 = vmatpush2.bf16.msra.mxu0 0
        %1829 = vmatprep.subr.bf16.mxu0 0
        %1830 = vmatpush2.bf16.msra.mxu0 0
        %1831 = vmatprep.mubr.bf16.mxu0 0
        %1832 = vmatmul.mubr.bf16.gmra.mxu0 %v1794
        %v1833 = vpop.f32.mrf.mxu0
        %v1834 = vadd.f32 0.0, %v1833
        %v1835 = vpop.f32.mrf.mxu0
        %v1836 = vpop.f32.mrf.mxu0
        %v1837 = vpop.f32.mrf.mxu0
        %1838 = vdwg.mxu0
        %v1839 = vpack.c.bf16 %v1834, %v1834
        %s1840 = scalar_lea.vmem [#allocation3], 12
        %1841 = vst [vmem:[%s1840] sm:$0xf] %v1839
        %s1842 = scalar_lea.vmem [#allocation2], 32
        %v1843 = vld [vmem:[%s1842] sm:$0xff]
        %v1844 = vpack.c.bf16 %v1843, %v1843
        %v1845 = vld [vmem:[%s1842 + $0x40] sm:$0xff]
        %v1846 = vpack.c.bf16 %v1845, %v1845
        %v1847 = vld [vmem:[%s1842 + $0x80] sm:$0xff]
        %v1848 = vpack.c.bf16 %v1847, %v1847
        %1849 = vmatprep.subr.bf16.mxu0 0
        %1850 = vmatpush1.bf16.xpose.msra.mxu0 0
        %1851 = vmatprep.subr.bf16.mxu0 0
        %1852 = vmatpush1.bf16.xpose.msra.mxu0 0
        %1853 = vmatprep.subr.bf16.mxu0 0
        %1854 = vmatpush1.bf16.xpose.msra.mxu0 0
        %1855 = vmatprep.subr.bf16.mxu0 0
        %1856 = vmatpush1.bf16.xpose.msra.mxu0 0
        %1857 = vmatprep.subr.bf16.mxu0 0
        %1858 = vmatpush1.bf16.xpose.msra.mxu0 0
        %1859 = vmatprep.subr.bf16.mxu0 0
        %1860 = vmatpush1.bf16.xpose.msra.mxu0 0
        %1861 = vmatprep.subr.bf16.mxu0 0
        %1862 = vmatpush1.bf16.xpose.msra.mxu0 0
        %1863 = vmatprep.subr.bf16.mxu0 0
        %1864 = vmatpush1.bf16.xpose.msra.mxu0 %v1846
        %1865 = vmatprep.subr.bf16.mxu0 0
        %1866 = vmatpush2.bf16.xpose.msra.mxu0 0
        %1867 = vmatprep.subr.bf16.mxu0 0
        %1868 = vmatpush2.bf16.xpose.msra.mxu0 0
        %1869 = vmatprep.subr.bf16.mxu0 0
        %1870 = vmatpush2.bf16.xpose.msra.mxu0 0
        %1871 = vmatprep.subr.bf16.mxu0 0
        %1872 = vmatpush2.bf16.xpose.msra.mxu0 0
        %1873 = vmatprep.subr.bf16.mxu0 0
        %1874 = vmatpush2.bf16.xpose.msra.mxu0 0
        %1875 = vmatprep.subr.bf16.mxu0 0
        %1876 = vmatpush2.bf16.xpose.msra.mxu0 0
        %1877 = vmatprep.subr.bf16.mxu0 0
        %1878 = vmatpush2.bf16.xpose.msra.mxu0 0
        %1879 = vmatprep.subr.bf16.mxu0 0
        %1880 = vmatpush2.bf16.xpose.msra.mxu0 0
        %1881 = vmatprep.mubr.bf16.mxu0 0
        %1882 = vmatmul.mubr.bf16.gmra.mxu0 %v1844
        %v1883 = vpop.f32.mrf.mxu0
        %v1884 = vadd.f32 0.0, %v1883
        %v1885 = vpop.f32.mrf.mxu0
        %v1886 = vpop.f32.mrf.mxu0
        %v1887 = vpop.f32.mrf.mxu0
        %1888 = vdwg.mxu0
        %v1889 = vmul.f32 %v1884, 0.5
        %v1890 = vsel %vm1401, %v1889, -1e+09
        %v1891 = vsel %vm1450, %v1890, -inf
        %1892 = vmax.xlane.f32.xlu0 %v1891
        %v1893 = vpop.xlane.xlu0 %1892
        %v1894 = vsub.f32 %v1890, %v1893
        %v1895 = vmul.f32 %v1894, 1.442695
        %v1896 = vpow.pop %v1895
        %v1897 = vsel %vm1450, %v1896, 0.0
        %1898 = vadd.xlane.f32.xlu0 %v1897
        %v1899 = vpop.xlane.xlu0 %1898
        %v1900 = vrcp.pop %v1899
        %v1901 = vmul.f32 %v1896, %v1900
        %v1902 = vpack.c.bf16 %v1901, %v1901
        %v1904 = vsel %vm1450, %v1902, 0
        %v1907 = vsel %vm1466, %v1848, 0
        %1909 = vmatprep.subr.bf16.mxu0 0
        %1910 = vmatpush1.bf16.msra.mxu0 0
        %1911 = vmatprep.subr.bf16.mxu0 0
        %1912 = vmatpush1.bf16.msra.mxu0 0
        %1913 = vmatprep.subr.bf16.mxu0 0
        %1914 = vmatpush1.bf16.msra.mxu0 0
        %1915 = vmatprep.subr.bf16.mxu0 0
        %1916 = vmatpush1.bf16.msra.mxu0 0
        %1917 = vmatprep.subr.bf16.mxu0 0
        %1918 = vmatpush1.bf16.msra.mxu0 0
        %1919 = vmatprep.subr.bf16.mxu0 0
        %1920 = vmatpush1.bf16.msra.mxu0 0
        %1921 = vmatprep.subr.bf16.mxu0 0
        %1922 = vmatpush1.bf16.msra.mxu0 0
        %1923 = vmatprep.subr.bf16.mxu0 0
        %1924 = vmatpush1.bf16.msra.mxu0 %v1907
        %1925 = vmatprep.subr.bf16.mxu0 0
        %1926 = vmatpush2.bf16.msra.mxu0 0
        %1927 = vmatprep.subr.bf16.mxu0 0
        %1928 = vmatpush2.bf16.msra.mxu0 0
        %1929 = vmatprep.subr.bf16.mxu0 0
        %1930 = vmatpush2.bf16.msra.mxu0 0
        %1931 = vmatprep.subr.bf16.mxu0 0
        %1932 = vmatpush2.bf16.msra.mxu0 0
        %1933 = vmatprep.subr.bf16.mxu0 0
        %1934 = vmatpush2.bf16.msra.mxu0 0
        %1935 = vmatprep.subr.bf16.mxu0 0
        %1936 = vmatpush2.bf16.msra.mxu0 0
        %1937 = vmatprep.subr.bf16.mxu0 0
        %1938 = vmatpush2.bf16.msra.mxu0 0
        %1939 = vmatprep.subr.bf16.mxu0 0
        %1940 = vmatpush2.bf16.msra.mxu0 0
        %1941 = vmatprep.mubr.bf16.mxu0 0
        %1942 = vmatmul.mubr.bf16.gmra.mxu0 %v1904
        %v1943 = vpop.f32.mrf.mxu0
        %v1944 = vadd.f32 0.0, %v1943
        %v1945 = vpop.f32.mrf.mxu0
        %v1946 = vpop.f32.mrf.mxu0
        %v1947 = vpop.f32.mrf.mxu0
        %1948 = vdwg.mxu0
        %v1949 = vpack.c.bf16 %v1944, %v1944
        %s1950 = scalar_lea.vmem [#allocation3], 16
        %1951 = vst [vmem:[%s1950] sm:$0xf] %v1949
        %s1952 = scalar_lea.vmem [#allocation2], 40
        %v1953 = vld [vmem:[%s1952] sm:$0xff]
        %v1954 = vpack.c.bf16 %v1953, %v1953
        %v1955 = vld [vmem:[%s1952 + $0x40] sm:$0xff]
        %v1956 = vpack.c.bf16 %v1955, %v1955
        %v1957 = vld [vmem:[%s1952 + $0x80] sm:$0xff]
        %v1958 = vpack.c.bf16 %v1957, %v1957
        %1959 = vmatprep.subr.bf16.mxu0 0
        %1960 = vmatpush1.bf16.xpose.msra.mxu0 0
        %1961 = vmatprep.subr.bf16.mxu0 0
        %1962 = vmatpush1.bf16.xpose.msra.mxu0 0
        %1963 = vmatprep.subr.bf16.mxu0 0
        %1964 = vmatpush1.bf16.xpose.msra.mxu0 0
        %1965 = vmatprep.subr.bf16.mxu0 0
        %1966 = vmatpush1.bf16.xpose.msra.mxu0 0
        %1967 = vmatprep.subr.bf16.mxu0 0
        %1968 = vmatpush1.bf16.xpose.msra.mxu0 0
        %1969 = vmatprep.subr.bf16.mxu0 0
        %1970 = vmatpush1.bf16.xpose.msra.mxu0 0
        %1971 = vmatprep.subr.bf16.mxu0 0
        %1972 = vmatpush1.bf16.xpose.msra.mxu0 0
        %1973 = vmatprep.subr.bf16.mxu0 0
        %1974 = vmatpush1.bf16.xpose.msra.mxu0 %v1956
        %1975 = vmatprep.subr.bf16.mxu0 0
        %1976 = vmatpush2.bf16.xpose.msra.mxu0 0
        %1977 = vmatprep.subr.bf16.mxu0 0
        %1978 = vmatpush2.bf16.xpose.msra.mxu0 0
        %1979 = vmatprep.subr.bf16.mxu0 0
        %1980 = vmatpush2.bf16.xpose.msra.mxu0 0
        %1981 = vmatprep.subr.bf16.mxu0 0
        %1982 = vmatpush2.bf16.xpose.msra.mxu0 0
        %1983 = vmatprep.subr.bf16.mxu0 0
        %1984 = vmatpush2.bf16.xpose.msra.mxu0 0
        %1985 = vmatprep.subr.bf16.mxu0 0
        %1986 = vmatpush2.bf16.xpose.msra.mxu0 0
        %1987 = vmatprep.subr.bf16.mxu0 0
        %1988 = vmatpush2.bf16.xpose.msra.mxu0 0
        %1989 = vmatprep.subr.bf16.mxu0 0
        %1990 = vmatpush2.bf16.xpose.msra.mxu0 0
        %1991 = vmatprep.mubr.bf16.mxu0 0
        %1992 = vmatmul.mubr.bf16.gmra.mxu0 %v1954
        %v1993 = vpop.f32.mrf.mxu0
        %v1994 = vadd.f32 0.0, %v1993
        %v1995 = vpop.f32.mrf.mxu0
        %v1996 = vpop.f32.mrf.mxu0
        %v1997 = vpop.f32.mrf.mxu0
        %1998 = vdwg.mxu0
        %v1999 = vmul.f32 %v1994, 0.5
        %v2000 = vsel %vm1401, %v1999, -1e+09
        %v2001 = vsel %vm1450, %v2000, -inf
        %2002 = vmax.xlane.f32.xlu0 %v2001
        %v2003 = vpop.xlane.xlu0 %2002
        %v2004 = vsub.f32 %v2000, %v2003
        %v2005 = vmul.f32 %v2004, 1.442695
        %v2006 = vpow.pop %v2005
        %v2007 = vsel %vm1450, %v2006, 0.0
        %2008 = vadd.xlane.f32.xlu0 %v2007
        %v2009 = vpop.xlane.xlu0 %2008
        %v2010 = vrcp.pop %v2009
        %v2011 = vmul.f32 %v2006, %v2010
        %v2012 = vpack.c.bf16 %v2011, %v2011
        %v2014 = vsel %vm1450, %v2012, 0
        %v2017 = vsel %vm1466, %v1958, 0
        %2019 = vmatprep.subr.bf16.mxu0 0
        %2020 = vmatpush1.bf16.msra.mxu0 0
        %2021 = vmatprep.subr.bf16.mxu0 0
        %2022 = vmatpush1.bf16.msra.mxu0 0
        %2023 = vmatprep.subr.bf16.mxu0 0
        %2024 = vmatpush1.bf16.msra.mxu0 0
        %2025 = vmatprep.subr.bf16.mxu0 0
        %2026 = vmatpush1.bf16.msra.mxu0 0
        %2027 = vmatprep.subr.bf16.mxu0 0
        %2028 = vmatpush1.bf16.msra.mxu0 0
        %2029 = vmatprep.subr.bf16.mxu0 0
        %2030 = vmatpush1.bf16.msra.mxu0 0
        %2031 = vmatprep.subr.bf16.mxu0 0
        %2032 = vmatpush1.bf16.msra.mxu0 0
        %2033 = vmatprep.subr.bf16.mxu0 0
        %2034 = vmatpush1.bf16.msra.mxu0 %v2017
        %2035 = vmatprep.subr.bf16.mxu0 0
        %2036 = vmatpush2.bf16.msra.mxu0 0
        %2037 = vmatprep.subr.bf16.mxu0 0
        %2038 = vmatpush2.bf16.msra.mxu0 0
        %2039 = vmatprep.subr.bf16.mxu0 0
        %2040 = vmatpush2.bf16.msra.mxu0 0
        %2041 = vmatprep.subr.bf16.mxu0 0
        %2042 = vmatpush2.bf16.msra.mxu0 0
        %2043 = vmatprep.subr.bf16.mxu0 0
        %2044 = vmatpush2.bf16.msra.mxu0 0
        %2045 = vmatprep.subr.bf16.mxu0 0
        %2046 = vmatpush2.bf16.msra.mxu0 0
        %2047 = vmatprep.subr.bf16.mxu0 0
        %2048 = vmatpush2.bf16.msra.mxu0 0
        %2049 = vmatprep.subr.bf16.mxu0 0
        %2050 = vmatpush2.bf16.msra.mxu0 0
        %2051 = vmatprep.mubr.bf16.mxu0 0
        %2052 = vmatmul.mubr.bf16.gmra.mxu0 %v2014
        %v2053 = vpop.f32.mrf.mxu0
        %v2054 = vadd.f32 0.0, %v2053
        %v2055 = vpop.f32.mrf.mxu0
        %v2056 = vpop.f32.mrf.mxu0
        %v2057 = vpop.f32.mrf.mxu0
        %2058 = vdwg.mxu0
        %v2059 = vpack.c.bf16 %v2054, %v2054
        %s2060 = scalar_lea.vmem [#allocation3], 20
        %2061 = vst [vmem:[%s2060] sm:$0xf] %v2059
        %s2062 = scalar_lea.vmem [#allocation2], 48
        %v2063 = vld [vmem:[%s2062] sm:$0xff]
        %v2064 = vpack.c.bf16 %v2063, %v2063
        %v2065 = vld [vmem:[%s2062 + $0x40] sm:$0xff]
        %v2066 = vpack.c.bf16 %v2065, %v2065
        %v2067 = vld [vmem:[%s2062 + $0x80] sm:$0xff]
        %v2068 = vpack.c.bf16 %v2067, %v2067
        %2069 = vmatprep.subr.bf16.mxu0 0
        %2070 = vmatpush1.bf16.xpose.msra.mxu0 0
        %2071 = vmatprep.subr.bf16.mxu0 0
        %2072 = vmatpush1.bf16.xpose.msra.mxu0 0
        %2073 = vmatprep.subr.bf16.mxu0 0
        %2074 = vmatpush1.bf16.xpose.msra.mxu0 0
        %2075 = vmatprep.subr.bf16.mxu0 0
        %2076 = vmatpush1.bf16.xpose.msra.mxu0 0
        %2077 = vmatprep.subr.bf16.mxu0 0
        %2078 = vmatpush1.bf16.xpose.msra.mxu0 0
        %2079 = vmatprep.subr.bf16.mxu0 0
        %2080 = vmatpush1.bf16.xpose.msra.mxu0 0
        %2081 = vmatprep.subr.bf16.mxu0 0
        %2082 = vmatpush1.bf16.xpose.msra.mxu0 0
        %2083 = vmatprep.subr.bf16.mxu0 0
        %2084 = vmatpush1.bf16.xpose.msra.mxu0 %v2066
        %2085 = vmatprep.subr.bf16.mxu0 0
        %2086 = vmatpush2.bf16.xpose.msra.mxu0 0
        %2087 = vmatprep.subr.bf16.mxu0 0
        %2088 = vmatpush2.bf16.xpose.msra.mxu0 0
        %2089 = vmatprep.subr.bf16.mxu0 0
        %2090 = vmatpush2.bf16.xpose.msra.mxu0 0
        %2091 = vmatprep.subr.bf16.mxu0 0
        %2092 = vmatpush2.bf16.xpose.msra.mxu0 0
        %2093 = vmatprep.subr.bf16.mxu0 0
        %2094 = vmatpush2.bf16.xpose.msra.mxu0 0
        %2095 = vmatprep.subr.bf16.mxu0 0
        %2096 = vmatpush2.bf16.xpose.msra.mxu0 0
        %2097 = vmatprep.subr.bf16.mxu0 0
        %2098 = vmatpush2.bf16.xpose.msra.mxu0 0
        %2099 = vmatprep.subr.bf16.mxu0 0
        %2100 = vmatpush2.bf16.xpose.msra.mxu0 0
        %2101 = vmatprep.mubr.bf16.mxu0 0
        %2102 = vmatmul.mubr.bf16.gmra.mxu0 %v2064
        %v2103 = vpop.f32.mrf.mxu0
        %v2104 = vadd.f32 0.0, %v2103
        %v2105 = vpop.f32.mrf.mxu0
        %v2106 = vpop.f32.mrf.mxu0
        %v2107 = vpop.f32.mrf.mxu0
        %2108 = vdwg.mxu0
        %v2109 = vmul.f32 %v2104, 0.5
        %v2110 = vsel %vm1401, %v2109, -1e+09
        %v2111 = vsel %vm1450, %v2110, -inf
        %2112 = vmax.xlane.f32.xlu0 %v2111
        %v2113 = vpop.xlane.xlu0 %2112
        %v2114 = vsub.f32 %v2110, %v2113
        %v2115 = vmul.f32 %v2114, 1.442695
        %v2116 = vpow.pop %v2115
        %v2117 = vsel %vm1450, %v2116, 0.0
        %2118 = vadd.xlane.f32.xlu0 %v2117
        %v2119 = vpop.xlane.xlu0 %2118
        %v2120 = vrcp.pop %v2119
        %v2121 = vmul.f32 %v2116, %v2120
        %v2122 = vpack.c.bf16 %v2121, %v2121
        %v2124 = vsel %vm1450, %v2122, 0
        %v2127 = vsel %vm1466, %v2068, 0
        %2129 = vmatprep.subr.bf16.mxu0 0
        %2130 = vmatpush1.bf16.msra.mxu0 0
        %2131 = vmatprep.subr.bf16.mxu0 0
        %2132 = vmatpush1.bf16.msra.mxu0 0
        %2133 = vmatprep.subr.bf16.mxu0 0
        %2134 = vmatpush1.bf16.msra.mxu0 0
        %2135 = vmatprep.subr.bf16.mxu0 0
        %2136 = vmatpush1.bf16.msra.mxu0 0
        %2137 = vmatprep.subr.bf16.mxu0 0
        %2138 = vmatpush1.bf16.msra.mxu0 0
        %2139 = vmatprep.subr.bf16.mxu0 0
        %2140 = vmatpush1.bf16.msra.mxu0 0
        %2141 = vmatprep.subr.bf16.mxu0 0
        %2142 = vmatpush1.bf16.msra.mxu0 0
        %2143 = vmatprep.subr.bf16.mxu0 0
        %2144 = vmatpush1.bf16.msra.mxu0 %v2127
        %2145 = vmatprep.subr.bf16.mxu0 0
        %2146 = vmatpush2.bf16.msra.mxu0 0
        %2147 = vmatprep.subr.bf16.mxu0 0
        %2148 = vmatpush2.bf16.msra.mxu0 0
        %2149 = vmatprep.subr.bf16.mxu0 0
        %2150 = vmatpush2.bf16.msra.mxu0 0
        %2151 = vmatprep.subr.bf16.mxu0 0
        %2152 = vmatpush2.bf16.msra.mxu0 0
        %2153 = vmatprep.subr.bf16.mxu0 0
        %2154 = vmatpush2.bf16.msra.mxu0 0
        %2155 = vmatprep.subr.bf16.mxu0 0
        %2156 = vmatpush2.bf16.msra.mxu0 0
        %2157 = vmatprep.subr.bf16.mxu0 0
        %2158 = vmatpush2.bf16.msra.mxu0 0
        %2159 = vmatprep.subr.bf16.mxu0 0
        %2160 = vmatpush2.bf16.msra.mxu0 0
        %2161 = vmatprep.mubr.bf16.mxu0 0
        %2162 = vmatmul.mubr.bf16.gmra.mxu0 %v2124
        %v2163 = vpop.f32.mrf.mxu0
        %v2164 = vadd.f32 0.0, %v2163
        %v2165 = vpop.f32.mrf.mxu0
        %v2166 = vpop.f32.mrf.mxu0
        %v2167 = vpop.f32.mrf.mxu0
        %2168 = vdwg.mxu0
        %v2169 = vpack.c.bf16 %v2164, %v2164
        %s2170 = scalar_lea.vmem [#allocation3], 24
        %2171 = vst [vmem:[%s2170] sm:$0xf] %v2169
        %s2172 = scalar_lea.vmem [#allocation2], 56
        %v2173 = vld [vmem:[%s2172] sm:$0xff]
        %v2174 = vpack.c.bf16 %v2173, %v2173
        %v2175 = vld [vmem:[%s2172 + $0x40] sm:$0xff]
        %v2176 = vpack.c.bf16 %v2175, %v2175
        %v2177 = vld [vmem:[%s2172 + $0x80] sm:$0xff]
        %v2178 = vpack.c.bf16 %v2177, %v2177
        %2179 = vmatprep.subr.bf16.mxu0 0
        %2180 = vmatpush1.bf16.xpose.msra.mxu0 0
        %2181 = vmatprep.subr.bf16.mxu0 0
        %2182 = vmatpush1.bf16.xpose.msra.mxu0 0
        %2183 = vmatprep.subr.bf16.mxu0 0
        %2184 = vmatpush1.bf16.xpose.msra.mxu0 0
        %2185 = vmatprep.subr.bf16.mxu0 0
        %2186 = vmatpush1.bf16.xpose.msra.mxu0 0
        %2187 = vmatprep.subr.bf16.mxu0 0
        %2188 = vmatpush1.bf16.xpose.msra.mxu0 0
        %2189 = vmatprep.subr.bf16.mxu0 0
        %2190 = vmatpush1.bf16.xpose.msra.mxu0 0
        %2191 = vmatprep.subr.bf16.mxu0 0
        %2192 = vmatpush1.bf16.xpose.msra.mxu0 0
        %2193 = vmatprep.subr.bf16.mxu0 0
        %2194 = vmatpush1.bf16.xpose.msra.mxu0 %v2176
        %2195 = vmatprep.subr.bf16.mxu0 0
        %2196 = vmatpush2.bf16.xpose.msra.mxu0 0
        %2197 = vmatprep.subr.bf16.mxu0 0
        %2198 = vmatpush2.bf16.xpose.msra.mxu0 0
        %2199 = vmatprep.subr.bf16.mxu0 0
        %2200 = vmatpush2.bf16.xpose.msra.mxu0 0
        %2201 = vmatprep.subr.bf16.mxu0 0
        %2202 = vmatpush2.bf16.xpose.msra.mxu0 0
        %2203 = vmatprep.subr.bf16.mxu0 0
        %2204 = vmatpush2.bf16.xpose.msra.mxu0 0
        %2205 = vmatprep.subr.bf16.mxu0 0
        %2206 = vmatpush2.bf16.xpose.msra.mxu0 0
        %2207 = vmatprep.subr.bf16.mxu0 0
        %2208 = vmatpush2.bf16.xpose.msra.mxu0 0
        %2209 = vmatprep.subr.bf16.mxu0 0
        %2210 = vmatpush2.bf16.xpose.msra.mxu0 0
        %2211 = vmatprep.mubr.bf16.mxu0 0
        %2212 = vmatmul.mubr.bf16.gmra.mxu0 %v2174
        %v2213 = vpop.f32.mrf.mxu0
        %v2214 = vadd.f32 0.0, %v2213
        %v2215 = vpop.f32.mrf.mxu0
        %v2216 = vpop.f32.mrf.mxu0
        %v2217 = vpop.f32.mrf.mxu0
        %2218 = vdwg.mxu0
        %v2219 = vmul.f32 %v2214, 0.5
        %v2220 = vsel %vm1401, %v2219, -1e+09
        %v2221 = vsel %vm1450, %v2220, -inf
        %2222 = vmax.xlane.f32.xlu0 %v2221
        %v2223 = vpop.xlane.xlu0 %2222
        %v2224 = vsub.f32 %v2220, %v2223
        %v2225 = vmul.f32 %v2224, 1.442695
        %v2226 = vpow.pop %v2225
        %v2227 = vsel %vm1450, %v2226, 0.0
        %2228 = vadd.xlane.f32.xlu0 %v2227
        %v2229 = vpop.xlane.xlu0 %2228
        %v2230 = vrcp.pop %v2229
        %v2231 = vmul.f32 %v2226, %v2230
        %v2232 = vpack.c.bf16 %v2231, %v2231
        %v2234 = vsel %vm1450, %v2232, 0
        %v2237 = vsel %vm1466, %v2178, 0
        %2239 = vmatprep.subr.bf16.mxu0 0
        %2240 = vmatpush1.bf16.msra.mxu0 0
        %2241 = vmatprep.subr.bf16.mxu0 0
        %2242 = vmatpush1.bf16.msra.mxu0 0
        %2243 = vmatprep.subr.bf16.mxu0 0
        %2244 = vmatpush1.bf16.msra.mxu0 0
        %2245 = vmatprep.subr.bf16.mxu0 0
        %2246 = vmatpush1.bf16.msra.mxu0 0
        %2247 = vmatprep.subr.bf16.mxu0 0
        %2248 = vmatpush1.bf16.msra.mxu0 0
        %2249 = vmatprep.subr.bf16.mxu0 0
        %2250 = vmatpush1.bf16.msra.mxu0 0
        %2251 = vmatprep.subr.bf16.mxu0 0
        %2252 = vmatpush1.bf16.msra.mxu0 0
        %2253 = vmatprep.subr.bf16.mxu0 0
        %2254 = vmatpush1.bf16.msra.mxu0 %v2237
        %2255 = vmatprep.subr.bf16.mxu0 0
        %2256 = vmatpush2.bf16.msra.mxu0 0
        %2257 = vmatprep.subr.bf16.mxu0 0
        %2258 = vmatpush2.bf16.msra.mxu0 0
        %2259 = vmatprep.subr.bf16.mxu0 0
        %2260 = vmatpush2.bf16.msra.mxu0 0
        %2261 = vmatprep.subr.bf16.mxu0 0
        %2262 = vmatpush2.bf16.msra.mxu0 0
        %2263 = vmatprep.subr.bf16.mxu0 0
        %2264 = vmatpush2.bf16.msra.mxu0 0
        %2265 = vmatprep.subr.bf16.mxu0 0
        %2266 = vmatpush2.bf16.msra.mxu0 0
        %2267 = vmatprep.subr.bf16.mxu0 0
        %2268 = vmatpush2.bf16.msra.mxu0 0
        %2269 = vmatprep.subr.bf16.mxu0 0
        %2270 = vmatpush2.bf16.msra.mxu0 0
        %2271 = vmatprep.mubr.bf16.mxu0 0
        %2272 = vmatmul.mubr.bf16.gmra.mxu0 %v2234
        %v2273 = vpop.f32.mrf.mxu0
        %v2274 = vadd.f32 0.0, %v2273
        %v2275 = vpop.f32.mrf.mxu0
        %v2276 = vpop.f32.mrf.mxu0
        %v2277 = vpop.f32.mrf.mxu0
        %2278 = vdwg.mxu0
        %v2279 = vpack.c.bf16 %v2274, %v2274
        %s2280 = scalar_lea.vmem [#allocation3], 28
        %2281 = vst [vmem:[%s2280] sm:$0xf] %v2279
        %v2282 = vld [vmem:[#allocation3] sm:$0xff]
        %v2283 = vld [vmem:[#allocation3 + $0x8] sm:$0xff]
        %v2284 = vld [vmem:[#allocation9] sm:$0xff]
        %v2285 = vld [vmem:[#allocation9 + $0x8] sm:$0xf]
        %v2286 = vld [vmem:[#allocation9 + $0xc] sm:$0xff]
        %v2287 = vld [vmem:[#allocation9 + $0x14] sm:$0xf]
        %v2288 = vld [vmem:[#allocation9 + $0x18] sm:$0xff]
        %v2289 = vld [vmem:[#allocation9 + $0x20] sm:$0xf]
        %v2290 = vld [vmem:[#allocation9 + $0x24] sm:$0xff]
        %v2291 = vld [vmem:[#allocation9 + $0x2c] sm:$0xf]
        %v2292 = vld [vmem:[#allocation9 + $0x30] sm:$0xff]
        %v2293 = vld [vmem:[#allocation9 + $0x38] sm:$0xf]
        %v2294 = vld [vmem:[#allocation9 + $0x3c] sm:$0xff]
        %v2295 = vld [vmem:[#allocation9 + $0x44] sm:$0xf]
        %v2296 = vld [vmem:[#allocation9 + $0x48] sm:$0xff]
        %v2297 = vld [vmem:[#allocation9 + $0x50] sm:$0xf]
        %v2298 = vld [vmem:[#allocation9 + $0x54] sm:$0xff]
        %v2299 = vld [vmem:[#allocation9 + $0x5c] sm:$0xf]
        %v2300 = vld [vmem:[#allocation9 + $0x60] sm:$0xff]
        %v2301 = vld [vmem:[#allocation9 + $0x68] sm:$0xf]
        %v2302 = vld [vmem:[#allocation9 + $0x6c] sm:$0xff]
        %v2303 = vld [vmem:[#allocation9 + $0x74] sm:$0xf]
        %v2304 = vld [vmem:[#allocation9 + $0x78] sm:$0xff]
        %v2305 = vld [vmem:[#allocation9 + $0x80] sm:$0xf]
        %v2306 = vld [vmem:[#allocation9 + $0x84] sm:$0xff]
        %v2307 = vld [vmem:[#allocation9 + $0x8c] sm:$0xf]
        %v2308 = vld [vmem:[#allocation9 + $0x90] sm:$0xff]
        %v2309 = vld [vmem:[#allocation9 + $0x98] sm:$0xf]
        %v2310 = vld [vmem:[#allocation9 + $0x9c] sm:$0xff]
        %v2311 = vld [vmem:[#allocation9 + $0xa4] sm:$0xf]
        %v2312 = vld [vmem:[#allocation9 + $0xa8] sm:$0xff]
        %v2313 = vld [vmem:[#allocation9 + $0xb0] sm:$0xf]
        %v2314 = vld [vmem:[#allocation9 + $0xb4] sm:$0xff]
        %v2315 = vld [vmem:[#allocation9 + $0xbc] sm:$0xf]
        %v2316 = vld [vmem:[#allocation9 + $0xc0] sm:$0xff]
        %v2317 = vld [vmem:[#allocation9 + $0xc8] sm:$0xf]
        %v2318 = vld [vmem:[#allocation9 + $0xcc] sm:$0xff]
        %v2319 = vld [vmem:[#allocation9 + $0xd4] sm:$0xf]
        %v2320 = vld [vmem:[#allocation9 + $0xd8] sm:$0xff]
        %v2321 = vld [vmem:[#allocation9 + $0xe0] sm:$0xf]
        %v2322 = vld [vmem:[#allocation9 + $0xe4] sm:$0xff]
        %v2323 = vld [vmem:[#allocation9 + $0xec] sm:$0xf]
        %v2324 = vld [vmem:[#allocation9 + $0xf0] sm:$0xff]
        %v2325 = vld [vmem:[#allocation9 + $0xf8] sm:$0xf]
        %v2326 = vld [vmem:[#allocation9 + $0xfc] sm:$0xff]
        %v2327 = vld [vmem:[#allocation9 + $0x104] sm:$0xf]
        %v2328 = vld [vmem:[#allocation9 + $0x108] sm:$0xff]
        %v2329 = vld [vmem:[#allocation9 + $0x110] sm:$0xf]
        %v2330 = vld [vmem:[#allocation9 + $0x114] sm:$0xff]
        %v2331 = vld [vmem:[#allocation9 + $0x11c] sm:$0xf]
        %v2332 = vld [vmem:[#allocation9 + $0x120] sm:$0xff]
        %v2333 = vld [vmem:[#allocation9 + $0x128] sm:$0xf]
        %v2334 = vld [vmem:[#allocation9 + $0x12c] sm:$0xff]
        %v2335 = vld [vmem:[#allocation9 + $0x134] sm:$0xf]
        %v2336 = vld [vmem:[#allocation9 + $0x138] sm:$0xff]
        %v2337 = vld [vmem:[#allocation9 + $0x140] sm:$0xf]
        %v2338 = vld [vmem:[#allocation9 + $0x144] sm:$0xff]
        %v2339 = vld [vmem:[#allocation9 + $0x14c] sm:$0xf]
        %v2340 = vld [vmem:[#allocation9 + $0x150] sm:$0xff]
        %v2341 = vld [vmem:[#allocation9 + $0x158] sm:$0xf]
        %v2342 = vld [vmem:[#allocation9 + $0x15c] sm:$0xff]
        %v2343 = vld [vmem:[#allocation9 + $0x164] sm:$0xf]
        %v2344 = vld [vmem:[#allocation9 + $0x168] sm:$0xff]
        %v2345 = vld [vmem:[#allocation9 + $0x170] sm:$0xf]
        %v2346 = vld [vmem:[#allocation9 + $0x174] sm:$0xff]
        %v2347 = vld [vmem:[#allocation9 + $0x17c] sm:$0xf]
        %v2348 = vld [vmem:[#allocation9 + $0x180] sm:$0xff]
        %v2349 = vld [vmem:[#allocation9 + $0x188] sm:$0xf]
        %v2350 = vld [vmem:[#allocation9 + $0x18c] sm:$0xff]
        %v2351 = vld [vmem:[#allocation9 + $0x194] sm:$0xf]
        %v2352 = vld [vmem:[#allocation9 + $0x198] sm:$0xff]
        %v2353 = vld [vmem:[#allocation9 + $0x1a0] sm:$0xf]
        %v2354 = vld [vmem:[#allocation9 + $0x1a4] sm:$0xff]
        %v2355 = vld [vmem:[#allocation9 + $0x1ac] sm:$0xf]
        %v2356 = vld [vmem:[#allocation9 + $0x1b0] sm:$0xff]
        %v2357 = vld [vmem:[#allocation9 + $0x1b8] sm:$0xf]
        %v2358 = vld [vmem:[#allocation9 + $0x1bc] sm:$0xff]
        %v2359 = vld [vmem:[#allocation9 + $0x1c4] sm:$0xf]
        %v2360 = vld [vmem:[#allocation9 + $0x1c8] sm:$0xff]
        %v2361 = vld [vmem:[#allocation9 + $0x1d0] sm:$0xf]
        %v2362 = vld [vmem:[#allocation9 + $0x1d4] sm:$0xff]
        %v2363 = vld [vmem:[#allocation9 + $0x1dc] sm:$0xf]
        %v2364 = vld [vmem:[#allocation9 + $0x1e0] sm:$0xff]
        %v2365 = vld [vmem:[#allocation9 + $0x1e8] sm:$0xf]
        %v2366 = vld [vmem:[#allocation9 + $0x1ec] sm:$0xff]
        %v2367 = vld [vmem:[#allocation9 + $0x1f4] sm:$0xf]
        %v2368 = vld [vmem:[#allocation9 + $0x1f8] sm:$0xff]
        %v2369 = vld [vmem:[#allocation9 + $0x200] sm:$0xf]
        %v2370 = vld [vmem:[#allocation9 + $0x204] sm:$0xff]
        %v2371 = vld [vmem:[#allocation9 + $0x20c] sm:$0xf]
        %v2372 = vld [vmem:[#allocation9 + $0x210] sm:$0xff]
        %v2373 = vld [vmem:[#allocation9 + $0x218] sm:$0xf]
        %v2374 = vld [vmem:[#allocation9 + $0x21c] sm:$0xff]
        %v2375 = vld [vmem:[#allocation9 + $0x224] sm:$0xf]
        %v2376 = vld [vmem:[#allocation9 + $0x228] sm:$0xff]
        %v2377 = vld [vmem:[#allocation9 + $0x230] sm:$0xf]
        %v2378 = vld [vmem:[#allocation9 + $0x234] sm:$0xff]
        %v2379 = vld [vmem:[#allocation9 + $0x23c] sm:$0xf]
        %v2380 = vld [vmem:[#allocation9 + $0x240] sm:$0xff]
        %v2381 = vld [vmem:[#allocation9 + $0x248] sm:$0xf]
        %v2382 = vld [vmem:[#allocation9 + $0x24c] sm:$0xff]
        %v2383 = vld [vmem:[#allocation9 + $0x254] sm:$0xf]
        %v2384 = vld [vmem:[#allocation9 + $0x258] sm:$0xff]
        %v2385 = vld [vmem:[#allocation9 + $0x260] sm:$0xf]
        %v2386 = vld [vmem:[#allocation9 + $0x264] sm:$0xff]
        %v2387 = vld [vmem:[#allocation9 + $0x26c] sm:$0xf]
        %v2388 = vld [vmem:[#allocation9 + $0x270] sm:$0xff]
        %v2389 = vld [vmem:[#allocation9 + $0x278] sm:$0xf]
        %v2390 = vld [vmem:[#allocation9 + $0x27c] sm:$0xff]
        %v2391 = vld [vmem:[#allocation9 + $0x284] sm:$0xf]
        %v2392 = vld [vmem:[#allocation9 + $0x288] sm:$0xff]
        %v2393 = vld [vmem:[#allocation9 + $0x290] sm:$0xf]
        %v2394 = vld [vmem:[#allocation9 + $0x294] sm:$0xff]
        %v2395 = vld [vmem:[#allocation9 + $0x29c] sm:$0xf]
        %v2396 = vld [vmem:[#allocation9 + $0x2a0] sm:$0xff]
        %v2397 = vld [vmem:[#allocation9 + $0x2a8] sm:$0xf]
        %v2398 = vld [vmem:[#allocation9 + $0x2ac] sm:$0xff]
        %v2399 = vld [vmem:[#allocation9 + $0x2b4] sm:$0xf]
        %v2400 = vld [vmem:[#allocation9 + $0x2b8] sm:$0xff]
        %v2401 = vld [vmem:[#allocation9 + $0x2c0] sm:$0xf]
        %v2402 = vld [vmem:[#allocation9 + $0x2c4] sm:$0xff]
        %v2403 = vld [vmem:[#allocation9 + $0x2cc] sm:$0xf]
        %v2404 = vld [vmem:[#allocation9 + $0x2d0] sm:$0xff]
        %v2405 = vld [vmem:[#allocation9 + $0x2d8] sm:$0xf]
        %v2406 = vld [vmem:[#allocation9 + $0x2dc] sm:$0xff]
        %v2407 = vld [vmem:[#allocation9 + $0x2e4] sm:$0xf]
        %v2408 = vld [vmem:[#allocation9 + $0x2e8] sm:$0xff]
        %v2409 = vld [vmem:[#allocation9 + $0x2f0] sm:$0xf]
        %v2410 = vld [vmem:[#allocation9 + $0x2f4] sm:$0xff]
        %v2411 = vld [vmem:[#allocation9 + $0x2fc] sm:$0xf]
        %v2412 = vld [vmem:[%s8] sm:$0x7]
        %v2414 = vlaneseq
        %v2415 = vshrl.u32 %v2414, 7
        %v2416 = vsub.s32 0, %v2415
        %v2417 = vrot.slane %v2412, %v2416
        %v2418 = vlaneseq
        %v2419 = vshrl.u32 %v2418, 7
        %v2420 = vsub.s32 1, %v2419
        %v2421 = vrot.slane %v2412, %v2420
        %v2422 = vlaneseq
        %v2423 = vshrl.u32 %v2422, 7
        %v2424 = vsub.s32 2, %v2423
        %v2425 = vrot.slane %v2412, %v2424
        %v2431 = vunpack.c.l.b16 %v2282
        %v2432 = vunpack.c.h.b16 %v2282
        %v2433 = vunpack.c.l.b16 %v2283
        %v2434 = vunpack.c.h.b16 %v2283
        %v2435 = vpack.c.b16 %v2431, %v2431
        %v2436 = vpack.c.b16 %v2432, %v2432
        %v2437 = vpack.c.b16 %v2433, %v2433
        %v2438 = vpack.c.b16 %v2434, %v2434
        %v2571 = vunpack.c.l.b16 %v2284
        %v2572 = vunpack.c.h.b16 %v2284
        %v2573 = vunpack.c.l.b16 %v2285
        %v2574 = vunpack.c.l.b16 %v2286
        %v2575 = vunpack.c.h.b16 %v2286
        %v2576 = vunpack.c.l.b16 %v2287
        %v2577 = vunpack.c.l.b16 %v2288
        %v2578 = vunpack.c.h.b16 %v2288
        %v2579 = vunpack.c.l.b16 %v2289
        %v2580 = vunpack.c.l.b16 %v2290
        %v2581 = vunpack.c.h.b16 %v2290
        %v2582 = vunpack.c.l.b16 %v2291
        %v2583 = vunpack.c.l.b16 %v2292
        %v2584 = vunpack.c.h.b16 %v2292
        %v2585 = vunpack.c.l.b16 %v2293
        %v2586 = vunpack.c.l.b16 %v2294
        %v2587 = vunpack.c.h.b16 %v2294
        %v2588 = vunpack.c.l.b16 %v2295
        %v2589 = vunpack.c.l.b16 %v2296
        %v2590 = vunpack.c.h.b16 %v2296
        %v2591 = vunpack.c.l.b16 %v2297
        %v2592 = vunpack.c.l.b16 %v2298
        %v2593 = vunpack.c.h.b16 %v2298
        %v2594 = vunpack.c.l.b16 %v2299
        %v2595 = vunpack.c.l.b16 %v2300
        %v2596 = vunpack.c.h.b16 %v2300
        %v2597 = vunpack.c.l.b16 %v2301
        %v2598 = vunpack.c.l.b16 %v2302
        %v2599 = vunpack.c.h.b16 %v2302
        %v2600 = vunpack.c.l.b16 %v2303
        %v2601 = vunpack.c.l.b16 %v2304
        %v2602 = vunpack.c.h.b16 %v2304
        %v2603 = vunpack.c.l.b16 %v2305
        %v2604 = vunpack.c.l.b16 %v2306
        %v2605 = vunpack.c.h.b16 %v2306
        %v2606 = vunpack.c.l.b16 %v2307
        %v2607 = vunpack.c.l.b16 %v2308
        %v2608 = vunpack.c.h.b16 %v2308
        %v2609 = vunpack.c.l.b16 %v2309
        %v2610 = vunpack.c.l.b16 %v2310
        %v2611 = vunpack.c.h.b16 %v2310
        %v2612 = vunpack.c.l.b16 %v2311
        %v2613 = vunpack.c.l.b16 %v2312
        %v2614 = vunpack.c.h.b16 %v2312
        %v2615 = vunpack.c.l.b16 %v2313
        %v2616 = vunpack.c.l.b16 %v2314
        %v2617 = vunpack.c.h.b16 %v2314
        %v2618 = vunpack.c.l.b16 %v2315
        %v2619 = vunpack.c.l.b16 %v2316
        %v2620 = vunpack.c.h.b16 %v2316
        %v2621 = vunpack.c.l.b16 %v2317
        %v2622 = vunpack.c.l.b16 %v2318
        %v2623 = vunpack.c.h.b16 %v2318
        %v2624 = vunpack.c.l.b16 %v2319
        %v2625 = vunpack.c.l.b16 %v2320
        %v2626 = vunpack.c.h.b16 %v2320
        %v2627 = vunpack.c.l.b16 %v2321
        %v2628 = vunpack.c.l.b16 %v2322
        %v2629 = vunpack.c.h.b16 %v2322
        %v2630 = vunpack.c.l.b16 %v2323
        %v2631 = vunpack.c.l.b16 %v2324
        %v2632 = vunpack.c.h.b16 %v2324
        %v2633 = vunpack.c.l.b16 %v2325
        %v2634 = vunpack.c.l.b16 %v2326
        %v2635 = vunpack.c.h.b16 %v2326
        %v2636 = vunpack.c.l.b16 %v2327
        %v2637 = vunpack.c.l.b16 %v2328
        %v2638 = vunpack.c.h.b16 %v2328
        %v2639 = vunpack.c.l.b16 %v2329
        %v2640 = vunpack.c.l.b16 %v2330
        %v2641 = vunpack.c.h.b16 %v2330
        %v2642 = vunpack.c.l.b16 %v2331
        %v2643 = vunpack.c.l.b16 %v2332
        %v2644 = vunpack.c.h.b16 %v2332
        %v2645 = vunpack.c.l.b16 %v2333
        %v2646 = vunpack.c.l.b16 %v2334
        %v2647 = vunpack.c.h.b16 %v2334
        %v2648 = vunpack.c.l.b16 %v2335
        %v2649 = vunpack.c.l.b16 %v2336
        %v2650 = vunpack.c.h.b16 %v2336
        %v2651 = vunpack.c.l.b16 %v2337
        %v2652 = vunpack.c.l.b16 %v2338
        %v2653 = vunpack.c.h.b16 %v2338
        %v2654 = vunpack.c.l.b16 %v2339
        %v2655 = vunpack.c.l.b16 %v2340
        %v2656 = vunpack.c.h.b16 %v2340
        %v2657 = vunpack.c.l.b16 %v2341
        %v2658 = vunpack.c.l.b16 %v2342
        %v2659 = vunpack.c.h.b16 %v2342
        %v2660 = vunpack.c.l.b16 %v2343
        %v2661 = vunpack.c.l.b16 %v2344
        %v2662 = vunpack.c.h.b16 %v2344
        %v2663 = vunpack.c.l.b16 %v2345
        %v2664 = vunpack.c.l.b16 %v2346
        %v2665 = vunpack.c.h.b16 %v2346
        %v2666 = vunpack.c.l.b16 %v2347
        %v2667 = vunpack.c.l.b16 %v2348
        %v2668 = vunpack.c.h.b16 %v2348
        %v2669 = vunpack.c.l.b16 %v2349
        %v2670 = vunpack.c.l.b16 %v2350
        %v2671 = vunpack.c.h.b16 %v2350
        %v2672 = vunpack.c.l.b16 %v2351
        %v2673 = vunpack.c.l.b16 %v2352
        %v2674 = vunpack.c.h.b16 %v2352
        %v2675 = vunpack.c.l.b16 %v2353
        %v2676 = vunpack.c.l.b16 %v2354
        %v2677 = vunpack.c.h.b16 %v2354
        %v2678 = vunpack.c.l.b16 %v2355
        %v2679 = vunpack.c.l.b16 %v2356
        %v2680 = vunpack.c.h.b16 %v2356
        %v2681 = vunpack.c.l.b16 %v2357
        %v2682 = vunpack.c.l.b16 %v2358
        %v2683 = vunpack.c.h.b16 %v2358
        %v2684 = vunpack.c.l.b16 %v2359
        %v2685 = vunpack.c.l.b16 %v2360
        %v2686 = vunpack.c.h.b16 %v2360
        %v2687 = vunpack.c.l.b16 %v2361
        %v2688 = vunpack.c.l.b16 %v2362
        %v2689 = vunpack.c.h.b16 %v2362
        %v2690 = vunpack.c.l.b16 %v2363
        %v2691 = vunpack.c.l.b16 %v2364
        %v2692 = vunpack.c.h.b16 %v2364
        %v2693 = vunpack.c.l.b16 %v2365
        %v2694 = vunpack.c.l.b16 %v2366
        %v2695 = vunpack.c.h.b16 %v2366
        %v2696 = vunpack.c.l.b16 %v2367
        %v2697 = vunpack.c.l.b16 %v2368
        %v2698 = vunpack.c.h.b16 %v2368
        %v2699 = vunpack.c.l.b16 %v2369
        %v2700 = vunpack.c.l.b16 %v2370
        %v2701 = vunpack.c.h.b16 %v2370
        %v2702 = vunpack.c.l.b16 %v2371
        %v2703 = vunpack.c.l.b16 %v2372
        %v2704 = vunpack.c.h.b16 %v2372
        %v2705 = vunpack.c.l.b16 %v2373
        %v2706 = vunpack.c.l.b16 %v2374
        %v2707 = vunpack.c.h.b16 %v2374
        %v2708 = vunpack.c.l.b16 %v2375
        %v2709 = vunpack.c.l.b16 %v2376
        %v2710 = vunpack.c.h.b16 %v2376
        %v2711 = vunpack.c.l.b16 %v2377
        %v2712 = vunpack.c.l.b16 %v2378
        %v2713 = vunpack.c.h.b16 %v2378
        %v2714 = vunpack.c.l.b16 %v2379
        %v2715 = vunpack.c.l.b16 %v2380
        %v2716 = vunpack.c.h.b16 %v2380
        %v2717 = vunpack.c.l.b16 %v2381
        %v2718 = vunpack.c.l.b16 %v2382
        %v2719 = vunpack.c.h.b16 %v2382
        %v2720 = vunpack.c.l.b16 %v2383
        %v2721 = vunpack.c.l.b16 %v2384
        %v2722 = vunpack.c.h.b16 %v2384
        %v2723 = vunpack.c.l.b16 %v2385
        %v2724 = vunpack.c.l.b16 %v2386
        %v2725 = vunpack.c.h.b16 %v2386
        %v2726 = vunpack.c.l.b16 %v2387
        %v2727 = vunpack.c.l.b16 %v2388
        %v2728 = vunpack.c.h.b16 %v2388
        %v2729 = vunpack.c.l.b16 %v2389
        %v2730 = vunpack.c.l.b16 %v2390
        %v2731 = vunpack.c.h.b16 %v2390
        %v2732 = vunpack.c.l.b16 %v2391
        %v2733 = vunpack.c.l.b16 %v2392
        %v2734 = vunpack.c.h.b16 %v2392
        %v2735 = vunpack.c.l.b16 %v2393
        %v2736 = vunpack.c.l.b16 %v2394
        %v2737 = vunpack.c.h.b16 %v2394
        %v2738 = vunpack.c.l.b16 %v2395
        %v2739 = vunpack.c.l.b16 %v2396
        %v2740 = vunpack.c.h.b16 %v2396
        %v2741 = vunpack.c.l.b16 %v2397
        %v2742 = vunpack.c.l.b16 %v2398
        %v2743 = vunpack.c.h.b16 %v2398
        %v2744 = vunpack.c.l.b16 %v2399
        %v2745 = vunpack.c.l.b16 %v2400
        %v2746 = vunpack.c.h.b16 %v2400
        %v2747 = vunpack.c.l.b16 %v2401
        %v2748 = vunpack.c.l.b16 %v2402
        %v2749 = vunpack.c.h.b16 %v2402
        %v2750 = vunpack.c.l.b16 %v2403
        %v2751 = vunpack.c.l.b16 %v2404
        %v2752 = vunpack.c.h.b16 %v2404
        %v2753 = vunpack.c.l.b16 %v2405
        %v2754 = vunpack.c.l.b16 %v2406
        %v2755 = vunpack.c.h.b16 %v2406
        %v2756 = vunpack.c.l.b16 %v2407
        %v2757 = vunpack.c.l.b16 %v2408
        %v2758 = vunpack.c.h.b16 %v2408
        %v2759 = vunpack.c.l.b16 %v2409
        %v2760 = vunpack.c.l.b16 %v2410
        %v2761 = vunpack.c.h.b16 %v2410
        %v2762 = vunpack.c.l.b16 %v2411
        %v2763 = vpack.c.b16 %v2574, %v2571
        %v2764 = vpack.c.b16 %v2575, %v2572
        %v2765 = vpack.c.b16 %v2576, %v2573
        %v2766 = vpack.c.b16 %v2580, %v2577
        %v2767 = vpack.c.b16 %v2581, %v2578
        %v2768 = vpack.c.b16 %v2582, %v2579
        %v2769 = vpack.c.b16 %v2586, %v2583
        %v2770 = vpack.c.b16 %v2587, %v2584
        %v2771 = vpack.c.b16 %v2588, %v2585
        %v2772 = vpack.c.b16 %v2592, %v2589
        %v2773 = vpack.c.b16 %v2593, %v2590
        %v2774 = vpack.c.b16 %v2594, %v2591
        %v2775 = vpack.c.b16 %v2598, %v2595
        %v2776 = vpack.c.b16 %v2599, %v2596
        %v2777 = vpack.c.b16 %v2600, %v2597
        %v2778 = vpack.c.b16 %v2604, %v2601
        %v2779 = vpack.c.b16 %v2605, %v2602
        %v2780 = vpack.c.b16 %v2606, %v2603
        %v2781 = vpack.c.b16 %v2610, %v2607
        %v2782 = vpack.c.b16 %v2611, %v2608
        %v2783 = vpack.c.b16 %v2612, %v2609
        %v2784 = vpack.c.b16 %v2616, %v2613
        %v2785 = vpack.c.b16 %v2617, %v2614
        %v2786 = vpack.c.b16 %v2618, %v2615
        %v2787 = vpack.c.b16 %v2622, %v2619
        %v2788 = vpack.c.b16 %v2623, %v2620
        %v2789 = vpack.c.b16 %v2624, %v2621
        %v2790 = vpack.c.b16 %v2628, %v2625
        %v2791 = vpack.c.b16 %v2629, %v2626
        %v2792 = vpack.c.b16 %v2630, %v2627
        %v2793 = vpack.c.b16 %v2634, %v2631
        %v2794 = vpack.c.b16 %v2635, %v2632
        %v2795 = vpack.c.b16 %v2636, %v2633
        %v2796 = vpack.c.b16 %v2640, %v2637
        %v2797 = vpack.c.b16 %v2641, %v2638
        %v2798 = vpack.c.b16 %v2642, %v2639
        %v2799 = vpack.c.b16 %v2646, %v2643
        %v2800 = vpack.c.b16 %v2647, %v2644
        %v2801 = vpack.c.b16 %v2648, %v2645
        %v2802 = vpack.c.b16 %v2652, %v2649
        %v2803 = vpack.c.b16 %v2653, %v2650
        %v2804 = vpack.c.b16 %v2654, %v2651
        %v2805 = vpack.c.b16 %v2658, %v2655
        %v2806 = vpack.c.b16 %v2659, %v2656
        %v2807 = vpack.c.b16 %v2660, %v2657
        %v2808 = vpack.c.b16 %v2664, %v2661
        %v2809 = vpack.c.b16 %v2665, %v2662
        %v2810 = vpack.c.b16 %v2666, %v2663
        %v2811 = vpack.c.b16 %v2670, %v2667
        %v2812 = vpack.c.b16 %v2671, %v2668
        %v2813 = vpack.c.b16 %v2672, %v2669
        %v2814 = vpack.c.b16 %v2676, %v2673
        %v2815 = vpack.c.b16 %v2677, %v2674
        %v2816 = vpack.c.b16 %v2678, %v2675
        %v2817 = vpack.c.b16 %v2682, %v2679
        %v2818 = vpack.c.b16 %v2683, %v2680
        %v2819 = vpack.c.b16 %v2684, %v2681
        %v2820 = vpack.c.b16 %v2688, %v2685
        %v2821 = vpack.c.b16 %v2689, %v2686
        %v2822 = vpack.c.b16 %v2690, %v2687
        %v2823 = vpack.c.b16 %v2694, %v2691
        %v2824 = vpack.c.b16 %v2695, %v2692
        %v2825 = vpack.c.b16 %v2696, %v2693
        %v2826 = vpack.c.b16 %v2700, %v2697
        %v2827 = vpack.c.b16 %v2701, %v2698
        %v2828 = vpack.c.b16 %v2702, %v2699
        %v2829 = vpack.c.b16 %v2706, %v2703
        %v2830 = vpack.c.b16 %v2707, %v2704
        %v2831 = vpack.c.b16 %v2708, %v2705
        %v2832 = vpack.c.b16 %v2712, %v2709
        %v2833 = vpack.c.b16 %v2713, %v2710
        %v2834 = vpack.c.b16 %v2714, %v2711
        %v2835 = vpack.c.b16 %v2718, %v2715
        %v2836 = vpack.c.b16 %v2719, %v2716
        %v2837 = vpack.c.b16 %v2720, %v2717
        %v2838 = vpack.c.b16 %v2724, %v2721
        %v2839 = vpack.c.b16 %v2725, %v2722
        %v2840 = vpack.c.b16 %v2726, %v2723
        %v2841 = vpack.c.b16 %v2730, %v2727
        %v2842 = vpack.c.b16 %v2731, %v2728
        %v2843 = vpack.c.b16 %v2732, %v2729
        %v2844 = vpack.c.b16 %v2736, %v2733
        %v2845 = vpack.c.b16 %v2737, %v2734
        %v2846 = vpack.c.b16 %v2738, %v2735
        %v2847 = vpack.c.b16 %v2742, %v2739
        %v2848 = vpack.c.b16 %v2743, %v2740
        %v2849 = vpack.c.b16 %v2744, %v2741
        %v2850 = vpack.c.b16 %v2748, %v2745
        %v2851 = vpack.c.b16 %v2749, %v2746
        %v2852 = vpack.c.b16 %v2750, %v2747
        %v2853 = vpack.c.b16 %v2754, %v2751
        %v2854 = vpack.c.b16 %v2755, %v2752
        %v2855 = vpack.c.b16 %v2756, %v2753
        %v2856 = vpack.c.b16 %v2760, %v2757
        %v2857 = vpack.c.b16 %v2761, %v2758
        %v2858 = vpack.c.b16 %v2762, %v2759
        %2955 = vmatprep.subr.bf16.mxu0 %v2785
        %2956 = vmatpush1.bf16.msra.mxu0 %v2784
        %2957 = vmatprep.subr.bf16.mxu0 %v2782
        %2958 = vmatpush1.bf16.msra.mxu0 %v2781
        %2959 = vmatprep.subr.bf16.mxu0 %v2779
        %2960 = vmatpush1.bf16.msra.mxu0 %v2778
        %2961 = vmatprep.subr.bf16.mxu0 %v2776
        %2962 = vmatpush1.bf16.msra.mxu0 %v2775
        %2963 = vmatprep.subr.bf16.mxu0 %v2773
        %2964 = vmatpush1.bf16.msra.mxu0 %v2772
        %2965 = vmatprep.subr.bf16.mxu0 %v2770
        %2966 = vmatpush1.bf16.msra.mxu0 %v2769
        %2967 = vmatprep.subr.bf16.mxu0 %v2767
        %2968 = vmatpush1.bf16.msra.mxu0 %v2766
        %2969 = vmatprep.subr.bf16.mxu0 %v2764
        %2970 = vmatpush1.bf16.msra.mxu0 %v2763
        %2971 = vmatprep.subr.bf16.mxu0 %v2809
        %2972 = vmatpush2.bf16.msra.mxu0 %v2808
        %2973 = vmatprep.subr.bf16.mxu0 %v2806
        %2974 = vmatpush2.bf16.msra.mxu0 %v2805
        %2975 = vmatprep.subr.bf16.mxu0 %v2803
        %2976 = vmatpush2.bf16.msra.mxu0 %v2802
        %2977 = vmatprep.subr.bf16.mxu0 %v2800
        %2978 = vmatpush2.bf16.msra.mxu0 %v2799
        %2979 = vmatprep.subr.bf16.mxu0 %v2797
        %2980 = vmatpush2.bf16.msra.mxu0 %v2796
        %2981 = vmatprep.subr.bf16.mxu0 %v2794
        %2982 = vmatpush2.bf16.msra.mxu0 %v2793
        %2983 = vmatprep.subr.bf16.mxu0 %v2791
        %2984 = vmatpush2.bf16.msra.mxu0 %v2790
        %2985 = vmatprep.subr.bf16.mxu0 %v2788
        %2986 = vmatpush2.bf16.msra.mxu0 %v2787
        %2987 = vmatprep.mubr.bf16.mxu0 %v2436
        %2988 = vmatmul.mubr.bf16.gmra.mxu0 %v2435
        %v2989 = vpop.f32.mrf.mxu0
        %v2990 = vadd.f32 %v2417, %v2989
        %v2991 = vpop.f32.mrf.mxu0
        %v2992 = vadd.f32 %v2421, %v2991
        %v2993 = vpop.f32.mrf.mxu0
        %v2994 = vpop.f32.mrf.mxu0
        %2995 = vdwg.mxu0
        %2996 = vmatprep.subr.bf16.mxu0 %v2833
        %2997 = vmatpush1.bf16.msra.mxu0 %v2832
        %2998 = vmatprep.subr.bf16.mxu0 %v2830
        %2999 = vmatpush1.bf16.msra.mxu0 %v2829
        %3000 = vmatprep.subr.bf16.mxu0 %v2827
        %3001 = vmatpush1.bf16.msra.mxu0 %v2826
        %3002 = vmatprep.subr.bf16.mxu0 %v2824
        %3003 = vmatpush1.bf16.msra.mxu0 %v2823
        %3004 = vmatprep.subr.bf16.mxu0 %v2821
        %3005 = vmatpush1.bf16.msra.mxu0 %v2820
        %3006 = vmatprep.subr.bf16.mxu0 %v2818
        %3007 = vmatpush1.bf16.msra.mxu0 %v2817
        %3008 = vmatprep.subr.bf16.mxu0 %v2815
        %3009 = vmatpush1.bf16.msra.mxu0 %v2814
        %3010 = vmatprep.subr.bf16.mxu0 %v2812
        %3011 = vmatpush1.bf16.msra.mxu0 %v2811
        %3012 = vmatprep.subr.bf16.mxu0 %v2857
        %3013 = vmatpush2.bf16.msra.mxu0 %v2856
        %3014 = vmatprep.subr.bf16.mxu0 %v2854
        %3015 = vmatpush2.bf16.msra.mxu0 %v2853
        %3016 = vmatprep.subr.bf16.mxu0 %v2851
        %3017 = vmatpush2.bf16.msra.mxu0 %v2850
        %3018 = vmatprep.subr.bf16.mxu0 %v2848
        %3019 = vmatpush2.bf16.msra.mxu0 %v2847
        %3020 = vmatprep.subr.bf16.mxu0 %v2845
        %3021 = vmatpush2.bf16.msra.mxu0 %v2844
        %3022 = vmatprep.subr.bf16.mxu0 %v2842
        %3023 = vmatpush2.bf16.msra.mxu0 %v2841
        %3024 = vmatprep.subr.bf16.mxu0 %v2839
        %3025 = vmatpush2.bf16.msra.mxu0 %v2838
        %3026 = vmatprep.subr.bf16.mxu0 %v2836
        %3027 = vmatpush2.bf16.msra.mxu0 %v2835
        %3028 = vmatprep.mubr.bf16.mxu0 %v2438
        %3029 = vmatmul.mubr.bf16.gmra.mxu0 %v2437
        %v3030 = vpop.f32.mrf.mxu0
        %v3031 = vadd.f32 %v2990, %v3030
        %v3032 = vpop.f32.mrf.mxu0
        %v3033 = vadd.f32 %v2992, %v3032
        %v3034 = vpop.f32.mrf.mxu0
        %v3035 = vpop.f32.mrf.mxu0
        %3036 = vdwg.mxu0
        %3037 = vmatprep.subr.bf16.mxu0 0
        %3038 = vmatpush1.bf16.msra.mxu0 %v2786
        %3039 = vmatprep.subr.bf16.mxu0 0
        %3040 = vmatpush1.bf16.msra.mxu0 %v2783
        %3041 = vmatprep.subr.bf16.mxu0 0
        %3042 = vmatpush1.bf16.msra.mxu0 %v2780
        %3043 = vmatprep.subr.bf16.mxu0 0
        %3044 = vmatpush1.bf16.msra.mxu0 %v2777
        %3045 = vmatprep.subr.bf16.mxu0 0
        %3046 = vmatpush1.bf16.msra.mxu0 %v2774
        %3047 = vmatprep.subr.bf16.mxu0 0
        %3048 = vmatpush1.bf16.msra.mxu0 %v2771
        %3049 = vmatprep.subr.bf16.mxu0 0
        %3050 = vmatpush1.bf16.msra.mxu0 %v2768
        %3051 = vmatprep.subr.bf16.mxu0 0
        %3052 = vmatpush1.bf16.msra.mxu0 %v2765
        %3053 = vmatprep.subr.bf16.mxu0 0
        %3054 = vmatpush2.bf16.msra.mxu0 %v2810
        %3055 = vmatprep.subr.bf16.mxu0 0
        %3056 = vmatpush2.bf16.msra.mxu0 %v2807
        %3057 = vmatprep.subr.bf16.mxu0 0
        %3058 = vmatpush2.bf16.msra.mxu0 %v2804
        %3059 = vmatprep.subr.bf16.mxu0 0
        %3060 = vmatpush2.bf16.msra.mxu0 %v2801
        %3061 = vmatprep.subr.bf16.mxu0 0
        %3062 = vmatpush2.bf16.msra.mxu0 %v2798
        %3063 = vmatprep.subr.bf16.mxu0 0
        %3064 = vmatpush2.bf16.msra.mxu0 %v2795
        %3065 = vmatprep.subr.bf16.mxu0 0
        %3066 = vmatpush2.bf16.msra.mxu0 %v2792
        %3067 = vmatprep.subr.bf16.mxu0 0
        %3068 = vmatpush2.bf16.msra.mxu0 %v2789
        %3069 = vmatprep.mubr.bf16.mxu0 %v2436
        %3070 = vmatmul.mubr.bf16.gmra.mxu0 %v2435
        %v3071 = vpop.f32.mrf.mxu0
        %v3072 = vadd.f32 %v2425, %v3071
        %v3073 = vpop.f32.mrf.mxu0
        %v3074 = vpop.f32.mrf.mxu0
        %v3075 = vpop.f32.mrf.mxu0
        %3076 = vdwg.mxu0
        %3077 = vmatprep.subr.bf16.mxu0 0
        %3078 = vmatpush1.bf16.msra.mxu0 %v2834
        %3079 = vmatprep.subr.bf16.mxu0 0
        %3080 = vmatpush1.bf16.msra.mxu0 %v2831
        %3081 = vmatprep.subr.bf16.mxu0 0
        %3082 = vmatpush1.bf16.msra.mxu0 %v2828
        %3083 = vmatprep.subr.bf16.mxu0 0
        %3084 = vmatpush1.bf16.msra.mxu0 %v2825
        %3085 = vmatprep.subr.bf16.mxu0 0
        %3086 = vmatpush1.bf16.msra.mxu0 %v2822
        %3087 = vmatprep.subr.bf16.mxu0 0
        %3088 = vmatpush1.bf16.msra.mxu0 %v2819
        %3089 = vmatprep.subr.bf16.mxu0 0
        %3090 = vmatpush1.bf16.msra.mxu0 %v2816
        %3091 = vmatprep.subr.bf16.mxu0 0
        %3092 = vmatpush1.bf16.msra.mxu0 %v2813
        %3093 = vmatprep.subr.bf16.mxu0 0
        %3094 = vmatpush2.bf16.msra.mxu0 %v2858
        %3095 = vmatprep.subr.bf16.mxu0 0
        %3096 = vmatpush2.bf16.msra.mxu0 %v2855
        %3097 = vmatprep.subr.bf16.mxu0 0
        %3098 = vmatpush2.bf16.msra.mxu0 %v2852
        %3099 = vmatprep.subr.bf16.mxu0 0
        %3100 = vmatpush2.bf16.msra.mxu0 %v2849
        %3101 = vmatprep.subr.bf16.mxu0 0
        %3102 = vmatpush2.bf16.msra.mxu0 %v2846
        %3103 = vmatprep.subr.bf16.mxu0 0
        %3104 = vmatpush2.bf16.msra.mxu0 %v2843
        %3105 = vmatprep.subr.bf16.mxu0 0
        %3106 = vmatpush2.bf16.msra.mxu0 %v2840
        %3107 = vmatprep.subr.bf16.mxu0 0
        %3108 = vmatpush2.bf16.msra.mxu0 %v2837
        %3109 = vmatprep.mubr.bf16.mxu0 %v2438
        %3110 = vmatmul.mubr.bf16.gmra.mxu0 %v2437
        %v3111 = vpop.f32.mrf.mxu0
        %v3112 = vadd.f32 %v3072, %v3111
        %v3113 = vpop.f32.mrf.mxu0
        %v3114 = vpop.f32.mrf.mxu0
        %v3115 = vpop.f32.mrf.mxu0
        %3116 = vdwg.mxu0
        %v3117 = vadd.f32 %v3031, %v3033
        %vm3118 = vcmask 523264
        %v3119 = vsel %vm3118, %v3112, 0.0
        %v3120 = vadd.f32 %v3117, %v3119
        %3121 = vadd.xlane.f32.xlu0 %v3120
        %v3122 = vpop.xlane.xlu0 %3121
        %v3123 = vrcp.pop 320.0
        %v3124 = vmul.f32 %v3122, %v3123
        %v3125 = vsub.f32 %v3031, %v3124
        %v3126 = vsub.f32 %v3033, %v3124
        %v3127 = vsub.f32 %v3112, %v3124
        %v3128 = vmul.f32 %v3125, %v3125
        %v3129 = vmul.f32 %v3126, %v3126
        %v3130 = vmul.f32 %v3127, %v3127
        %v3131 = vadd.f32 %v3128, %v3129
        %v3132 = vsel %vm3118, %v3130, 0.0
        %v3133 = vadd.f32 %v3131, %v3132
        %3134 = vadd.xlane.f32.xlu0 %v3133
        %v3135 = vpop.xlane.xlu0 %3134
        %v3136 = vmul.f32 %v3135, %v3123
        %v3137 = vadd.f32 %v3136, 1e-05
        %v3138 = vrsqrt.pop %v3137
        %v3139 = vmul.f32 %v3125, %v3138
        %v3140 = vmul.f32 %v3126, %v3138
        %v3141 = vmul.f32 %v3127, %v3138
        %v3142 = vld [vmem:[%s9] sm:$0x7]
        %v3144 = vlaneseq
        %v3145 = vshrl.u32 %v3144, 7
        %v3146 = vsub.s32 0, %v3145
        %v3147 = vrot.slane %v3142, %v3146
        %v3148 = vlaneseq
        %v3149 = vshrl.u32 %v3148, 7
        %v3150 = vsub.s32 1, %v3149
        %v3151 = vrot.slane %v3142, %v3150
        %v3152 = vlaneseq
        %v3153 = vshrl.u32 %v3152, 7
        %v3154 = vsub.s32 2, %v3153
        %v3155 = vrot.slane %v3142, %v3154
        %v3159 = vmul.f32 %v3139, %v3147
        %v3160 = vmul.f32 %v3140, %v3151
        %v3161 = vmul.f32 %v3141, %v3155
        %v3162 = vld [vmem:[%s10] sm:$0x7]
        %v3164 = vlaneseq
        %v3165 = vshrl.u32 %v3164, 7
        %v3166 = vsub.s32 0, %v3165
        %v3167 = vrot.slane %v3162, %v3166
        %v3168 = vlaneseq
        %v3169 = vshrl.u32 %v3168, 7
        %v3170 = vsub.s32 1, %v3169
        %v3171 = vrot.slane %v3162, %v3170
        %v3172 = vlaneseq
        %v3173 = vshrl.u32 %v3172, 7
        %v3174 = vsub.s32 2, %v3173
        %v3175 = vrot.slane %v3162, %v3174
        %v3179 = vadd.f32 %v3159, %v3167
        %v3180 = vadd.f32 %v3160, %v3171
        %v3181 = vadd.f32 %v3161, %v3175
        %v3182 = vpack.c.bf16 %v3179, %v3179
        %v3183 = vpack.c.bf16 %v3180, %v3180
        %v3184 = vpack.c.bf16 %v3181, %v3181
        %v3186 = vsel %vm3118, %v3184, 0
        %3188 = vmatprep.subr.bf16.mxu0 0
        %3189 = vmatpush1.bf16.xpose.msra.mxu0 0
        %3190 = vmatprep.subr.bf16.mxu0 0
        %3191 = vmatpush1.bf16.xpose.msra.mxu0 0
        %3192 = vmatprep.subr.bf16.mxu0 0
        %3193 = vmatpush1.bf16.xpose.msra.mxu0 0
        %3194 = vmatprep.subr.bf16.mxu0 0
        %3195 = vmatpush1.bf16.xpose.msra.mxu0 0
        %3196 = vmatprep.subr.bf16.mxu0 0
        %3197 = vmatpush1.bf16.xpose.msra.mxu0 0
        %3198 = vmatprep.subr.bf16.mxu0 0
        %3199 = vmatpush1.bf16.xpose.msra.mxu0 0
        %3200 = vmatprep.subr.bf16.mxu0 0
        %3201 = vmatpush1.bf16.xpose.msra.mxu0 0
        %3202 = vmatprep.subr.bf16.mxu0 %v3183
        %3203 = vmatpush1.bf16.xpose.msra.mxu0 %v3182
        %3204 = vmatprep.subr.bf16.mxu0 0
        %3205 = vmatpush2.bf16.xpose.msra.mxu0 0
        %3206 = vmatprep.subr.bf16.mxu0 0
        %3207 = vmatpush2.bf16.xpose.msra.mxu0 0
        %3208 = vmatprep.subr.bf16.mxu0 0
        %3209 = vmatpush2.bf16.xpose.msra.mxu0 0
        %3210 = vmatprep.subr.bf16.mxu0 0
        %3211 = vmatpush2.bf16.xpose.msra.mxu0 0
        %3212 = vmatprep.subr.bf16.mxu0 0
        %3213 = vmatpush2.bf16.xpose.msra.mxu0 0
        %3214 = vmatprep.subr.bf16.mxu0 0
        %3215 = vmatpush2.bf16.xpose.msra.mxu0 0
        %3216 = vmatprep.subr.bf16.mxu0 0
        %3217 = vmatpush2.bf16.xpose.msra.mxu0 0
        %3218 = vmatprep.subr.bf16.mxu0 0
        %3219 = vmatpush2.bf16.xpose.msra.mxu0 0
        %3220 = vmatprep.mubr.bf16.mxu0 %v3183
        %3221 = vmatmul.mubr.bf16.gmra.mxu0 %v3182
        %v3222 = vpop.f32.mrf.mxu0
        %v3223 = vadd.f32 0.0, %v3222
        %v3224 = vpop.f32.mrf.mxu0
        %v3225 = vpop.f32.mrf.mxu0
        %v3226 = vpop.f32.mrf.mxu0
        %3227 = vdwg.mxu0
        %3228 = vmatprep.subr.bf16.mxu0 0
        %3229 = vmatpush1.bf16.xpose.msra.mxu0 0
        %3230 = vmatprep.subr.bf16.mxu0 0
        %3231 = vmatpush1.bf16.xpose.msra.mxu0 0
        %3232 = vmatprep.subr.bf16.mxu0 0
        %3233 = vmatpush1.bf16.xpose.msra.mxu0 0
        %3234 = vmatprep.subr.bf16.mxu0 0
        %3235 = vmatpush1.bf16.xpose.msra.mxu0 0
        %3236 = vmatprep.subr.bf16.mxu0 0
        %3237 = vmatpush1.bf16.xpose.msra.mxu0 0
        %3238 = vmatprep.subr.bf16.mxu0 0
        %3239 = vmatpush1.bf16.xpose.msra.mxu0 0
        %3240 = vmatprep.subr.bf16.mxu0 0
        %3241 = vmatpush1.bf16.xpose.msra.mxu0 0
        %3242 = vmatprep.subr.bf16.mxu0 0
        %3243 = vmatpush1.bf16.xpose.msra.mxu0 %v3186
        %3244 = vmatprep.subr.bf16.mxu0 0
        %3245 = vmatpush2.bf16.xpose.msra.mxu0 0
        %3246 = vmatprep.subr.bf16.mxu0 0
        %3247 = vmatpush2.bf16.xpose.msra.mxu0 0
        %3248 = vmatprep.subr.bf16.mxu0 0
        %3249 = vmatpush2.bf16.xpose.msra.mxu0 0
        %3250 = vmatprep.subr.bf16.mxu0 0
        %3251 = vmatpush2.bf16.xpose.msra.mxu0 0
        %3252 = vmatprep.subr.bf16.mxu0 0
        %3253 = vmatpush2.bf16.xpose.msra.mxu0 0
        %3254 = vmatprep.subr.bf16.mxu0 0
        %3255 = vmatpush2.bf16.xpose.msra.mxu0 0
        %3256 = vmatprep.subr.bf16.mxu0 0
        %3257 = vmatpush2.bf16.xpose.msra.mxu0 0
        %3258 = vmatprep.subr.bf16.mxu0 0
        %3259 = vmatpush2.bf16.xpose.msra.mxu0 0
        %3260 = vmatprep.mubr.bf16.mxu0 0
        %3261 = vmatmul.mubr.bf16.gmra.mxu0 %v3186
        %v3262 = vpop.f32.mrf.mxu0
        %v3263 = vadd.f32 %v3223, %v3262
        %v3264 = vpop.f32.mrf.mxu0
        %v3265 = vpop.f32.mrf.mxu0
        %v3266 = vpop.f32.mrf.mxu0
        %3267 = vdwg.mxu0
        %3268 = vst.msk [vmem:[%s717] sm:$0xff] %vm1450, %v3263
        %v3269 = vld [vmem:[#allocation3 + $0x10] sm:$0xff]
        %v3270 = vld [vmem:[#allocation3 + $0x18] sm:$0xff]
        %v3271 = vld [vmem:[#allocation11] sm:$0xff]
        %v3272 = vld [vmem:[#allocation11 + $0x8] sm:$0xf]
        %v3273 = vld [vmem:[#allocation11 + $0xc] sm:$0xff]
        %v3274 = vld [vmem:[#allocation11 + $0x14] sm:$0xf]
        %v3275 = vld [vmem:[#allocation11 + $0x18] sm:$0xff]
        %v3276 = vld [vmem:[#allocation11 + $0x20] sm:$0xf]
        %v3277 = vld [vmem:[#allocation11 + $0x24] sm:$0xff]
        %v3278 = vld [vmem:[#allocation11 + $0x2c] sm:$0xf]
        %v3279 = vld [vmem:[#allocation11 + $0x30] sm:$0xff]
        %v3280 = vld [vmem:[#allocation11 + $0x38] sm:$0xf]
        %v3281 = vld [vmem:[#allocation11 + $0x3c] sm:$0xff]
        %v3282 = vld [vmem:[#allocation11 + $0x44] sm:$0xf]
        %v3283 = vld [vmem:[#allocation11 + $0x48] sm:$0xff]
        %v3284 = vld [vmem:[#allocation11 + $0x50] sm:$0xf]
        %v3285 = vld [vmem:[#allocation11 + $0x54] sm:$0xff]
        %v3286 = vld [vmem:[#allocation11 + $0x5c] sm:$0xf]
        %v3287 = vld [vmem:[#allocation11 + $0x60] sm:$0xff]
        %v3288 = vld [vmem:[#allocation11 + $0x68] sm:$0xf]
        %v3289 = vld [vmem:[#allocation11 + $0x6c] sm:$0xff]
        %v3290 = vld [vmem:[#allocation11 + $0x74] sm:$0xf]
        %v3291 = vld [vmem:[#allocation11 + $0x78] sm:$0xff]
        %v3292 = vld [vmem:[#allocation11 + $0x80] sm:$0xf]
        %v3293 = vld [vmem:[#allocation11 + $0x84] sm:$0xff]
        %v3294 = vld [vmem:[#allocation11 + $0x8c] sm:$0xf]
        %v3295 = vld [vmem:[#allocation11 + $0x90] sm:$0xff]
        %v3296 = vld [vmem:[#allocation11 + $0x98] sm:$0xf]
        %v3297 = vld [vmem:[#allocation11 + $0x9c] sm:$0xff]
        %v3298 = vld [vmem:[#allocation11 + $0xa4] sm:$0xf]
        %v3299 = vld [vmem:[#allocation11 + $0xa8] sm:$0xff]
        %v3300 = vld [vmem:[#allocation11 + $0xb0] sm:$0xf]
        %v3301 = vld [vmem:[#allocation11 + $0xb4] sm:$0xff]
        %v3302 = vld [vmem:[#allocation11 + $0xbc] sm:$0xf]
        %v3303 = vld [vmem:[#allocation11 + $0xc0] sm:$0xff]
        %v3304 = vld [vmem:[#allocation11 + $0xc8] sm:$0xf]
        %v3305 = vld [vmem:[#allocation11 + $0xcc] sm:$0xff]
        %v3306 = vld [vmem:[#allocation11 + $0xd4] sm:$0xf]
        %v3307 = vld [vmem:[#allocation11 + $0xd8] sm:$0xff]
        %v3308 = vld [vmem:[#allocation11 + $0xe0] sm:$0xf]
        %v3309 = vld [vmem:[#allocation11 + $0xe4] sm:$0xff]
        %v3310 = vld [vmem:[#allocation11 + $0xec] sm:$0xf]
        %v3311 = vld [vmem:[#allocation11 + $0xf0] sm:$0xff]
        %v3312 = vld [vmem:[#allocation11 + $0xf8] sm:$0xf]
        %v3313 = vld [vmem:[#allocation11 + $0xfc] sm:$0xff]
        %v3314 = vld [vmem:[#allocation11 + $0x104] sm:$0xf]
        %v3315 = vld [vmem:[#allocation11 + $0x108] sm:$0xff]
        %v3316 = vld [vmem:[#allocation11 + $0x110] sm:$0xf]
        %v3317 = vld [vmem:[#allocation11 + $0x114] sm:$0xff]
        %v3318 = vld [vmem:[#allocation11 + $0x11c] sm:$0xf]
        %v3319 = vld [vmem:[#allocation11 + $0x120] sm:$0xff]
        %v3320 = vld [vmem:[#allocation11 + $0x128] sm:$0xf]
        %v3321 = vld [vmem:[#allocation11 + $0x12c] sm:$0xff]
        %v3322 = vld [vmem:[#allocation11 + $0x134] sm:$0xf]
        %v3323 = vld [vmem:[#allocation11 + $0x138] sm:$0xff]
        %v3324 = vld [vmem:[#allocation11 + $0x140] sm:$0xf]
        %v3325 = vld [vmem:[#allocation11 + $0x144] sm:$0xff]
        %v3326 = vld [vmem:[#allocation11 + $0x14c] sm:$0xf]
        %v3327 = vld [vmem:[#allocation11 + $0x150] sm:$0xff]
        %v3328 = vld [vmem:[#allocation11 + $0x158] sm:$0xf]
        %v3329 = vld [vmem:[#allocation11 + $0x15c] sm:$0xff]
        %v3330 = vld [vmem:[#allocation11 + $0x164] sm:$0xf]
        %v3331 = vld [vmem:[#allocation11 + $0x168] sm:$0xff]
        %v3332 = vld [vmem:[#allocation11 + $0x170] sm:$0xf]
        %v3333 = vld [vmem:[#allocation11 + $0x174] sm:$0xff]
        %v3334 = vld [vmem:[#allocation11 + $0x17c] sm:$0xf]
        %v3335 = vld [vmem:[#allocation11 + $0x180] sm:$0xff]
        %v3336 = vld [vmem:[#allocation11 + $0x188] sm:$0xf]
        %v3337 = vld [vmem:[#allocation11 + $0x18c] sm:$0xff]
        %v3338 = vld [vmem:[#allocation11 + $0x194] sm:$0xf]
        %v3339 = vld [vmem:[#allocation11 + $0x198] sm:$0xff]
        %v3340 = vld [vmem:[#allocation11 + $0x1a0] sm:$0xf]
        %v3341 = vld [vmem:[#allocation11 + $0x1a4] sm:$0xff]
        %v3342 = vld [vmem:[#allocation11 + $0x1ac] sm:$0xf]
        %v3343 = vld [vmem:[#allocation11 + $0x1b0] sm:$0xff]
        %v3344 = vld [vmem:[#allocation11 + $0x1b8] sm:$0xf]
        %v3345 = vld [vmem:[#allocation11 + $0x1bc] sm:$0xff]
        %v3346 = vld [vmem:[#allocation11 + $0x1c4] sm:$0xf]
        %v3347 = vld [vmem:[#allocation11 + $0x1c8] sm:$0xff]
        %v3348 = vld [vmem:[#allocation11 + $0x1d0] sm:$0xf]
        %v3349 = vld [vmem:[#allocation11 + $0x1d4] sm:$0xff]
        %v3350 = vld [vmem:[#allocation11 + $0x1dc] sm:$0xf]
        %v3351 = vld [vmem:[#allocation11 + $0x1e0] sm:$0xff]
        %v3352 = vld [vmem:[#allocation11 + $0x1e8] sm:$0xf]
        %v3353 = vld [vmem:[#allocation11 + $0x1ec] sm:$0xff]
        %v3354 = vld [vmem:[#allocation11 + $0x1f4] sm:$0xf]
        %v3355 = vld [vmem:[#allocation11 + $0x1f8] sm:$0xff]
        %v3356 = vld [vmem:[#allocation11 + $0x200] sm:$0xf]
        %v3357 = vld [vmem:[#allocation11 + $0x204] sm:$0xff]
        %v3358 = vld [vmem:[#allocation11 + $0x20c] sm:$0xf]
        %v3359 = vld [vmem:[#allocation11 + $0x210] sm:$0xff]
        %v3360 = vld [vmem:[#allocation11 + $0x218] sm:$0xf]
        %v3361 = vld [vmem:[#allocation11 + $0x21c] sm:$0xff]
        %v3362 = vld [vmem:[#allocation11 + $0x224] sm:$0xf]
        %v3363 = vld [vmem:[#allocation11 + $0x228] sm:$0xff]
        %v3364 = vld [vmem:[#allocation11 + $0x230] sm:$0xf]
        %v3365 = vld [vmem:[#allocation11 + $0x234] sm:$0xff]
        %v3366 = vld [vmem:[#allocation11 + $0x23c] sm:$0xf]
        %v3367 = vld [vmem:[#allocation11 + $0x240] sm:$0xff]
        %v3368 = vld [vmem:[#allocation11 + $0x248] sm:$0xf]
        %v3369 = vld [vmem:[#allocation11 + $0x24c] sm:$0xff]
        %v3370 = vld [vmem:[#allocation11 + $0x254] sm:$0xf]
        %v3371 = vld [vmem:[#allocation11 + $0x258] sm:$0xff]
        %v3372 = vld [vmem:[#allocation11 + $0x260] sm:$0xf]
        %v3373 = vld [vmem:[#allocation11 + $0x264] sm:$0xff]
        %v3374 = vld [vmem:[#allocation11 + $0x26c] sm:$0xf]
        %v3375 = vld [vmem:[#allocation11 + $0x270] sm:$0xff]
        %v3376 = vld [vmem:[#allocation11 + $0x278] sm:$0xf]
        %v3377 = vld [vmem:[#allocation11 + $0x27c] sm:$0xff]
        %v3378 = vld [vmem:[#allocation11 + $0x284] sm:$0xf]
        %v3379 = vld [vmem:[#allocation11 + $0x288] sm:$0xff]
        %v3380 = vld [vmem:[#allocation11 + $0x290] sm:$0xf]
        %v3381 = vld [vmem:[#allocation11 + $0x294] sm:$0xff]
        %v3382 = vld [vmem:[#allocation11 + $0x29c] sm:$0xf]
        %v3383 = vld [vmem:[#allocation11 + $0x2a0] sm:$0xff]
        %v3384 = vld [vmem:[#allocation11 + $0x2a8] sm:$0xf]
        %v3385 = vld [vmem:[#allocation11 + $0x2ac] sm:$0xff]
        %v3386 = vld [vmem:[#allocation11 + $0x2b4] sm:$0xf]
        %v3387 = vld [vmem:[#allocation11 + $0x2b8] sm:$0xff]
        %v3388 = vld [vmem:[#allocation11 + $0x2c0] sm:$0xf]
        %v3389 = vld [vmem:[#allocation11 + $0x2c4] sm:$0xff]
        %v3390 = vld [vmem:[#allocation11 + $0x2cc] sm:$0xf]
        %v3391 = vld [vmem:[#allocation11 + $0x2d0] sm:$0xff]
        %v3392 = vld [vmem:[#allocation11 + $0x2d8] sm:$0xf]
        %v3393 = vld [vmem:[#allocation11 + $0x2dc] sm:$0xff]
        %v3394 = vld [vmem:[#allocation11 + $0x2e4] sm:$0xf]
        %v3395 = vld [vmem:[#allocation11 + $0x2e8] sm:$0xff]
        %v3396 = vld [vmem:[#allocation11 + $0x2f0] sm:$0xf]
        %v3397 = vld [vmem:[#allocation11 + $0x2f4] sm:$0xff]
        %v3398 = vld [vmem:[#allocation11 + $0x2fc] sm:$0xf]
        %v3399 = vld [vmem:[#allocation12] sm:$0x7]
        %v3401 = vlaneseq
        %v3402 = vshrl.u32 %v3401, 7
        %v3403 = vsub.s32 0, %v3402
        %v3404 = vrot.slane %v3399, %v3403
        %v3405 = vlaneseq
        %v3406 = vshrl.u32 %v3405, 7
        %v3407 = vsub.s32 1, %v3406
        %v3408 = vrot.slane %v3399, %v3407
        %v3409 = vlaneseq
        %v3410 = vshrl.u32 %v3409, 7
        %v3411 = vsub.s32 2, %v3410
        %v3412 = vrot.slane %v3399, %v3411
        %v3418 = vunpack.c.l.b16 %v3269
        %v3419 = vunpack.c.h.b16 %v3269
        %v3420 = vunpack.c.l.b16 %v3270
        %v3421 = vunpack.c.h.b16 %v3270
        %v3422 = vpack.c.b16 %v3418, %v3418
        %v3423 = vpack.c.b16 %v3419, %v3419
        %v3424 = vpack.c.b16 %v3420, %v3420
        %v3425 = vpack.c.b16 %v3421, %v3421
        %v3558 = vunpack.c.l.b16 %v3271
        %v3559 = vunpack.c.h.b16 %v3271
        %v3560 = vunpack.c.l.b16 %v3272
        %v3561 = vunpack.c.l.b16 %v3273
        %v3562 = vunpack.c.h.b16 %v3273
        %v3563 = vunpack.c.l.b16 %v3274
        %v3564 = vunpack.c.l.b16 %v3275
        %v3565 = vunpack.c.h.b16 %v3275
        %v3566 = vunpack.c.l.b16 %v3276
        %v3567 = vunpack.c.l.b16 %v3277
        %v3568 = vunpack.c.h.b16 %v3277
        %v3569 = vunpack.c.l.b16 %v3278
        %v3570 = vunpack.c.l.b16 %v3279
        %v3571 = vunpack.c.h.b16 %v3279
        %v3572 = vunpack.c.l.b16 %v3280
        %v3573 = vunpack.c.l.b16 %v3281
        %v3574 = vunpack.c.h.b16 %v3281
        %v3575 = vunpack.c.l.b16 %v3282
        %v3576 = vunpack.c.l.b16 %v3283
        %v3577 = vunpack.c.h.b16 %v3283
        %v3578 = vunpack.c.l.b16 %v3284
        %v3579 = vunpack.c.l.b16 %v3285
        %v3580 = vunpack.c.h.b16 %v3285
        %v3581 = vunpack.c.l.b16 %v3286
        %v3582 = vunpack.c.l.b16 %v3287
        %v3583 = vunpack.c.h.b16 %v3287
        %v3584 = vunpack.c.l.b16 %v3288
        %v3585 = vunpack.c.l.b16 %v3289
        %v3586 = vunpack.c.h.b16 %v3289
        %v3587 = vunpack.c.l.b16 %v3290
        %v3588 = vunpack.c.l.b16 %v3291
        %v3589 = vunpack.c.h.b16 %v3291
        %v3590 = vunpack.c.l.b16 %v3292
        %v3591 = vunpack.c.l.b16 %v3293
        %v3592 = vunpack.c.h.b16 %v3293
        %v3593 = vunpack.c.l.b16 %v3294
        %v3594 = vunpack.c.l.b16 %v3295
        %v3595 = vunpack.c.h.b16 %v3295
        %v3596 = vunpack.c.l.b16 %v3296
        %v3597 = vunpack.c.l.b16 %v3297
        %v3598 = vunpack.c.h.b16 %v3297
        %v3599 = vunpack.c.l.b16 %v3298
        %v3600 = vunpack.c.l.b16 %v3299
        %v3601 = vunpack.c.h.b16 %v3299
        %v3602 = vunpack.c.l.b16 %v3300
        %v3603 = vunpack.c.l.b16 %v3301
        %v3604 = vunpack.c.h.b16 %v3301
        %v3605 = vunpack.c.l.b16 %v3302
        %v3606 = vunpack.c.l.b16 %v3303
        %v3607 = vunpack.c.h.b16 %v3303
        %v3608 = vunpack.c.l.b16 %v3304
        %v3609 = vunpack.c.l.b16 %v3305
        %v3610 = vunpack.c.h.b16 %v3305
        %v3611 = vunpack.c.l.b16 %v3306
        %v3612 = vunpack.c.l.b16 %v3307
        %v3613 = vunpack.c.h.b16 %v3307
        %v3614 = vunpack.c.l.b16 %v3308
        %v3615 = vunpack.c.l.b16 %v3309
        %v3616 = vunpack.c.h.b16 %v3309
        %v3617 = vunpack.c.l.b16 %v3310
        %v3618 = vunpack.c.l.b16 %v3311
        %v3619 = vunpack.c.h.b16 %v3311
        %v3620 = vunpack.c.l.b16 %v3312
        %v3621 = vunpack.c.l.b16 %v3313
        %v3622 = vunpack.c.h.b16 %v3313
        %v3623 = vunpack.c.l.b16 %v3314
        %v3624 = vunpack.c.l.b16 %v3315
        %v3625 = vunpack.c.h.b16 %v3315
        %v3626 = vunpack.c.l.b16 %v3316
        %v3627 = vunpack.c.l.b16 %v3317
        %v3628 = vunpack.c.h.b16 %v3317
        %v3629 = vunpack.c.l.b16 %v3318
        %v3630 = vunpack.c.l.b16 %v3319
        %v3631 = vunpack.c.h.b16 %v3319
        %v3632 = vunpack.c.l.b16 %v3320
        %v3633 = vunpack.c.l.b16 %v3321
        %v3634 = vunpack.c.h.b16 %v3321
        %v3635 = vunpack.c.l.b16 %v3322
        %v3636 = vunpack.c.l.b16 %v3323
        %v3637 = vunpack.c.h.b16 %v3323
        %v3638 = vunpack.c.l.b16 %v3324
        %v3639 = vunpack.c.l.b16 %v3325
        %v3640 = vunpack.c.h.b16 %v3325
        %v3641 = vunpack.c.l.b16 %v3326
        %v3642 = vunpack.c.l.b16 %v3327
        %v3643 = vunpack.c.h.b16 %v3327
        %v3644 = vunpack.c.l.b16 %v3328
        %v3645 = vunpack.c.l.b16 %v3329
        %v3646 = vunpack.c.h.b16 %v3329
        %v3647 = vunpack.c.l.b16 %v3330
        %v3648 = vunpack.c.l.b16 %v3331
        %v3649 = vunpack.c.h.b16 %v3331
        %v3650 = vunpack.c.l.b16 %v3332
        %v3651 = vunpack.c.l.b16 %v3333
        %v3652 = vunpack.c.h.b16 %v3333
        %v3653 = vunpack.c.l.b16 %v3334
        %v3654 = vunpack.c.l.b16 %v3335
        %v3655 = vunpack.c.h.b16 %v3335
        %v3656 = vunpack.c.l.b16 %v3336
        %v3657 = vunpack.c.l.b16 %v3337
        %v3658 = vunpack.c.h.b16 %v3337
        %v3659 = vunpack.c.l.b16 %v3338
        %v3660 = vunpack.c.l.b16 %v3339
        %v3661 = vunpack.c.h.b16 %v3339
        %v3662 = vunpack.c.l.b16 %v3340
        %v3663 = vunpack.c.l.b16 %v3341
        %v3664 = vunpack.c.h.b16 %v3341
        %v3665 = vunpack.c.l.b16 %v3342
        %v3666 = vunpack.c.l.b16 %v3343
        %v3667 = vunpack.c.h.b16 %v3343
        %v3668 = vunpack.c.l.b16 %v3344
        %v3669 = vunpack.c.l.b16 %v3345
        %v3670 = vunpack.c.h.b16 %v3345
        %v3671 = vunpack.c.l.b16 %v3346
        %v3672 = vunpack.c.l.b16 %v3347
        %v3673 = vunpack.c.h.b16 %v3347
        %v3674 = vunpack.c.l.b16 %v3348
        %v3675 = vunpack.c.l.b16 %v3349
        %v3676 = vunpack.c.h.b16 %v3349
        %v3677 = vunpack.c.l.b16 %v3350
        %v3678 = vunpack.c.l.b16 %v3351
        %v3679 = vunpack.c.h.b16 %v3351
        %v3680 = vunpack.c.l.b16 %v3352
        %v3681 = vunpack.c.l.b16 %v3353
        %v3682 = vunpack.c.h.b16 %v3353
        %v3683 = vunpack.c.l.b16 %v3354
        %v3684 = vunpack.c.l.b16 %v3355
        %v3685 = vunpack.c.h.b16 %v3355
        %v3686 = vunpack.c.l.b16 %v3356
        %v3687 = vunpack.c.l.b16 %v3357
        %v3688 = vunpack.c.h.b16 %v3357
        %v3689 = vunpack.c.l.b16 %v3358
        %v3690 = vunpack.c.l.b16 %v3359
        %v3691 = vunpack.c.h.b16 %v3359
        %v3692 = vunpack.c.l.b16 %v3360
        %v3693 = vunpack.c.l.b16 %v3361
        %v3694 = vunpack.c.h.b16 %v3361
        %v3695 = vunpack.c.l.b16 %v3362
        %v3696 = vunpack.c.l.b16 %v3363
        %v3697 = vunpack.c.h.b16 %v3363
        %v3698 = vunpack.c.l.b16 %v3364
        %v3699 = vunpack.c.l.b16 %v3365
        %v3700 = vunpack.c.h.b16 %v3365
        %v3701 = vunpack.c.l.b16 %v3366
        %v3702 = vunpack.c.l.b16 %v3367
        %v3703 = vunpack.c.h.b16 %v3367
        %v3704 = vunpack.c.l.b16 %v3368
        %v3705 = vunpack.c.l.b16 %v3369
        %v3706 = vunpack.c.h.b16 %v3369
        %v3707 = vunpack.c.l.b16 %v3370
        %v3708 = vunpack.c.l.b16 %v3371
        %v3709 = vunpack.c.h.b16 %v3371
        %v3710 = vunpack.c.l.b16 %v3372
        %v3711 = vunpack.c.l.b16 %v3373
        %v3712 = vunpack.c.h.b16 %v3373
        %v3713 = vunpack.c.l.b16 %v3374
        %v3714 = vunpack.c.l.b16 %v3375
        %v3715 = vunpack.c.h.b16 %v3375
        %v3716 = vunpack.c.l.b16 %v3376
        %v3717 = vunpack.c.l.b16 %v3377
        %v3718 = vunpack.c.h.b16 %v3377
        %v3719 = vunpack.c.l.b16 %v3378
        %v3720 = vunpack.c.l.b16 %v3379
        %v3721 = vunpack.c.h.b16 %v3379
        %v3722 = vunpack.c.l.b16 %v3380
        %v3723 = vunpack.c.l.b16 %v3381
        %v3724 = vunpack.c.h.b16 %v3381
        %v3725 = vunpack.c.l.b16 %v3382
        %v3726 = vunpack.c.l.b16 %v3383
        %v3727 = vunpack.c.h.b16 %v3383
        %v3728 = vunpack.c.l.b16 %v3384
        %v3729 = vunpack.c.l.b16 %v3385
        %v3730 = vunpack.c.h.b16 %v3385
        %v3731 = vunpack.c.l.b16 %v3386
        %v3732 = vunpack.c.l.b16 %v3387
        %v3733 = vunpack.c.h.b16 %v3387
        %v3734 = vunpack.c.l.b16 %v3388
        %v3735 = vunpack.c.l.b16 %v3389
        %v3736 = vunpack.c.h.b16 %v3389
        %v3737 = vunpack.c.l.b16 %v3390
        %v3738 = vunpack.c.l.b16 %v3391
        %v3739 = vunpack.c.h.b16 %v3391
        %v3740 = vunpack.c.l.b16 %v3392
        %v3741 = vunpack.c.l.b16 %v3393
        %v3742 = vunpack.c.h.b16 %v3393
        %v3743 = vunpack.c.l.b16 %v3394
        %v3744 = vunpack.c.l.b16 %v3395
        %v3745 = vunpack.c.h.b16 %v3395
        %v3746 = vunpack.c.l.b16 %v3396
        %v3747 = vunpack.c.l.b16 %v3397
        %v3748 = vunpack.c.h.b16 %v3397
        %v3749 = vunpack.c.l.b16 %v3398
        %v3750 = vpack.c.b16 %v3561, %v3558
        %v3751 = vpack.c.b16 %v3562, %v3559
        %v3752 = vpack.c.b16 %v3563, %v3560
        %v3753 = vpack.c.b16 %v3567, %v3564
        %v3754 = vpack.c.b16 %v3568, %v3565
        %v3755 = vpack.c.b16 %v3569, %v3566
        %v3756 = vpack.c.b16 %v3573, %v3570
        %v3757 = vpack.c.b16 %v3574, %v3571
        %v3758 = vpack.c.b16 %v3575, %v3572
        %v3759 = vpack.c.b16 %v3579, %v3576
        %v3760 = vpack.c.b16 %v3580, %v3577
        %v3761 = vpack.c.b16 %v3581, %v3578
        %v3762 = vpack.c.b16 %v3585, %v3582
        %v3763 = vpack.c.b16 %v3586, %v3583
        %v3764 = vpack.c.b16 %v3587, %v3584
        %v3765 = vpack.c.b16 %v3591, %v3588
        %v3766 = vpack.c.b16 %v3592, %v3589
        %v3767 = vpack.c.b16 %v3593, %v3590
        %v3768 = vpack.c.b16 %v3597, %v3594
        %v3769 = vpack.c.b16 %v3598, %v3595
        %v3770 = vpack.c.b16 %v3599, %v3596
        %v3771 = vpack.c.b16 %v3603, %v3600
        %v3772 = vpack.c.b16 %v3604, %v3601
        %v3773 = vpack.c.b16 %v3605, %v3602
        %v3774 = vpack.c.b16 %v3609, %v3606
        %v3775 = vpack.c.b16 %v3610, %v3607
        %v3776 = vpack.c.b16 %v3611, %v3608
        %v3777 = vpack.c.b16 %v3615, %v3612
        %v3778 = vpack.c.b16 %v3616, %v3613
        %v3779 = vpack.c.b16 %v3617, %v3614
        %v3780 = vpack.c.b16 %v3621, %v3618
        %v3781 = vpack.c.b16 %v3622, %v3619
        %v3782 = vpack.c.b16 %v3623, %v3620
        %v3783 = vpack.c.b16 %v3627, %v3624
        %v3784 = vpack.c.b16 %v3628, %v3625
        %v3785 = vpack.c.b16 %v3629, %v3626
        %v3786 = vpack.c.b16 %v3633, %v3630
        %v3787 = vpack.c.b16 %v3634, %v3631
        %v3788 = vpack.c.b16 %v3635, %v3632
        %v3789 = vpack.c.b16 %v3639, %v3636
        %v3790 = vpack.c.b16 %v3640, %v3637
        %v3791 = vpack.c.b16 %v3641, %v3638
        %v3792 = vpack.c.b16 %v3645, %v3642
        %v3793 = vpack.c.b16 %v3646, %v3643
        %v3794 = vpack.c.b16 %v3647, %v3644
        %v3795 = vpack.c.b16 %v3651, %v3648
        %v3796 = vpack.c.b16 %v3652, %v3649
        %v3797 = vpack.c.b16 %v3653, %v3650
        %v3798 = vpack.c.b16 %v3657, %v3654
        %v3799 = vpack.c.b16 %v3658, %v3655
        %v3800 = vpack.c.b16 %v3659, %v3656
        %v3801 = vpack.c.b16 %v3663, %v3660
        %v3802 = vpack.c.b16 %v3664, %v3661
        %v3803 = vpack.c.b16 %v3665, %v3662
        %v3804 = vpack.c.b16 %v3669, %v3666
        %v3805 = vpack.c.b16 %v3670, %v3667
        %v3806 = vpack.c.b16 %v3671, %v3668
        %v3807 = vpack.c.b16 %v3675, %v3672
        %v3808 = vpack.c.b16 %v3676, %v3673
        %v3809 = vpack.c.b16 %v3677, %v3674
        %v3810 = vpack.c.b16 %v3681, %v3678
        %v3811 = vpack.c.b16 %v3682, %v3679
        %v3812 = vpack.c.b16 %v3683, %v3680
        %v3813 = vpack.c.b16 %v3687, %v3684
        %v3814 = vpack.c.b16 %v3688, %v3685
        %v3815 = vpack.c.b16 %v3689, %v3686
        %v3816 = vpack.c.b16 %v3693, %v3690
        %v3817 = vpack.c.b16 %v3694, %v3691
        %v3818 = vpack.c.b16 %v3695, %v3692
        %v3819 = vpack.c.b16 %v3699, %v3696
        %v3820 = vpack.c.b16 %v3700, %v3697
        %v3821 = vpack.c.b16 %v3701, %v3698
        %v3822 = vpack.c.b16 %v3705, %v3702
        %v3823 = vpack.c.b16 %v3706, %v3703
        %v3824 = vpack.c.b16 %v3707, %v3704
        %v3825 = vpack.c.b16 %v3711, %v3708
        %v3826 = vpack.c.b16 %v3712, %v3709
        %v3827 = vpack.c.b16 %v3713, %v3710
        %v3828 = vpack.c.b16 %v3717, %v3714
        %v3829 = vpack.c.b16 %v3718, %v3715
        %v3830 = vpack.c.b16 %v3719, %v3716
        %v3831 = vpack.c.b16 %v3723, %v3720
        %v3832 = vpack.c.b16 %v3724, %v3721
        %v3833 = vpack.c.b16 %v3725, %v3722
        %v3834 = vpack.c.b16 %v3729, %v3726
        %v3835 = vpack.c.b16 %v3730, %v3727
        %v3836 = vpack.c.b16 %v3731, %v3728
        %v3837 = vpack.c.b16 %v3735, %v3732
        %v3838 = vpack.c.b16 %v3736, %v3733
        %v3839 = vpack.c.b16 %v3737, %v3734
        %v3840 = vpack.c.b16 %v3741, %v3738
        %v3841 = vpack.c.b16 %v3742, %v3739
        %v3842 = vpack.c.b16 %v3743, %v3740
        %v3843 = vpack.c.b16 %v3747, %v3744
        %v3844 = vpack.c.b16 %v3748, %v3745
        %v3845 = vpack.c.b16 %v3749, %v3746
        %3942 = vmatprep.subr.bf16.mxu0 %v3772
        %3943 = vmatpush1.bf16.msra.mxu0 %v3771
        %3944 = vmatprep.subr.bf16.mxu0 %v3769
        %3945 = vmatpush1.bf16.msra.mxu0 %v3768
        %3946 = vmatprep.subr.bf16.mxu0 %v3766
        %3947 = vmatpush1.bf16.msra.mxu0 %v3765
        %3948 = vmatprep.subr.bf16.mxu0 %v3763
        %3949 = vmatpush1.bf16.msra.mxu0 %v3762
        %3950 = vmatprep.subr.bf16.mxu0 %v3760
        %3951 = vmatpush1.bf16.msra.mxu0 %v3759
        %3952 = vmatprep.subr.bf16.mxu0 %v3757
        %3953 = vmatpush1.bf16.msra.mxu0 %v3756
        %3954 = vmatprep.subr.bf16.mxu0 %v3754
        %3955 = vmatpush1.bf16.msra.mxu0 %v3753
        %3956 = vmatprep.subr.bf16.mxu0 %v3751
        %3957 = vmatpush1.bf16.msra.mxu0 %v3750
        %3958 = vmatprep.subr.bf16.mxu0 %v3796
        %3959 = vmatpush2.bf16.msra.mxu0 %v3795
        %3960 = vmatprep.subr.bf16.mxu0 %v3793
        %3961 = vmatpush2.bf16.msra.mxu0 %v3792
        %3962 = vmatprep.subr.bf16.mxu0 %v3790
        %3963 = vmatpush2.bf16.msra.mxu0 %v3789
        %3964 = vmatprep.subr.bf16.mxu0 %v3787
        %3965 = vmatpush2.bf16.msra.mxu0 %v3786
        %3966 = vmatprep.subr.bf16.mxu0 %v3784
        %3967 = vmatpush2.bf16.msra.mxu0 %v3783
        %3968 = vmatprep.subr.bf16.mxu0 %v3781
        %3969 = vmatpush2.bf16.msra.mxu0 %v3780
        %3970 = vmatprep.subr.bf16.mxu0 %v3778
        %3971 = vmatpush2.bf16.msra.mxu0 %v3777
        %3972 = vmatprep.subr.bf16.mxu0 %v3775
        %3973 = vmatpush2.bf16.msra.mxu0 %v3774
        %3974 = vmatprep.mubr.bf16.mxu0 %v3423
        %3975 = vmatmul.mubr.bf16.gmra.mxu0 %v3422
        %v3976 = vpop.f32.mrf.mxu0
        %v3977 = vadd.f32 %v3404, %v3976
        %v3978 = vpop.f32.mrf.mxu0
        %v3979 = vadd.f32 %v3408, %v3978
        %v3980 = vpop.f32.mrf.mxu0
        %v3981 = vpop.f32.mrf.mxu0
        %3982 = vdwg.mxu0
        %3983 = vmatprep.subr.bf16.mxu0 %v3820
        %3984 = vmatpush1.bf16.msra.mxu0 %v3819
        %3985 = vmatprep.subr.bf16.mxu0 %v3817
        %3986 = vmatpush1.bf16.msra.mxu0 %v3816
        %3987 = vmatprep.subr.bf16.mxu0 %v3814
        %3988 = vmatpush1.bf16.msra.mxu0 %v3813
        %3989 = vmatprep.subr.bf16.mxu0 %v3811
        %3990 = vmatpush1.bf16.msra.mxu0 %v3810
        %3991 = vmatprep.subr.bf16.mxu0 %v3808
        %3992 = vmatpush1.bf16.msra.mxu0 %v3807
        %3993 = vmatprep.subr.bf16.mxu0 %v3805
        %3994 = vmatpush1.bf16.msra.mxu0 %v3804
        %3995 = vmatprep.subr.bf16.mxu0 %v3802
        %3996 = vmatpush1.bf16.msra.mxu0 %v3801
        %3997 = vmatprep.subr.bf16.mxu0 %v3799
        %3998 = vmatpush1.bf16.msra.mxu0 %v3798
        %3999 = vmatprep.subr.bf16.mxu0 %v3844
        %4000 = vmatpush2.bf16.msra.mxu0 %v3843
        %4001 = vmatprep.subr.bf16.mxu0 %v3841
        %4002 = vmatpush2.bf16.msra.mxu0 %v3840
        %4003 = vmatprep.subr.bf16.mxu0 %v3838
        %4004 = vmatpush2.bf16.msra.mxu0 %v3837
        %4005 = vmatprep.subr.bf16.mxu0 %v3835
        %4006 = vmatpush2.bf16.msra.mxu0 %v3834
        %4007 = vmatprep.subr.bf16.mxu0 %v3832
        %4008 = vmatpush2.bf16.msra.mxu0 %v3831
        %4009 = vmatprep.subr.bf16.mxu0 %v3829
        %4010 = vmatpush2.bf16.msra.mxu0 %v3828
        %4011 = vmatprep.subr.bf16.mxu0 %v3826
        %4012 = vmatpush2.bf16.msra.mxu0 %v3825
        %4013 = vmatprep.subr.bf16.mxu0 %v3823
        %4014 = vmatpush2.bf16.msra.mxu0 %v3822
        %4015 = vmatprep.mubr.bf16.mxu0 %v3425
        %4016 = vmatmul.mubr.bf16.gmra.mxu0 %v3424
        %v4017 = vpop.f32.mrf.mxu0
        %v4018 = vadd.f32 %v3977, %v4017
        %v4019 = vpop.f32.mrf.mxu0
        %v4020 = vadd.f32 %v3979, %v4019
        %v4021 = vpop.f32.mrf.mxu0
        %v4022 = vpop.f32.mrf.mxu0
        %4023 = vdwg.mxu0
        %4024 = vmatprep.subr.bf16.mxu0 0
        %4025 = vmatpush1.bf16.msra.mxu0 %v3773
        %4026 = vmatprep.subr.bf16.mxu0 0
        %4027 = vmatpush1.bf16.msra.mxu0 %v3770
        %4028 = vmatprep.subr.bf16.mxu0 0
        %4029 = vmatpush1.bf16.msra.mxu0 %v3767
        %4030 = vmatprep.subr.bf16.mxu0 0
        %4031 = vmatpush1.bf16.msra.mxu0 %v3764
        %4032 = vmatprep.subr.bf16.mxu0 0
        %4033 = vmatpush1.bf16.msra.mxu0 %v3761
        %4034 = vmatprep.subr.bf16.mxu0 0
        %4035 = vmatpush1.bf16.msra.mxu0 %v3758
        %4036 = vmatprep.subr.bf16.mxu0 0
        %4037 = vmatpush1.bf16.msra.mxu0 %v3755
        %4038 = vmatprep.subr.bf16.mxu0 0
        %4039 = vmatpush1.bf16.msra.mxu0 %v3752
        %4040 = vmatprep.subr.bf16.mxu0 0
        %4041 = vmatpush2.bf16.msra.mxu0 %v3797
        %4042 = vmatprep.subr.bf16.mxu0 0
        %4043 = vmatpush2.bf16.msra.mxu0 %v3794
        %4044 = vmatprep.subr.bf16.mxu0 0
        %4045 = vmatpush2.bf16.msra.mxu0 %v3791
        %4046 = vmatprep.subr.bf16.mxu0 0
        %4047 = vmatpush2.bf16.msra.mxu0 %v3788
        %4048 = vmatprep.subr.bf16.mxu0 0
        %4049 = vmatpush2.bf16.msra.mxu0 %v3785
        %4050 = vmatprep.subr.bf16.mxu0 0
        %4051 = vmatpush2.bf16.msra.mxu0 %v3782
        %4052 = vmatprep.subr.bf16.mxu0 0
        %4053 = vmatpush2.bf16.msra.mxu0 %v3779
        %4054 = vmatprep.subr.bf16.mxu0 0
        %4055 = vmatpush2.bf16.msra.mxu0 %v3776
        %4056 = vmatprep.mubr.bf16.mxu0 %v3423
        %4057 = vmatmul.mubr.bf16.gmra.mxu0 %v3422
        %v4058 = vpop.f32.mrf.mxu0
        %v4059 = vadd.f32 %v3412, %v4058
        %v4060 = vpop.f32.mrf.mxu0
        %v4061 = vpop.f32.mrf.mxu0
        %v4062 = vpop.f32.mrf.mxu0
        %4063 = vdwg.mxu0
        %4064 = vmatprep.subr.bf16.mxu0 0
        %4065 = vmatpush1.bf16.msra.mxu0 %v3821
        %4066 = vmatprep.subr.bf16.mxu0 0
        %4067 = vmatpush1.bf16.msra.mxu0 %v3818
        %4068 = vmatprep.subr.bf16.mxu0 0
        %4069 = vmatpush1.bf16.msra.mxu0 %v3815
        %4070 = vmatprep.subr.bf16.mxu0 0
        %4071 = vmatpush1.bf16.msra.mxu0 %v3812
        %4072 = vmatprep.subr.bf16.mxu0 0
        %4073 = vmatpush1.bf16.msra.mxu0 %v3809
        %4074 = vmatprep.subr.bf16.mxu0 0
        %4075 = vmatpush1.bf16.msra.mxu0 %v3806
        %4076 = vmatprep.subr.bf16.mxu0 0
        %4077 = vmatpush1.bf16.msra.mxu0 %v3803
        %4078 = vmatprep.subr.bf16.mxu0 0
        %4079 = vmatpush1.bf16.msra.mxu0 %v3800
        %4080 = vmatprep.subr.bf16.mxu0 0
        %4081 = vmatpush2.bf16.msra.mxu0 %v3845
        %4082 = vmatprep.subr.bf16.mxu0 0
        %4083 = vmatpush2.bf16.msra.mxu0 %v3842
        %4084 = vmatprep.subr.bf16.mxu0 0
        %4085 = vmatpush2.bf16.msra.mxu0 %v3839
        %4086 = vmatprep.subr.bf16.mxu0 0
        %4087 = vmatpush2.bf16.msra.mxu0 %v3836
        %4088 = vmatprep.subr.bf16.mxu0 0
        %4089 = vmatpush2.bf16.msra.mxu0 %v3833
        %4090 = vmatprep.subr.bf16.mxu0 0
        %4091 = vmatpush2.bf16.msra.mxu0 %v3830
        %4092 = vmatprep.subr.bf16.mxu0 0
        %4093 = vmatpush2.bf16.msra.mxu0 %v3827
        %4094 = vmatprep.subr.bf16.mxu0 0
        %4095 = vmatpush2.bf16.msra.mxu0 %v3824
        %4096 = vmatprep.mubr.bf16.mxu0 %v3425
        %4097 = vmatmul.mubr.bf16.gmra.mxu0 %v3424
        %v4098 = vpop.f32.mrf.mxu0
        %v4099 = vadd.f32 %v4059, %v4098
        %v4100 = vpop.f32.mrf.mxu0
        %v4101 = vpop.f32.mrf.mxu0
        %v4102 = vpop.f32.mrf.mxu0
        %4103 = vdwg.mxu0
        %v4104 = vadd.f32 %v4018, %v4020
        %v4105 = vsel %vm3118, %v4099, 0.0
        %v4106 = vadd.f32 %v4104, %v4105
        %4107 = vadd.xlane.f32.xlu0 %v4106
        %v4108 = vpop.xlane.xlu0 %4107
        %v4109 = vmul.f32 %v4108, %v3123
        %v4110 = vsub.f32 %v4018, %v4109
        %v4111 = vsub.f32 %v4020, %v4109
        %v4112 = vsub.f32 %v4099, %v4109
        %v4113 = vmul.f32 %v4110, %v4110
        %v4114 = vmul.f32 %v4111, %v4111
        %v4115 = vmul.f32 %v4112, %v4112
        %v4116 = vadd.f32 %v4113, %v4114
        %v4117 = vsel %vm3118, %v4115, 0.0
        %v4118 = vadd.f32 %v4116, %v4117
        %4119 = vadd.xlane.f32.xlu0 %v4118
        %v4120 = vpop.xlane.xlu0 %4119
        %v4121 = vmul.f32 %v4120, %v3123
        %v4122 = vadd.f32 %v4121, 1e-05
        %v4123 = vrsqrt.pop %v4122
        %v4124 = vmul.f32 %v4110, %v4123
        %v4125 = vmul.f32 %v4111, %v4123
        %v4126 = vmul.f32 %v4112, %v4123
        %v4127 = vld [vmem:[%s13] sm:$0x7]
        %v4129 = vlaneseq
        %v4130 = vshrl.u32 %v4129, 7
        %v4131 = vsub.s32 0, %v4130
        %v4132 = vrot.slane %v4127, %v4131
        %v4133 = vlaneseq
        %v4134 = vshrl.u32 %v4133, 7
        %v4135 = vsub.s32 1, %v4134
        %v4136 = vrot.slane %v4127, %v4135
        %v4137 = vlaneseq
        %v4138 = vshrl.u32 %v4137, 7
        %v4139 = vsub.s32 2, %v4138
        %v4140 = vrot.slane %v4127, %v4139
        %v4144 = vmul.f32 %v4124, %v4132
        %v4145 = vmul.f32 %v4125, %v4136
        %v4146 = vmul.f32 %v4126, %v4140
        %v4147 = vld [vmem:[%s14] sm:$0x7]
        %v4149 = vlaneseq
        %v4150 = vshrl.u32 %v4149, 7
        %v4151 = vsub.s32 0, %v4150
        %v4152 = vrot.slane %v4147, %v4151
        %v4153 = vlaneseq
        %v4154 = vshrl.u32 %v4153, 7
        %v4155 = vsub.s32 1, %v4154
        %v4156 = vrot.slane %v4147, %v4155
        %v4157 = vlaneseq
        %v4158 = vshrl.u32 %v4157, 7
        %v4159 = vsub.s32 2, %v4158
        %v4160 = vrot.slane %v4147, %v4159
        %v4164 = vadd.f32 %v4144, %v4152
        %v4165 = vadd.f32 %v4145, %v4156
        %v4166 = vadd.f32 %v4146, %v4160
        %v4167 = vpack.c.bf16 %v4164, %v4164
        %v4168 = vpack.c.bf16 %v4165, %v4165
        %v4169 = vpack.c.bf16 %v4166, %v4166
        %v4171 = vsel %vm3118, %v4169, 0
        %4173 = vmatprep.subr.bf16.mxu0 0
        %4174 = vmatpush1.bf16.xpose.msra.mxu0 0
        %4175 = vmatprep.subr.bf16.mxu0 0
        %4176 = vmatpush1.bf16.xpose.msra.mxu0 0
        %4177 = vmatprep.subr.bf16.mxu0 0
        %4178 = vmatpush1.bf16.xpose.msra.mxu0 0
        %4179 = vmatprep.subr.bf16.mxu0 0
        %4180 = vmatpush1.bf16.xpose.msra.mxu0 0
        %4181 = vmatprep.subr.bf16.mxu0 0
        %4182 = vmatpush1.bf16.xpose.msra.mxu0 0
        %4183 = vmatprep.subr.bf16.mxu0 0
        %4184 = vmatpush1.bf16.xpose.msra.mxu0 0
        %4185 = vmatprep.subr.bf16.mxu0 0
        %4186 = vmatpush1.bf16.xpose.msra.mxu0 0
        %4187 = vmatprep.subr.bf16.mxu0 %v4168
        %4188 = vmatpush1.bf16.xpose.msra.mxu0 %v4167
        %4189 = vmatprep.subr.bf16.mxu0 0
        %4190 = vmatpush2.bf16.xpose.msra.mxu0 0
        %4191 = vmatprep.subr.bf16.mxu0 0
        %4192 = vmatpush2.bf16.xpose.msra.mxu0 0
        %4193 = vmatprep.subr.bf16.mxu0 0
        %4194 = vmatpush2.bf16.xpose.msra.mxu0 0
        %4195 = vmatprep.subr.bf16.mxu0 0
        %4196 = vmatpush2.bf16.xpose.msra.mxu0 0
        %4197 = vmatprep.subr.bf16.mxu0 0
        %4198 = vmatpush2.bf16.xpose.msra.mxu0 0
        %4199 = vmatprep.subr.bf16.mxu0 0
        %4200 = vmatpush2.bf16.xpose.msra.mxu0 0
        %4201 = vmatprep.subr.bf16.mxu0 0
        %4202 = vmatpush2.bf16.xpose.msra.mxu0 0
        %4203 = vmatprep.subr.bf16.mxu0 0
        %4204 = vmatpush2.bf16.xpose.msra.mxu0 0
        %4205 = vmatprep.mubr.bf16.mxu0 %v4168
        %4206 = vmatmul.mubr.bf16.gmra.mxu0 %v4167
        %v4207 = vpop.f32.mrf.mxu0
        %v4208 = vadd.f32 0.0, %v4207
        %v4209 = vpop.f32.mrf.mxu0
        %v4210 = vpop.f32.mrf.mxu0
        %v4211 = vpop.f32.mrf.mxu0
        %4212 = vdwg.mxu0
        %4213 = vmatprep.subr.bf16.mxu0 0
        %4214 = vmatpush1.bf16.xpose.msra.mxu0 0
        %4215 = vmatprep.subr.bf16.mxu0 0
        %4216 = vmatpush1.bf16.xpose.msra.mxu0 0
        %4217 = vmatprep.subr.bf16.mxu0 0
        %4218 = vmatpush1.bf16.xpose.msra.mxu0 0
        %4219 = vmatprep.subr.bf16.mxu0 0
        %4220 = vmatpush1.bf16.xpose.msra.mxu0 0
        %4221 = vmatprep.subr.bf16.mxu0 0
        %4222 = vmatpush1.bf16.xpose.msra.mxu0 0
        %4223 = vmatprep.subr.bf16.mxu0 0
        %4224 = vmatpush1.bf16.xpose.msra.mxu0 0
        %4225 = vmatprep.subr.bf16.mxu0 0
        %4226 = vmatpush1.bf16.xpose.msra.mxu0 0
        %4227 = vmatprep.subr.bf16.mxu0 0
        %4228 = vmatpush1.bf16.xpose.msra.mxu0 %v4171
        %4229 = vmatprep.subr.bf16.mxu0 0
        %4230 = vmatpush2.bf16.xpose.msra.mxu0 0
        %4231 = vmatprep.subr.bf16.mxu0 0
        %4232 = vmatpush2.bf16.xpose.msra.mxu0 0
        %4233 = vmatprep.subr.bf16.mxu0 0
        %4234 = vmatpush2.bf16.xpose.msra.mxu0 0
        %4235 = vmatprep.subr.bf16.mxu0 0
        %4236 = vmatpush2.bf16.xpose.msra.mxu0 0
        %4237 = vmatprep.subr.bf16.mxu0 0
        %4238 = vmatpush2.bf16.xpose.msra.mxu0 0
        %4239 = vmatprep.subr.bf16.mxu0 0
        %4240 = vmatpush2.bf16.xpose.msra.mxu0 0
        %4241 = vmatprep.subr.bf16.mxu0 0
        %4242 = vmatpush2.bf16.xpose.msra.mxu0 0
        %4243 = vmatprep.subr.bf16.mxu0 0
        %4244 = vmatpush2.bf16.xpose.msra.mxu0 0
        %4245 = vmatprep.mubr.bf16.mxu0 0
        %4246 = vmatmul.mubr.bf16.gmra.mxu0 %v4171
        %v4247 = vpop.f32.mrf.mxu0
        %v4248 = vadd.f32 %v4208, %v4247
        %v4249 = vpop.f32.mrf.mxu0
        %v4250 = vpop.f32.mrf.mxu0
        %v4251 = vpop.f32.mrf.mxu0
        %4252 = vdwg.mxu0
        %4253 = vst.msk [vmem:[%s721] sm:$0xff] %vm1450, %v4248
        %v4254 = vlaneseq
        %v4255 = vshrl.u32 %v4254, 7
        %vm4256 = vcmp.eq.s32.totalorder %v4255, 0
        %v4257 = vsel %vm1450, %v3263, 0.0
        %4258 = vadd.xlane.f32.xlu0 %v4257
        %v4259 = vpop.xlane.xlu0 %4258
        %v4260 = vrot.slane %v4259, 4
        %v4261 = vadd.f32 %v4259, %v4260
        %v4262 = vrot.slane %v4261, 2
        %v4263 = vadd.f32 %v4261, %v4262
        %v4264 = vrot.slane %v4263, 1
        %v4265 = vadd.f32 %v4263, %v4264
        %s4266 = vtos %v4265
        %v4267 = vstv %s4266
        %v4268 = vsel %vm4256, %v4267, 0.0
        %vm4269 = vcmp.eq.s32.totalorder %v4255, 1
        %v4270 = vmul.f32 %v3263, %v3263
        %v4271 = vsel %vm1450, %v4270, 0.0
        %4272 = vadd.xlane.f32.xlu0 %v4271
        %v4273 = vpop.xlane.xlu0 %4272
        %v4274 = vrot.slane %v4273, 4
        %v4275 = vadd.f32 %v4273, %v4274
        %v4276 = vrot.slane %v4275, 2
        %v4277 = vadd.f32 %v4275, %v4276
        %v4278 = vrot.slane %v4277, 1
        %v4279 = vadd.f32 %v4277, %v4278
        %s4280 = vtos %v4279
        %v4281 = vstv %s4280
        %v4282 = vsel %vm4269, %v4281, 0.0
        %v4283 = vadd.f32 %v4268, %v4282
        %vm4284 = vcmp.eq.s32.totalorder %v4255, 2
        %v4285 = vsel %vm1450, %v4248, 0.0
        %4286 = vadd.xlane.f32.xlu0 %v4285
        %v4287 = vpop.xlane.xlu0 %4286
        %v4288 = vrot.slane %v4287, 4
        %v4289 = vadd.f32 %v4287, %v4288
        %v4290 = vrot.slane %v4289, 2
        %v4291 = vadd.f32 %v4289, %v4290
        %v4292 = vrot.slane %v4291, 1
        %v4293 = vadd.f32 %v4291, %v4292
        %s4294 = vtos %v4293
        %v4295 = vstv %s4294
        %v4296 = vsel %vm4284, %v4295, 0.0
        %v4297 = vadd.f32 %v4283, %v4296
        %vm4298 = vcmp.eq.s32.totalorder %v4255, 3
        %v4299 = vmul.f32 %v4248, %v4248
        %v4300 = vsel %vm1450, %v4299, 0.0
        %4301 = vadd.xlane.f32.xlu0 %v4300
        %v4302 = vpop.xlane.xlu0 %4301
        %v4303 = vrot.slane %v4302, 4
        %v4304 = vadd.f32 %v4302, %v4303
        %v4305 = vrot.slane %v4304, 2
        %v4306 = vadd.f32 %v4304, %v4305
        %v4307 = vrot.slane %v4306, 1
        %v4308 = vadd.f32 %v4306, %v4307
        %s4309 = vtos %v4308
        %v4310 = vstv %s4309
        %v4311 = vsel %vm4298, %v4310, 0.0
        %v4312 = vadd.f32 %v4297, %v4311
        %4313 = vst [vmem:[%s725] sm:$0xff] %v4312
        %p4314 = scmp.lt.s32.totalorder %s37, 1
        %s4315 = scalar_select %p4314, %s37, 1
        %s4316 = smul.addr %s4315, 8
        %s4317 = scalar_lea.vmem %s15, %s4316
        %p4318 = scmp.lt.s32.totalorder %s37, 1
        %s4319 = scalar_select %p4318, %s37, 1
        %s4320 = smul.addr %s4319, 8
        %s4321 = scalar_lea.vmem %s16, %s4320
        %p4322 = scmp.lt.s32.totalorder %s37, 1
        %s4323 = scalar_select %p4322, %s37, 1
        %s4324 = smul.addr %s4323, 8
        %s4325 = scalar_lea.vmem %s17, %s4324
        // Predicated region
        $region105: #{_lambda_.2} parent=79 // pred_check
          %p4326 = pneg %p395
        $region106: #{_lambda_.2} parent=79 // pred_check_branch
          %4328 = sbr.rel (%p4326) target = $region108
        $region107: #{_lambda_.2} parent=79 // pred_region
          _
        $region108: #{_lambda_.2} parent=79 // pred_fallthru
          _
        // Predicated region
        $region109: #{_lambda_.2} parent=79 // pred_check
          %p4329 = pneg %p421
        $region110: #{_lambda_.2} parent=79 // pred_check_branch
          %4331 = sbr.rel (%p4329) target = $region112
        $region111: #{_lambda_.2} parent=79 // pred_region
          _
        $region112: #{_lambda_.2} parent=79 // pred_fallthru
          _
        // Predicated region
        $region113: #{_lambda_.2} parent=79 // pred_check
          %p4332 = pneg %p447
        $region114: #{_lambda_.2} parent=79 // pred_check_branch
          %4334 = sbr.rel (%p4332) target = $region116
        $region115: #{_lambda_.2} parent=79 // pred_region
          _
        $region116: #{_lambda_.2} parent=79 // pred_fallthru
          _
      $region80: #{_lambda_.2} parent=5 // pred_fallthru
        _
      %p4335 = scmp.le.s32.totalorder 2, %s32
      // Predicated region
      $region117: #{_lambda_.2} parent=5 // pred_check
        %p4336 = pneg %p4335
      $region118: #{_lambda_.2} parent=5 // pred_check_branch
        %4338 = sbr.rel (%p4336) target = $region120
      $region119: #{_lambda_.2} parent=5 // pred_region
        %s4339 = ssub.s32 %s32, 2
        // Predicated region
        $region121: #{_lambda_.2} parent=119 // pred_check
          %p4340 = pneg %p401
        $region122: #{_lambda_.2} parent=119 // pred_check_branch
          %4342 = sbr.rel (%p4340) target = $region124
        $region123: #{_lambda_.2} parent=119 // pred_region
          %p4343 = scmp.lt.s32.totalorder %s38, 1
          %s4344 = scalar_select %p4343, %s38, 1
          %s4345 = smul.addr %s4344, 8
          %s4346 = scalar_lea.vmem %s15, %s4345
        $region124: #{_lambda_.2} parent=119 // pred_fallthru
          _
        // Predicated region
        $region125: #{_lambda_.2} parent=119 // pred_check
          %p4347 = pneg %p427
        $region126: #{_lambda_.2} parent=119 // pred_check_branch
          %4349 = sbr.rel (%p4347) target = $region128
        $region127: #{_lambda_.2} parent=119 // pred_region
          %p4350 = scmp.lt.s32.totalorder %s38, 1
          %s4351 = scalar_select %p4350, %s38, 1
          %s4352 = smul.addr %s4351, 8
          %s4353 = scalar_lea.vmem %s16, %s4352
        $region128: #{_lambda_.2} parent=119 // pred_fallthru
          _
        // Predicated region
        $region129: #{_lambda_.2} parent=119 // pred_check
          %p4354 = pneg %p453
        $region130: #{_lambda_.2} parent=119 // pred_check_branch
          %4356 = sbr.rel (%p4354) target = $region132
        $region131: #{_lambda_.2} parent=119 // pred_region
          %p4357 = scmp.lt.s32.totalorder %s38, 1
          %s4358 = scalar_select %p4357, %s38, 1
          %s4359 = smul.addr %s4358, 8
          %s4360 = scalar_lea.vmem %s17, %s4359
        $region132: #{_lambda_.2} parent=119 // pred_fallthru
          _
      $region120: #{_lambda_.2} parent=5 // pred_fallthru
        _
    $region6: #{_lambda_.2} parent=1 // loop_footer
      %s36 = sadd.s32 1, %s32
    $region7: #{_lambda_.2} parent=1 // loop_footer_branch
      %31 = sbr.rel target = $region3
    $region8: #{_lambda_.2} parent=1 // loop_exit
      _
    %4361 = vsyncpa [#allocation5], 1
    %s4362 = scalar_lea.sflag [#allocation5], 1
    %4363 = vsyncpa %s4362, 1
    %4364 = vsyncpa [#allocation7], 1
    %s4365 = scalar_lea.sflag [#allocation7], 1
    %4366 = vsyncpa %s4365, 1
    %4367 = vsyncpa [#allocation10], 1
    %4368 = vsyncpa [#allocation13], 1

</llo_original>
